<compile_context>
chip_gen: v5e
topology: v5e:2x2
jax: 0.10.0
libtpu: 0.0.40
codegen_flags: <defaults>
</compile_context>

<pallas_src>
import functools

import jax
import jax.numpy as jnp
import numpy as np
from jax import lax
from jax.experimental import pallas as pl
from jax.experimental.pallas import tpu as pltpu


# ------------------------------ Pallas kernel ------------------------------ #

def _bottleneck_kernel(x_ref, w1_ref, b1_ref, w2_ref, b2_ref, w3_ref, b3_ref,
                       o_ref, y1_ref, *, H, W):
    """Fused Bottleneck forward for a block of batch elements (stride=1).

    x_ref  : (BB, H, W, Cin)  bf16   unpadded input block
    w1_ref : (Cin, P)         bf16   conv1 weight * bn1 scale
    w2_ref : (9P, P)          bf16   conv2 weight * bn2 scale, tap-major rows
    w3_ref : (P, 4P)          bf16   conv3 weight * bn3 scale
    b*_ref : (1, C)           f32    folded BN biases
    o_ref  : (BB, H, W, 4P)   bf16   output block
    y1_ref : (BB, H+2, W+2, P) f32   VMEM scratch: zero-padded conv1 activation
    """
    BB = x_ref.shape[0]
    Cin = x_ref.shape[-1]
    P = w1_ref.shape[-1]
    M = BB * H * W

    x_flat = x_ref[...].reshape(M, Cin)                        # bf16

    # ---- conv1 (1x1) + folded BN + ReLU (interior only; no halo compute) ----
    y1 = jnp.dot(x_flat, w1_ref[...], preferred_element_type=jnp.float32)
    y1 = jnp.maximum(y1 + b1_ref[...], 0.0)

    # Zero-padded y1 in VMEM scratch.  Zero the whole buffer every step (cheap
    # VPU store, and correct under megacore grid sharding), then write interior.
    y1_ref[...] = jnp.zeros_like(y1_ref)
    y1_ref[:, 1:1 + H, 1:1 + W, :] = y1.reshape(BB, H, W, P)

    # ---- conv2 (3x3, stride 1, pad 1) + folded BN + ReLU --------------------
    # One MXU matmul with K = 9*P: im2col built once in VMEM from 9 static
    # shifted slices of the scratch (no HBM im2col, no per-tap f32 VPU adds).
    taps = [y1_ref[:, ky:ky + H, kx:kx + W, :].reshape(M, P).astype(jnp.bfloat16)
            for ky in range(3) for kx in range(3)]
    im2col = jnp.concatenate(taps, axis=-1)                    # (M, 9P) bf16
    y2 = jnp.dot(im2col, w2_ref[...], preferred_element_type=jnp.float32)
    y2 = jnp.maximum(y2 + b2_ref[...], 0.0).astype(jnp.bfloat16)

    # ---- conv3 (1x1) + folded BN + identity residual + ReLU -----------------
    y3 = jnp.dot(y2, w3_ref[...], preferred_element_type=jnp.float32)
    y3 = jnp.maximum(y3 + b3_ref[...] + x_flat.astype(jnp.float32), 0.0)
    o_ref[...] = y3.reshape(BB, H, W, 4 * P).astype(o_ref.dtype)


# ------------------------------- glue (JAX) -------------------------------- #

def _prepare_params(params, eps=1e-5):
    """Fold eval-mode BatchNorm into the conv weights (scale) and a bias.

    Weights cast to bf16 once (MXU-native, half the DMA bytes); biases stay f32.
    conv2 weight is reshaped to (9P, P) tap-major to match the in-kernel im2col.
    """
    def fold(w, bn):
        gamma, beta, mean, var = bn
        scale = gamma / jnp.sqrt(var + eps)
        bias = (beta - mean * scale).reshape(1, -1).astype(jnp.float32)
        return (w * scale).astype(jnp.bfloat16), bias

    w1, b1 = fold(params["w1"], params["bn1"])          # (Cin, P)
    w2, b2 = fold(params["w2"], params["bn2"])          # (9, P, P), tap = ky*3+kx
    w3, b3 = fold(params["w3"], params["bn3"])          # (P, 4P)
    P = w1.shape[1]
    w2 = w2.reshape(9 * P, P)                           # tap-major rows
    return {"w1": w1, "b1": b1, "w2": w2, "b2": b2, "w3": w3, "b3": b3}


def bottleneck_forward_nhwc(x_nhwc, params, *, batch_block=2):
    """Fused Pallas Bottleneck forward, NHWC in / NHWC out (bf16 out).

    batch_block: batch elements per grid step.  2 (default) -> one step per
    TensorCore on v7x for N=4; use batch_block=N on single-TC v5e/v6e to fold
    the whole batch into one step.
    """
    N, H, W, Cin = x_nhwc.shape
    p = _prepare_params(params)
    P = p["w1"].shape[1]
    assert Cin == 4 * P, "identity residual requires inplanes == expansion*planes"
    # TODO(synk): stride>1 / dilation>1 / downsample submodule path not
    #             implemented (module defaults: stride=1, dilation=1, None).
    BB = min(batch_block, N)
    assert N % BB == 0, "batch must be divisible by batch_block"

    # bf16 at the HBM boundary; the matmul LHS is bf16 anyway so this adds no
    # quantization on the compute path.  No-op if the caller already passes bf16.
    x_bf16 = x_nhwc.astype(jnp.bfloat16)

    flops = 2 * N * H * W * (Cin * P + 9 * P * P + P * 4 * P)
    bytes_accessed = (2 * N * H * W * Cin                 # bf16 input
                      + 2 * N * H * W * 4 * P             # bf16 output
                      + 2 * (Cin * P + 9 * P * P + P * 4 * P)   # bf16 weights
                      + 4 * 6 * P)                        # f32 biases

    kernel = functools.partial(_bottleneck_kernel, H=H, W=W)
    return pl.pallas_call(
        kernel,
        out_shape=jax.ShapeDtypeStruct((N, H, W, 4 * P), jnp.bfloat16),
        grid=(N // BB,),
        in_specs=[
            pl.BlockSpec((BB, H, W, Cin), lambda n: (n, 0, 0, 0)),  # x (unpadded)
            pl.BlockSpec((Cin, P),        lambda n: (0, 0)),        # w1 * bn1.scale
            pl.BlockSpec((1, P),          lambda n: (0, 0)),        # bn1 bias
            pl.BlockSpec((9 * P, P),      lambda n: (0, 0)),        # w2 * bn2.scale
            pl.BlockSpec((1, P),          lambda n: (0, 0)),        # bn2 bias
            pl.BlockSpec((P, 4 * P),      lambda n: (0, 0)),        # w3 * bn3.scale
            pl.BlockSpec((1, 4 * P),      lambda n: (0, 0)),        # bn3 bias
        ],
        out_specs=pl.BlockSpec((BB, H, W, 4 * P), lambda n: (n, 0, 0, 0)),
        scratch_shapes=[pltpu.VMEM((BB, H + 2, W + 2, P), jnp.float32)],
        compiler_params=pltpu.CompilerParams(
            dimension_semantics=("parallel",)),
        cost_estimate=pl.CostEstimate(flops=flops, transcendentals=0,
                                      bytes_accessed=bytes_accessed),
    )(x_bf16, p["w1"], p["b1"], p["w2"], p["b2"], p["w3"], p["b3"])


def bottleneck_forward(x_nchw, params, **kw):
    """PyTorch-parity entry point (NCHW in / NCHW out).

    Hot path is NHWC; in a real pipeline keep activations NHWC+bf16 end-to-end
    and call bottleneck_forward_nhwc directly (these transposes double traffic).
    """
    x = jnp.transpose(x_nchw, (0, 2, 3, 1))
    out = bottleneck_forward_nhwc(x, params, **kw)
    return jnp.transpose(out, (0, 3, 1, 2))


# ------------------------------- references -------------------------------- #

def bottleneck_ref_matched(x_nhwc_bf16, params):
    """Pure-JAX reference with the kernel's exact bf16 cast points (tight check)."""
    p = _prepare_params(params)
    N, H, W, Cin = x_nhwc_bf16.shape
    P = p["w1"].shape[1]
    M = N * H * W

    x2d = x_nhwc_bf16.reshape(M, Cin)                                   # bf16
    y1 = jnp.maximum(jnp.dot(x2d, p["w1"],
                             preferred_element_type=jnp.float32) + p["b1"], 0.0)
    y1p = jnp.pad(y1.reshape(N, H, W, P), ((0, 0), (1, 1), (1, 1), (0, 0)))
    taps = [y1p[:, ky:ky + H, kx:kx + W, :].reshape(M, P).astype(jnp.bfloat16)
            for ky in range(3) for kx in range(3)]
    y2 = jnp.dot(jnp.concatenate(taps, axis=-1), p["w2"],
                 preferred_element_type=jnp.float32)
    y2 = jnp.maximum(y2 + p["b2"], 0.0).astype(jnp.bfloat16)
    y3 = (jnp.dot(y2, p["w3"], preferred_element_type=jnp.float32)
          + p["b3"] + x2d.astype(jnp.float32))
    return jnp.maximum(y3, 0.0).reshape(N, H, W, 4 * P)


def _bn_eval(x, gamma, beta, mean, var, eps=1e-5):
    return (x - mean) / jnp.sqrt(var + eps) * gamma + beta


def bottleneck_ref_f32(x_nhwc, params):
    """Full-precision reference of the original module (semantics sanity check)."""
    Cin = x_nhwc.shape[-1]
    P = params["w1"].shape[1]
    dn = ("NHWC", "HWIO", "NHWC")

    y = lax.conv_general_dilated(x_nhwc, params["w1"].reshape(1, 1, Cin, P),
                                 (1, 1), [(0, 0), (0, 0)], dimension_numbers=dn)
    y = jnp.maximum(_bn_eval(y, *params["bn1"]), 0.0)
    y = lax.conv_general_dilated(y, params["w2"].reshape(3, 3, P, P),
                                 (1, 1), [(1, 1), (1, 1)], dimension_numbers=dn)
    y = jnp.maximum(_bn_eval(y, *params["bn2"]), 0.0)
    y = lax.conv_general_dilated(y, params["w3"].reshape(1, 1, P, 4 * P),
                                 (1, 1), [(0, 0), (0, 0)], dimension_numbers=dn)
    y = _bn_eval(y, *params["bn3"])
    return jnp.maximum(y + x_nhwc, 0.0)


# ---------------------------------- main ----------------------------------- #

def _init_params(key, inplanes, planes):
    ks = jax.random.split(key, 8)
    P = planes

    def bn_params(k, c):
        k1, k2, k3, k4 = jax.random.split(k, 4)
        gamma = jax.random.uniform(k1, (c,), jnp.float32, 0.5, 1.5)
        beta = 0.1 * jax.random.normal(k2, (c,), jnp.float32)
        mean = 0.1 * jax.random.normal(k3, (c,), jnp.float32)
        var = jax.random.uniform(k4, (c,), jnp.float32, 0.5, 1.5)
        return (gamma, beta, mean, var)

    # Conv weights in matmul layout:
    #   conv1: [Cin, P]   conv2: [9, P, P] (tap = ky*3+kx, rows=Cin, cols=Cout)
    #   conv3: [P, 4P]
    w1 = 0.1 * jax.random.normal(ks[0], (inplanes, P), jnp.float32)
    w2 = 0.1 * jax.random.normal(ks[1], (9, P, P), jnp.float32)
    w3 = 0.1 * jax.random.normal(ks[2], (P, 4 * P), jnp.float32)

    return {
        "w1": w1, "bn1": bn_params(ks[3], P),
        "w2": w2, "bn2": bn_params(ks[4], P),
        "w3": w3, "bn3": bn_params(ks[5], 4 * P),
    }


if __name__ == "__main__":
    # Bottleneck(inplanes=128, planes=32): 128 -> 32 -> 32 -> 128 channels,
    # identity residual.  4*planes = 128 -> lane-dense output stores.
    N, planes, H, W = 4, 32, 16, 16
    inplanes = 4 * planes

    key = jax.random.PRNGKey(0)
    k_x, k_p = jax.random.split(key)
    # Hot path: NHWC + bf16 activations end-to-end (no NCHW transposes).
    x_nhwc = jax.random.normal(k_x, (N, H, W, inplanes),
                               jnp.float32).astype(jnp.bfloat16)
    params = _init_params(k_p, inplanes, planes)

    fwd = jax.jit(functools.partial(bottleneck_forward_nhwc, batch_block=2))
    out = jax.block_until_ready(fwd(x_nhwc, params))
    assert out.shape == (N, H, W, 4 * planes), out.shape
    assert out.dtype == jnp.bfloat16, out.dtype
    out_f32 = np.asarray(out, dtype=np.float32)

    # Tight check vs a reference with identical bf16 quantization points
    # (tolerance covers only the final bf16 output rounding).
    ref_m = np.asarray(jax.block_until_ready(bottleneck_ref_matched(x_nhwc, params)))
    np.testing.assert_allclose(out_f32, ref_m, rtol=1e-2, atol=2e-2)

    # Looser check vs the full-f32 reference of the original module (bounds the
    # bf16 weight / y2 / output quantization error, validates conv/BN semantics).
    ref_f = np.asarray(jax.block_until_ready(
        bottleneck_ref_f32(x_nhwc.astype(jnp.float32), params)))
    np.testing.assert_allclose(out_f32, ref_f, rtol=5e-2, atol=2e-1)

    print("KERNEL_OK")
</pallas_src>

<mosaic_0001>
module attributes {stable_mosaic.version = 11 : i64} {
  func.func @_bottleneck_kernel(%arg0: i32, %arg1: memref<2x16x16x128xbf16, #tpu.memory_space<vmem>>, %arg2: memref<128x32xbf16, #tpu.memory_space<vmem>>, %arg3: memref<1x32xf32, #tpu.memory_space<vmem>>, %arg4: memref<288x32xbf16, #tpu.memory_space<vmem>>, %arg5: memref<1x32xf32, #tpu.memory_space<vmem>>, %arg6: memref<32x128xbf16, #tpu.memory_space<vmem>>, %arg7: memref<1x128xf32, #tpu.memory_space<vmem>>, %arg8: memref<2x16x16x128xbf16, #tpu.memory_space<vmem>>, %arg9: memref<2x18x18x32xf32, #tpu.memory_space<vmem>>) attributes {dimension_semantics = [#tpu.dimension_semantics<parallel>], iteration_bounds = array<i64: 2>, scalar_prefetch = 0 : i64, scratch_operands = 1 : i64, tpu.core_type = #tpu.core_type<tc>, window_params = [{transform_indices = @transform_0, window_bounds = array<i64: 2, 16, 16, 128>}, {pipeline_mode = #tpu.pipeline_mode<synchronous>, transform_indices = @transform_1, window_bounds = array<i64: 128, 32>}, {pipeline_mode = #tpu.pipeline_mode<synchronous>, transform_indices = @transform_2, window_bounds = array<i64: 1, 32>}, {pipeline_mode = #tpu.pipeline_mode<synchronous>, transform_indices = @transform_3, window_bounds = array<i64: 288, 32>}, {pipeline_mode = #tpu.pipeline_mode<synchronous>, transform_indices = @transform_4, window_bounds = array<i64: 1, 32>}, {pipeline_mode = #tpu.pipeline_mode<synchronous>, transform_indices = @transform_5, window_bounds = array<i64: 32, 128>}, {pipeline_mode = #tpu.pipeline_mode<synchronous>, transform_indices = @transform_6, window_bounds = array<i64: 1, 128>}, {transform_indices = @transform_7, window_bounds = array<i64: 2, 16, 16, 128>}]} {
    %c0 = arith.constant 0 : index
    %c0_0 = arith.constant 0 : index
    %c0_1 = arith.constant 0 : index
    %c0_2 = arith.constant 0 : index
    %0 = vector.load %arg1[%c0, %c0_0, %c0_1, %c0_2] : memref<2x16x16x128xbf16, #tpu.memory_space<vmem>>, vector<2x16x16x128xbf16>
    %1 = vector.shape_cast %0 : vector<2x16x16x128xbf16> to vector<512x128xbf16>
    %c0_3 = arith.constant 0 : index
    %c0_4 = arith.constant 0 : index
    %2 = vector.load %arg2[%c0_3, %c0_4] : memref<128x32xbf16, #tpu.memory_space<vmem>>, vector<128x32xbf16>
    %cst = arith.constant dense<0.000000e+00> : vector<512x32xf32>
    %3 = tpu.matmul %1, %2, %cst {dimension_numbers = #tpu.dot_dimension_numbers<[1], [0], [0], [1], [0, 0, 1, 1], [], []>} : vector<512x128xbf16>, vector<128x32xbf16>, vector<512x32xf32> -> vector<512x32xf32>
    %c0_5 = arith.constant 0 : index
    %c0_6 = arith.constant 0 : index
    %4 = vector.load %arg3[%c0_5, %c0_6] : memref<1x32xf32, #tpu.memory_space<vmem>>, vector<1x32xf32>
    %5 = vector.broadcast %4 : vector<1x32xf32> to vector<512x32xf32>
    %6 = arith.addf %3, %5 : vector<512x32xf32>
    %cst_7 = arith.constant 0.000000e+00 : f32
    %7 = vector.broadcast %cst_7 : f32 to vector<512x32xf32>
    %8 = arith.maximumf %6, %7 : vector<512x32xf32>
    %cst_8 = arith.constant 0.000000e+00 : f32
    %9 = vector.broadcast %cst_8 : f32 to vector<2x18x18x32xf32>
    %c0_9 = arith.constant 0 : index
    %c0_10 = arith.constant 0 : index
    %c0_11 = arith.constant 0 : index
    %c0_12 = arith.constant 0 : index
    %10 = vector.load %arg9[%c0_9, %c0_10, %c0_11, %c0_12] : memref<2x18x18x32xf32, #tpu.memory_space<vmem>>, vector<2x18x18x32xf32>
    tpu.vector_store %arg9[%c0_9, %c0_10, %c0_11, %c0_12], %9 {strides = array<i32>} : memref<2x18x18x32xf32, #tpu.memory_space<vmem>>, vector<2x18x18x32xf32>,
    %11 = vector.shape_cast %8 : vector<512x32xf32> to vector<2x16x16x32xf32>
    %c0_13 = arith.constant 0 : index
    %c1 = arith.constant 1 : index
    %c1_14 = arith.constant 1 : index
    %c0_15 = arith.constant 0 : index
    %12 = vector.load %arg9[%c0_13, %c1, %c1_14, %c0_15] : memref<2x18x18x32xf32, #tpu.memory_space<vmem>>, vector<2x16x16x32xf32>
    tpu.vector_store %arg9[%c0_13, %c1, %c1_14, %c0_15], %11 {strides = array<i32>} : memref<2x18x18x32xf32, #tpu.memory_space<vmem>>, vector<2x16x16x32xf32>,
    %c0_16 = arith.constant 0 : index
    %c0_17 = arith.constant 0 : index
    %c0_18 = arith.constant 0 : index
    %c0_19 = arith.constant 0 : index
    %13 = vector.load %arg9[%c0_16, %c0_17, %c0_18, %c0_19] : memref<2x18x18x32xf32, #tpu.memory_space<vmem>>, vector<2x16x16x32xf32>
    %14 = vector.shape_cast %13 : vector<2x16x16x32xf32> to vector<512x32xf32>
    %15 = arith.truncf %14 : vector<512x32xf32> to vector<512x32xbf16>
    %c0_20 = arith.constant 0 : index
    %c0_21 = arith.constant 0 : index
    %c1_22 = arith.constant 1 : index
    %c0_23 = arith.constant 0 : index
    %16 = vector.load %arg9[%c0_20, %c0_21, %c1_22, %c0_23] : memref<2x18x18x32xf32, #tpu.memory_space<vmem>>, vector<2x16x16x32xf32>
    %17 = vector.shape_cast %16 : vector<2x16x16x32xf32> to vector<512x32xf32>
    %18 = arith.truncf %17 : vector<512x32xf32> to vector<512x32xbf16>
    %c0_24 = arith.constant 0 : index
    %c0_25 = arith.constant 0 : index
    %c2 = arith.constant 2 : index
    %c0_26 = arith.constant 0 : index
    %19 = vector.load %arg9[%c0_24, %c0_25, %c2, %c0_26] : memref<2x18x18x32xf32, #tpu.memory_space<vmem>>, vector<2x16x16x32xf32>
    %20 = vector.shape_cast %19 : vector<2x16x16x32xf32> to vector<512x32xf32>
    %21 = arith.truncf %20 : vector<512x32xf32> to vector<512x32xbf16>
    %c0_27 = arith.constant 0 : index
    %c1_28 = arith.constant 1 : index
    %c0_29 = arith.constant 0 : index
    %c0_30 = arith.constant 0 : index
    %22 = vector.load %arg9[%c0_27, %c1_28, %c0_29, %c0_30] : memref<2x18x18x32xf32, #tpu.memory_space<vmem>>, vector<2x16x16x32xf32>
    %23 = vector.shape_cast %22 : vector<2x16x16x32xf32> to vector<512x32xf32>
    %24 = arith.truncf %23 : vector<512x32xf32> to vector<512x32xbf16>
    %c0_31 = arith.constant 0 : index
    %c1_32 = arith.constant 1 : index
    %c1_33 = arith.constant 1 : index
    %c0_34 = arith.constant 0 : index
    %25 = vector.load %arg9[%c0_31, %c1_32, %c1_33, %c0_34] : memref<2x18x18x32xf32, #tpu.memory_space<vmem>>, vector<2x16x16x32xf32>
    %26 = vector.shape_cast %25 : vector<2x16x16x32xf32> to vector<512x32xf32>
    %27 = arith.truncf %26 : vector<512x32xf32> to vector<512x32xbf16>
    %c0_35 = arith.constant 0 : index
    %c1_36 = arith.constant 1 : index
    %c2_37 = arith.constant 2 : index
    %c0_38 = arith.constant 0 : index
    %28 = vector.load %arg9[%c0_35, %c1_36, %c2_37, %c0_38] : memref<2x18x18x32xf32, #tpu.memory_space<vmem>>, vector<2x16x16x32xf32>
    %29 = vector.shape_cast %28 : vector<2x16x16x32xf32> to vector<512x32xf32>
    %30 = arith.truncf %29 : vector<512x32xf32> to vector<512x32xbf16>
    %c0_39 = arith.constant 0 : index
    %c2_40 = arith.constant 2 : index
    %c0_41 = arith.constant 0 : index
    %c0_42 = arith.constant 0 : index
    %31 = vector.load %arg9[%c0_39, %c2_40, %c0_41, %c0_42] : memref<2x18x18x32xf32, #tpu.memory_space<vmem>>, vector<2x16x16x32xf32>
    %32 = vector.shape_cast %31 : vector<2x16x16x32xf32> to vector<512x32xf32>
    %33 = arith.truncf %32 : vector<512x32xf32> to vector<512x32xbf16>
    %c0_43 = arith.constant 0 : index
    %c2_44 = arith.constant 2 : index
    %c1_45 = arith.constant 1 : index
    %c0_46 = arith.constant 0 : index
    %34 = vector.load %arg9[%c0_43, %c2_44, %c1_45, %c0_46] : memref<2x18x18x32xf32, #tpu.memory_space<vmem>>, vector<2x16x16x32xf32>
    %35 = vector.shape_cast %34 : vector<2x16x16x32xf32> to vector<512x32xf32>
    %36 = arith.truncf %35 : vector<512x32xf32> to vector<512x32xbf16>
    %c0_47 = arith.constant 0 : index
    %c2_48 = arith.constant 2 : index
    %c2_49 = arith.constant 2 : index
    %c0_50 = arith.constant 0 : index
    %37 = vector.load %arg9[%c0_47, %c2_48, %c2_49, %c0_50] : memref<2x18x18x32xf32, #tpu.memory_space<vmem>>, vector<2x16x16x32xf32>
    %38 = vector.shape_cast %37 : vector<2x16x16x32xf32> to vector<512x32xf32>
    %39 = arith.truncf %38 : vector<512x32xf32> to vector<512x32xbf16>
    %40 = tpu.concatenate %15, %18, %21, %24, %27, %30, %33, %36, %39 in 1 : vector<512x32xbf16>, vector<512x32xbf16>, vector<512x32xbf16>, vector<512x32xbf16>, vector<512x32xbf16>, vector<512x32xbf16>, vector<512x32xbf16>, vector<512x32xbf16>, vector<512x32xbf16> -> vector<512x288xbf16>
    %c0_51 = arith.constant 0 : index
    %c0_52 = arith.constant 0 : index
    %41 = vector.load %arg4[%c0_51, %c0_52] : memref<288x32xbf16, #tpu.memory_space<vmem>>, vector<288x32xbf16>
    %cst_53 = arith.constant dense<0.000000e+00> : vector<512x32xf32>
    %42 = tpu.matmul %40, %41, %cst_53 {dimension_numbers = #tpu.dot_dimension_numbers<[1], [0], [0], [1], [0, 0, 1, 1], [], []>} : vector<512x288xbf16>, vector<288x32xbf16>, vector<512x32xf32> -> vector<512x32xf32>
    %c0_54 = arith.constant 0 : index
    %c0_55 = arith.constant 0 : index
    %43 = vector.load %arg5[%c0_54, %c0_55] : memref<1x32xf32, #tpu.memory_space<vmem>>, vector<1x32xf32>
    %44 = vector.broadcast %43 : vector<1x32xf32> to vector<512x32xf32>
    %45 = arith.addf %42, %44 : vector<512x32xf32>
    %cst_56 = arith.constant 0.000000e+00 : f32
    %46 = vector.broadcast %cst_56 : f32 to vector<512x32xf32>
    %47 = arith.maximumf %45, %46 : vector<512x32xf32>
    %48 = arith.truncf %47 : vector<512x32xf32> to vector<512x32xbf16>
    %c0_57 = arith.constant 0 : index
    %c0_58 = arith.constant 0 : index
    %49 = vector.load %arg6[%c0_57, %c0_58] : memref<32x128xbf16, #tpu.memory_space<vmem>>, vector<32x128xbf16>
    %cst_59 = arith.constant dense<0.000000e+00> : vector<512x128xf32>
    %50 = tpu.matmul %48, %49, %cst_59 {dimension_numbers = #tpu.dot_dimension_numbers<[1], [0], [0], [1], [0, 0, 1, 1], [], []>} : vector<512x32xbf16>, vector<32x128xbf16>, vector<512x128xf32> -> vector<512x128xf32>
    %c0_60 = arith.constant 0 : index
    %c0_61 = arith.constant 0 : index
    %51 = vector.load %arg7[%c0_60, %c0_61] : memref<1x128xf32, #tpu.memory_space<vmem>>, vector<1x128xf32>
    %52 = vector.broadcast %51 : vector<1x128xf32> to vector<512x128xf32>
    %53 = arith.addf %50, %52 : vector<512x128xf32>
    %54 = arith.extf %1 : vector<512x128xbf16> to vector<512x128xf32>
    %55 = arith.addf %53, %54 : vector<512x128xf32>
    %cst_62 = arith.constant 0.000000e+00 : f32
    %56 = vector.broadcast %cst_62 : f32 to vector<512x128xf32>
    %57 = arith.maximumf %55, %56 : vector<512x128xf32>
    %58 = vector.shape_cast %57 : vector<512x128xf32> to vector<2x16x16x128xf32>
    %59 = arith.truncf %58 : vector<2x16x16x128xf32> to vector<2x16x16x128xbf16>
    %c0_63 = arith.constant 0 : index
    %c0_64 = arith.constant 0 : index
    %c0_65 = arith.constant 0 : index
    %c0_66 = arith.constant 0 : index
    %60 = vector.load %arg8[%c0_63, %c0_64, %c0_65, %c0_66] : memref<2x16x16x128xbf16, #tpu.memory_space<vmem>>, vector<2x16x16x128xbf16>
    tpu.vector_store %arg8[%c0_63, %c0_64, %c0_65, %c0_66], %59 {strides = array<i32>} : memref<2x16x16x128xbf16, #tpu.memory_space<vmem>>, vector<2x16x16x128xbf16>,
    return
  }
  func.func @transform_0(%arg0: i32) -> (i32, i32, i32, i32) {
    %c0_i32 = arith.constant 0 : i32
    %c0_i32_0 = arith.constant 0 : i32
    %c0_i32_1 = arith.constant 0 : i32
    %c0_i32_2 = arith.constant 0 : i32
    return %arg0, %c0_i32, %c0_i32_0, %c0_i32_1 : i32, i32, i32, i32
  }
  func.func @transform_1(%arg0: i32) -> (i32, i32) {
    %c0_i32 = arith.constant 0 : i32
    %c0_i32_0 = arith.constant 0 : i32
    %c0_i32_1 = arith.constant 0 : i32
    return %c0_i32, %c0_i32_0 : i32, i32
  }
  func.func @transform_2(%arg0: i32) -> (i32, i32) {
    %c0_i32 = arith.constant 0 : i32
    %c0_i32_0 = arith.constant 0 : i32
    %c0_i32_1 = arith.constant 0 : i32
    return %c0_i32, %c0_i32_0 : i32, i32
  }
  func.func @transform_3(%arg0: i32) -> (i32, i32) {
    %c0_i32 = arith.constant 0 : i32
    %c0_i32_0 = arith.constant 0 : i32
    %c0_i32_1 = arith.constant 0 : i32
    return %c0_i32, %c0_i32_0 : i32, i32
  }
  func.func @transform_4(%arg0: i32) -> (i32, i32) {
    %c0_i32 = arith.constant 0 : i32
    %c0_i32_0 = arith.constant 0 : i32
    %c0_i32_1 = arith.constant 0 : i32
    return %c0_i32, %c0_i32_0 : i32, i32
  }
  func.func @transform_5(%arg0: i32) -> (i32, i32) {
    %c0_i32 = arith.constant 0 : i32
    %c0_i32_0 = arith.constant 0 : i32
    %c0_i32_1 = arith.constant 0 : i32
    return %c0_i32, %c0_i32_0 : i32, i32
  }
  func.func @transform_6(%arg0: i32) -> (i32, i32) {
    %c0_i32 = arith.constant 0 : i32
    %c0_i32_0 = arith.constant 0 : i32
    %c0_i32_1 = arith.constant 0 : i32
    return %c0_i32, %c0_i32_0 : i32, i32
  }
  func.func @transform_7(%arg0: i32) -> (i32, i32, i32, i32) {
    %c0_i32 = arith.constant 0 : i32
    %c0_i32_0 = arith.constant 0 : i32
    %c0_i32_1 = arith.constant 0 : i32
    %c0_i32_2 = arith.constant 0 : i32
    return %arg0, %c0_i32, %c0_i32_0, %c0_i32_1 : i32, i32, i32, i32
  }
}

</mosaic_0001>

<llo_original>
// kernel: bottleneck_forward_nhwc.1
$region0: #{bottleneck_forward_nhwc.1}
  #allocation0 [shape = 'u32[]', space=smem, size = 0x4, offset = 0x4, fixed_abs, tag = 'smem constant byte address 0x4 - core index']
  #allocation1 [shape = 'u32[72,128]{1,0:T(1,128)}', space=vmem, size = 0x9000, scoped, tag = 'internal scratch']
  #allocation2 [shape = 'f32[2,18,18,32]{3,2,1,0:T(8,128)}', space=vmem, size = 0x6c000, scoped, tag = 'scratch operand']
  %s0 = inlined_call_operand.vmem [shape: bf16[4,16,16,128], index: 0, kind: input, shape index: {}]
  %s1 = inlined_call_operand.vmem [shape: bf16[128,32], index: 1, kind: input, shape index: {}]
  %s2 = inlined_call_operand.vmem [shape: f32[1,32], index: 2, kind: input, shape index: {}]
  %s3 = inlined_call_operand.vmem [shape: bf16[288,32], index: 3, kind: input, shape index: {}]
  %s4 = inlined_call_operand.vmem [shape: f32[1,32], index: 4, kind: input, shape index: {}]
  %s5 = inlined_call_operand.vmem [shape: bf16[32,128], index: 5, kind: input, shape index: {}]
  %s6 = inlined_call_operand.vmem [shape: f32[1,128], index: 6, kind: input, shape index: {}]
  %s7 = inlined_call_operand.hbm [shape: bf16[4,16,16,128], index: 7, kind: output, shape index: {}]
  %s8 = sld [smem:[#allocation0]]
  $region61: #{bottleneck_forward_nhwc.1} parent=0
    _
  %s10 = ssub.s32 1, %s8
  %s11 = scalar_select 0, %s10, %s8
  $region1: #{bottleneck_forward_nhwc.1} parent=0
    #allocation3 [shape = 'u8[262144]{0}', space=vmem, size = 0x40000, scoped, tag = 'output window, operand 0']
    #allocation4 [shape = 's32[2]{0}', space=sflag, size = 0x8, scoped, tag = 'scoped memory for bottleneck_forward_nhwc.1']
    %12 = vsyncpa [#allocation4], 0
    %s13 = scalar_lea.sflag [#allocation4], 1
    %14 = vsyncpa %s13, 0
    loop: start=0, step=1, limit=4
    $region2: #{bottleneck_forward_nhwc.1} parent=1 // loop_pre_header
      _
    $region3: #{bottleneck_forward_nhwc.1} parent=1 // loop_header
      %s16 = sphi 0, %s20
      %p17 = scmp.ge.s32.totalorder %s16, 4
      %s26 = sphi 0, %s28
      %s29 = sphi 0, %s26
      %s30 = sphi 0, %s29
      %s46 = sphi 0, %s30
      %s50 = sphi 0, %s50
      %s52 = sphi 0, %s50
      %s53 = sphi 0, %s52
      %s67 = sphi 0, %s53
      %s71 = sphi 0, %s71
      %s73 = sphi 0, %s71
      %s74 = sphi 0, %s73
      %s88 = sphi 0, %s74
      %s92 = sphi 0, %s92
      %s94 = sphi 0, %s92
      %s95 = sphi 0, %s94
      %s109 = sphi 0, %s95
      %s113 = sphi 0, %s113
      %s115 = sphi 0, %s113
      %s116 = sphi 0, %s115
      %s130 = sphi 0, %s116
      %s134 = sphi 0, %s134
      %s136 = sphi 0, %s134
      %s137 = sphi 0, %s136
      %s151 = sphi 0, %s137
      %s155 = sphi 0, %s155
      %s157 = sphi 0, %s155
      %s158 = sphi 0, %s157
      %s172 = sphi 0, %s158
      %s178 = sphi 0, %s180
      %s181 = sphi 0, %s178
      %s182 = sphi 0, %s181
      %s198 = sphi 0, %s182
    $region4: #{bottleneck_forward_nhwc.1} parent=1 // loop_header_branch
      %19 = sbr.rel (%p17) target = $region8
    $region5: #{bottleneck_forward_nhwc.1} parent=1 // loop_body
      %s21 = ssub.s32 %s16, 1
      %s22 = ssub.s32 %s16, 2
      %s23 = sadd.s32 %s16, 1
      %s24 = ssub.s32 %s16, %s23
      %p25 = scmp.eq.s32.totalorder %s24, 0
      %s27 = sadd.s32 %s26, 1
      %s28 = scalar_select %p25, %s26, %s27
      %p31 = pneg %p25
      %p32 = scmp.eq.s32.totalorder %s16, 1
      %p33 = por %p31, %p32
      %p34 = scmp.ne.s32.totalorder %s26, %s29
      %p35 = scmp.eq.s32.totalorder %s16, 0
      %p36 = por %p34, %p35
      %p37 = scmp.ne.s32.totalorder %s26, %s29
      %p38 = scmp.eq.s32.totalorder %s21, 1
      %p39 = por %p37, %p38
      %p40 = scmp.ne.s32.totalorder %s29, %s30
      %p41 = scmp.eq.s32.totalorder %s21, 0
      %p42 = por %p40, %p41
      %p43 = scmp.ne.s32.totalorder %s29, %s30
      %p44 = scmp.eq.s32.totalorder %s22, 1
      %p45 = por %p43, %p44
      %p47 = scmp.ne.s32.totalorder %s30, %s46
      %p48 = scmp.eq.s32.totalorder %s22, 0
      %p49 = por %p47, %p48
      %s51 = sadd.s32 %s50, 1
      %p54 = scmp.eq.s32.totalorder %s16, 1
      %p55 = scmp.ne.s32.totalorder %s50, %s52
      %p56 = scmp.eq.s32.totalorder %s16, 0
      %p57 = por %p55, %p56
      %p58 = scmp.ne.s32.totalorder %s50, %s52
      %p59 = scmp.eq.s32.totalorder %s21, 1
      %p60 = por %p58, %p59
      %p61 = scmp.ne.s32.totalorder %s52, %s53
      %p62 = scmp.eq.s32.totalorder %s21, 0
      %p63 = por %p61, %p62
      %p64 = scmp.ne.s32.totalorder %s52, %s53
      %p65 = scmp.eq.s32.totalorder %s22, 1
      %p66 = por %p64, %p65
      %p68 = scmp.ne.s32.totalorder %s53, %s67
      %p69 = scmp.eq.s32.totalorder %s22, 0
      %p70 = por %p68, %p69
      %s72 = sadd.s32 %s71, 1
      %p75 = scmp.eq.s32.totalorder %s16, 1
      %p76 = scmp.ne.s32.totalorder %s71, %s73
      %p77 = scmp.eq.s32.totalorder %s16, 0
      %p78 = por %p76, %p77
      %p79 = scmp.ne.s32.totalorder %s71, %s73
      %p80 = scmp.eq.s32.totalorder %s21, 1
      %p81 = por %p79, %p80
      %p82 = scmp.ne.s32.totalorder %s73, %s74
      %p83 = scmp.eq.s32.totalorder %s21, 0
      %p84 = por %p82, %p83
      %p85 = scmp.ne.s32.totalorder %s73, %s74
      %p86 = scmp.eq.s32.totalorder %s22, 1
      %p87 = por %p85, %p86
      %p89 = scmp.ne.s32.totalorder %s74, %s88
      %p90 = scmp.eq.s32.totalorder %s22, 0
      %p91 = por %p89, %p90
      %s93 = sadd.s32 %s92, 1
      %p96 = scmp.eq.s32.totalorder %s16, 1
      %p97 = scmp.ne.s32.totalorder %s92, %s94
      %p98 = scmp.eq.s32.totalorder %s16, 0
      %p99 = por %p97, %p98
      %p100 = scmp.ne.s32.totalorder %s92, %s94
      %p101 = scmp.eq.s32.totalorder %s21, 1
      %p102 = por %p100, %p101
      %p103 = scmp.ne.s32.totalorder %s94, %s95
      %p104 = scmp.eq.s32.totalorder %s21, 0
      %p105 = por %p103, %p104
      %p106 = scmp.ne.s32.totalorder %s94, %s95
      %p107 = scmp.eq.s32.totalorder %s22, 1
      %p108 = por %p106, %p107
      %p110 = scmp.ne.s32.totalorder %s95, %s109
      %p111 = scmp.eq.s32.totalorder %s22, 0
      %p112 = por %p110, %p111
      %s114 = sadd.s32 %s113, 1
      %p117 = scmp.eq.s32.totalorder %s16, 1
      %p118 = scmp.ne.s32.totalorder %s113, %s115
      %p119 = scmp.eq.s32.totalorder %s16, 0
      %p120 = por %p118, %p119
      %p121 = scmp.ne.s32.totalorder %s113, %s115
      %p122 = scmp.eq.s32.totalorder %s21, 1
      %p123 = por %p121, %p122
      %p124 = scmp.ne.s32.totalorder %s115, %s116
      %p125 = scmp.eq.s32.totalorder %s21, 0
      %p126 = por %p124, %p125
      %p127 = scmp.ne.s32.totalorder %s115, %s116
      %p128 = scmp.eq.s32.totalorder %s22, 1
      %p129 = por %p127, %p128
      %p131 = scmp.ne.s32.totalorder %s116, %s130
      %p132 = scmp.eq.s32.totalorder %s22, 0
      %p133 = por %p131, %p132
      %s135 = sadd.s32 %s134, 1
      %p138 = scmp.eq.s32.totalorder %s16, 1
      %p139 = scmp.ne.s32.totalorder %s134, %s136
      %p140 = scmp.eq.s32.totalorder %s16, 0
      %p141 = por %p139, %p140
      %p142 = scmp.ne.s32.totalorder %s134, %s136
      %p143 = scmp.eq.s32.totalorder %s21, 1
      %p144 = por %p142, %p143
      %p145 = scmp.ne.s32.totalorder %s136, %s137
      %p146 = scmp.eq.s32.totalorder %s21, 0
      %p147 = por %p145, %p146
      %p148 = scmp.ne.s32.totalorder %s136, %s137
      %p149 = scmp.eq.s32.totalorder %s22, 1
      %p150 = por %p148, %p149
      %p152 = scmp.ne.s32.totalorder %s137, %s151
      %p153 = scmp.eq.s32.totalorder %s22, 0
      %p154 = por %p152, %p153
      %s156 = sadd.s32 %s155, 1
      %p159 = scmp.eq.s32.totalorder %s16, 1
      %p160 = scmp.ne.s32.totalorder %s155, %s157
      %p161 = scmp.eq.s32.totalorder %s16, 0
      %p162 = por %p160, %p161
      %p163 = scmp.ne.s32.totalorder %s155, %s157
      %p164 = scmp.eq.s32.totalorder %s21, 1
      %p165 = por %p163, %p164
      %p166 = scmp.ne.s32.totalorder %s157, %s158
      %p167 = scmp.eq.s32.totalorder %s21, 0
      %p168 = por %p166, %p167
      %p169 = scmp.ne.s32.totalorder %s157, %s158
      %p170 = scmp.eq.s32.totalorder %s22, 1
      %p171 = por %p169, %p170
      %p173 = scmp.ne.s32.totalorder %s158, %s172
      %p174 = scmp.eq.s32.totalorder %s22, 0
      %p175 = por %p173, %p174
      %s176 = ssub.s32 %s16, %s23
      %p177 = scmp.eq.s32.totalorder %s176, 0
      %s179 = sadd.s32 %s178, 1
      %s180 = scalar_select %p177, %s178, %s179
      %p183 = pneg %p177
      %p184 = scmp.eq.s32.totalorder %s16, 1
      %p185 = por %p183, %p184
      %p186 = scmp.ne.s32.totalorder %s178, %s181
      %p187 = scmp.eq.s32.totalorder %s16, 0
      %p188 = por %p186, %p187
      %p189 = scmp.ne.s32.totalorder %s178, %s181
      %p190 = scmp.eq.s32.totalorder %s21, 1
      %p191 = por %p189, %p190
      %p192 = scmp.ne.s32.totalorder %s181, %s182
      %p193 = scmp.eq.s32.totalorder %s21, 0
      %p194 = por %p192, %p193
      %p195 = scmp.ne.s32.totalorder %s181, %s182
      %p196 = scmp.eq.s32.totalorder %s22, 1
      %p197 = por %p195, %p196
      %p199 = scmp.ne.s32.totalorder %s182, %s198
      %p200 = scmp.eq.s32.totalorder %s22, 0
      %p201 = por %p199, %p200
      %p202 = scmp.le.s32.totalorder 1, %s16
      %p203 = scmp.lt.s32.totalorder %s16, 3
      %p204 = pnand %p202, %p203
      %p205 = pneg %p204
      // Predicated region
      $region9: #{bottleneck_forward_nhwc.1} parent=5 // pred_check
        _
      $region10: #{bottleneck_forward_nhwc.1} parent=5 // pred_check_branch
        %207 = sbr.rel (%p204) target = $region12
      $region11: #{bottleneck_forward_nhwc.1} parent=5 // pred_region
        %s208 = ssub.s32 %s16, 1
        // Predicated region
        $region13: #{bottleneck_forward_nhwc.1} parent=11 // pred_check
          %p209 = pneg %p63
        $region14: #{bottleneck_forward_nhwc.1} parent=11 // pred_check_branch
          %211 = sbr.rel (%p209) target = $region16
        $region15: #{bottleneck_forward_nhwc.1} parent=11 // pred_region
          _
        $region16: #{bottleneck_forward_nhwc.1} parent=11 // pred_fallthru
          _
        // Predicated region
        $region17: #{bottleneck_forward_nhwc.1} parent=11 // pred_check
          %p212 = pneg %p84
        $region18: #{bottleneck_forward_nhwc.1} parent=11 // pred_check_branch
          %214 = sbr.rel (%p212) target = $region20
        $region19: #{bottleneck_forward_nhwc.1} parent=11 // pred_region
          _
        $region20: #{bottleneck_forward_nhwc.1} parent=11 // pred_fallthru
          _
        // Predicated region
        $region21: #{bottleneck_forward_nhwc.1} parent=11 // pred_check
          %p215 = pneg %p105
        $region22: #{bottleneck_forward_nhwc.1} parent=11 // pred_check_branch
          %217 = sbr.rel (%p215) target = $region24
        $region23: #{bottleneck_forward_nhwc.1} parent=11 // pred_region
          _
        $region24: #{bottleneck_forward_nhwc.1} parent=11 // pred_fallthru
          _
        // Predicated region
        $region25: #{bottleneck_forward_nhwc.1} parent=11 // pred_check
          %p218 = pneg %p126
        $region26: #{bottleneck_forward_nhwc.1} parent=11 // pred_check_branch
          %220 = sbr.rel (%p218) target = $region28
        $region27: #{bottleneck_forward_nhwc.1} parent=11 // pred_region
          _
        $region28: #{bottleneck_forward_nhwc.1} parent=11 // pred_fallthru
          _
        // Predicated region
        $region29: #{bottleneck_forward_nhwc.1} parent=11 // pred_check
          %p221 = pneg %p147
        $region30: #{bottleneck_forward_nhwc.1} parent=11 // pred_check_branch
          %223 = sbr.rel (%p221) target = $region32
        $region31: #{bottleneck_forward_nhwc.1} parent=11 // pred_region
          _
        $region32: #{bottleneck_forward_nhwc.1} parent=11 // pred_fallthru
          _
        // Predicated region
        $region33: #{bottleneck_forward_nhwc.1} parent=11 // pred_check
          %p224 = pneg %p168
        $region34: #{bottleneck_forward_nhwc.1} parent=11 // pred_check_branch
          %226 = sbr.rel (%p224) target = $region36
        $region35: #{bottleneck_forward_nhwc.1} parent=11 // pred_region
          _
        $region36: #{bottleneck_forward_nhwc.1} parent=11 // pred_fallthru
          _
      $region12: #{bottleneck_forward_nhwc.1} parent=5 // pred_fallthru
        _
      %p227 = scmp.lt.s32.totalorder %s16, 2
      // Predicated region
      $region37: #{bottleneck_forward_nhwc.1} parent=5 // pred_check
        %p228 = pneg %p227
      $region38: #{bottleneck_forward_nhwc.1} parent=5 // pred_check_branch
        %230 = sbr.rel (%p228) target = $region40
      $region39: #{bottleneck_forward_nhwc.1} parent=5 // pred_region
        // Predicated region
        $region41: #{bottleneck_forward_nhwc.1} parent=39 // pred_check
          %p231 = pneg %p36
        $region42: #{bottleneck_forward_nhwc.1} parent=39 // pred_check_branch
          %233 = sbr.rel (%p231) target = $region44
        $region43: #{bottleneck_forward_nhwc.1} parent=39 // pred_region
          %s234 = smul.u32 2, %s16
          %p235 = scmp.lt.s32.totalorder %s234, 3
          %s236 = scalar_select %p235, %s234, 3
          %s237 = smul.addr %s236, 32
          %s238 = smul.addr %s237, 4
          %s239 = scalar_lea.vmem %s0, %s238
          %s240 = smul.u32 2, %s16
        $region44: #{bottleneck_forward_nhwc.1} parent=39 // pred_fallthru
          _
      $region40: #{bottleneck_forward_nhwc.1} parent=5 // pred_fallthru
        _
      %p241 = scmp.le.s32.totalorder 1, %s16
      %p242 = scmp.lt.s32.totalorder %s16, 3
      %p243 = pnand %p241, %p242
      %p244 = pneg %p243
      // Predicated region
      $region45: #{bottleneck_forward_nhwc.1} parent=5 // pred_check
        _
      $region46: #{bottleneck_forward_nhwc.1} parent=5 // pred_check_branch
        %246 = sbr.rel (%p243) target = $region48
      $region47: #{bottleneck_forward_nhwc.1} parent=5 // pred_region
        %s247 = ssub.s32 %s16, 1
        %s248 = smul.u32 2, %s21
        %p249 = scmp.lt.s32.totalorder %s248, 3
        %s250 = scalar_select %p249, %s248, 3
        %s251 = smul.addr %s250, 32
        %s252 = smul.addr %s251, 4
        %s253 = scalar_lea.vmem %s0, %s252
        %p254 = pneg %p42
        %p255 = pneg %p39
        %p256 = pneg %p63
        %p257 = pneg %p60
        %p258 = pneg %p84
        %p259 = pneg %p81
        %p260 = pneg %p105
        %p261 = pneg %p102
        %p262 = pneg %p126
        %p263 = pneg %p123
        %p264 = pneg %p147
        %p265 = pneg %p144
        %p266 = pneg %p168
        %p267 = pneg %p165
        %p268 = pneg %p194
        %p269 = pneg %p191
        %s270 = sand.u32 %s181, 1
        %s271 = scalar_lea.sflag [#allocation4], %s270
        %s272 = sand.u32 %s181, 1
        %s273 = smul.addr %s272, 256
        %s274 = scalar_lea.vmem [#allocation3], %s273
        %s275 = smul.u32 2, %s21
        %p276 = scmp.lt.s32.totalorder %s275, 3
        %s277 = scalar_select %p276, %s275, 3
        %s278 = smul.addr %s277, 32
        %s279 = smul.addr %s278, 4
        %s280 = scalar_lea.vmem %s0, %s279
        %s281 = smul.u32 2, %s21
        %s282 = smul.u32 2, %s21
        %v284 = vld [vmem:[%s280] sm:$0xf]
        %v285 = vld [vmem:[%s280 + $0x4] sm:$0xf]
        %v286 = vld [vmem:[%s280 + $0x8] sm:$0xf]
        %v287 = vld [vmem:[%s280 + $0xc] sm:$0xf]
        %v288 = vld [vmem:[%s280 + $0x10] sm:$0xf]
        %v289 = vld [vmem:[%s280 + $0x14] sm:$0xf]
        %v290 = vld [vmem:[%s280 + $0x18] sm:$0xf]
        %v291 = vld [vmem:[%s280 + $0x1c] sm:$0xf]
        %v292 = vld [vmem:[%s280 + $0x20] sm:$0xf]
        %v293 = vld [vmem:[%s280 + $0x24] sm:$0xf]
        %v294 = vld [vmem:[%s280 + $0x28] sm:$0xf]
        %v295 = vld [vmem:[%s280 + $0x2c] sm:$0xf]
        %v296 = vld [vmem:[%s280 + $0x30] sm:$0xf]
        %v297 = vld [vmem:[%s280 + $0x34] sm:$0xf]
        %v298 = vld [vmem:[%s280 + $0x38] sm:$0xf]
        %v299 = vld [vmem:[%s280 + $0x3c] sm:$0xf]
        %v300 = vld [vmem:[%s280 + $0x40] sm:$0xf]
        %v301 = vld [vmem:[%s280 + $0x44] sm:$0xf]
        %v302 = vld [vmem:[%s280 + $0x48] sm:$0xf]
        %v303 = vld [vmem:[%s280 + $0x4c] sm:$0xf]
        %v304 = vld [vmem:[%s280 + $0x50] sm:$0xf]
        %v305 = vld [vmem:[%s280 + $0x54] sm:$0xf]
        %v306 = vld [vmem:[%s280 + $0x58] sm:$0xf]
        %v307 = vld [vmem:[%s280 + $0x5c] sm:$0xf]
        %v308 = vld [vmem:[%s280 + $0x60] sm:$0xf]
        %v309 = vld [vmem:[%s280 + $0x64] sm:$0xf]
        %v310 = vld [vmem:[%s280 + $0x68] sm:$0xf]
        %v311 = vld [vmem:[%s280 + $0x6c] sm:$0xf]
        %v312 = vld [vmem:[%s280 + $0x70] sm:$0xf]
        %v313 = vld [vmem:[%s280 + $0x74] sm:$0xf]
        %v314 = vld [vmem:[%s280 + $0x78] sm:$0xf]
        %v315 = vld [vmem:[%s280 + $0x7c] sm:$0xf]
        %v316 = vld [vmem:[%s280 + $0x80] sm:$0xf]
        %v317 = vld [vmem:[%s280 + $0x84] sm:$0xf]
        %v318 = vld [vmem:[%s280 + $0x88] sm:$0xf]
        %v319 = vld [vmem:[%s280 + $0x8c] sm:$0xf]
        %v320 = vld [vmem:[%s280 + $0x90] sm:$0xf]
        %v321 = vld [vmem:[%s280 + $0x94] sm:$0xf]
        %v322 = vld [vmem:[%s280 + $0x98] sm:$0xf]
        %v323 = vld [vmem:[%s280 + $0x9c] sm:$0xf]
        %v324 = vld [vmem:[%s280 + $0xa0] sm:$0xf]
        %v325 = vld [vmem:[%s280 + $0xa4] sm:$0xf]
        %v326 = vld [vmem:[%s280 + $0xa8] sm:$0xf]
        %v327 = vld [vmem:[%s280 + $0xac] sm:$0xf]
        %v328 = vld [vmem:[%s280 + $0xb0] sm:$0xf]
        %v329 = vld [vmem:[%s280 + $0xb4] sm:$0xf]
        %v330 = vld [vmem:[%s280 + $0xb8] sm:$0xf]
        %v331 = vld [vmem:[%s280 + $0xbc] sm:$0xf]
        %v332 = vld [vmem:[%s280 + $0xc0] sm:$0xf]
        %v333 = vld [vmem:[%s280 + $0xc4] sm:$0xf]
        %v334 = vld [vmem:[%s280 + $0xc8] sm:$0xf]
        %v335 = vld [vmem:[%s280 + $0xcc] sm:$0xf]
        %v336 = vld [vmem:[%s280 + $0xd0] sm:$0xf]
        %v337 = vld [vmem:[%s280 + $0xd4] sm:$0xf]
        %v338 = vld [vmem:[%s280 + $0xd8] sm:$0xf]
        %v339 = vld [vmem:[%s280 + $0xdc] sm:$0xf]
        %v340 = vld [vmem:[%s280 + $0xe0] sm:$0xf]
        %v341 = vld [vmem:[%s280 + $0xe4] sm:$0xf]
        %v342 = vld [vmem:[%s280 + $0xe8] sm:$0xf]
        %v343 = vld [vmem:[%s280 + $0xec] sm:$0xf]
        %v344 = vld [vmem:[%s280 + $0xf0] sm:$0xf]
        %v345 = vld [vmem:[%s280 + $0xf4] sm:$0xf]
        %v346 = vld [vmem:[%s280 + $0xf8] sm:$0xf]
        %v347 = vld [vmem:[%s280 + $0xfc] sm:$0xf]
        %v348 = vld [vmem:[%s1] sm:$0xf]
        %v349 = vld [vmem:[%s1 + $0x4] sm:$0xf]
        %v350 = vld [vmem:[%s1 + $0x8] sm:$0xf]
        %v351 = vld [vmem:[%s1 + $0xc] sm:$0xf]
        %v352 = vld [vmem:[%s1 + $0x10] sm:$0xf]
        %v353 = vld [vmem:[%s1 + $0x14] sm:$0xf]
        %v354 = vld [vmem:[%s1 + $0x18] sm:$0xf]
        %v355 = vld [vmem:[%s1 + $0x1c] sm:$0xf]
        %v356 = vld [vmem:[%s1 + $0x20] sm:$0xf]
        %v357 = vld [vmem:[%s1 + $0x24] sm:$0xf]
        %v358 = vld [vmem:[%s1 + $0x28] sm:$0xf]
        %v359 = vld [vmem:[%s1 + $0x2c] sm:$0xf]
        %v360 = vld [vmem:[%s1 + $0x30] sm:$0xf]
        %v361 = vld [vmem:[%s1 + $0x34] sm:$0xf]
        %v362 = vld [vmem:[%s1 + $0x38] sm:$0xf]
        %v363 = vld [vmem:[%s1 + $0x3c] sm:$0xf]
        %v364 = vld [vmem:[%s2] sm:$0x1]
        %v366 = vperm.slane %v364, 0
        %v432 = vunpack.c.l.b16 %v284
        %v433 = vunpack.c.l.b16 %v285
        %v434 = vunpack.c.l.b16 %v286
        %v435 = vunpack.c.l.b16 %v287
        %v436 = vunpack.c.l.b16 %v288
        %v437 = vunpack.c.l.b16 %v289
        %v438 = vunpack.c.l.b16 %v290
        %v439 = vunpack.c.l.b16 %v291
        %v440 = vunpack.c.l.b16 %v292
        %v441 = vunpack.c.l.b16 %v293
        %v442 = vunpack.c.l.b16 %v294
        %v443 = vunpack.c.l.b16 %v295
        %v444 = vunpack.c.l.b16 %v296
        %v445 = vunpack.c.l.b16 %v297
        %v446 = vunpack.c.l.b16 %v298
        %v447 = vunpack.c.l.b16 %v299
        %v448 = vunpack.c.l.b16 %v300
        %v449 = vunpack.c.l.b16 %v301
        %v450 = vunpack.c.l.b16 %v302
        %v451 = vunpack.c.l.b16 %v303
        %v452 = vunpack.c.l.b16 %v304
        %v453 = vunpack.c.l.b16 %v305
        %v454 = vunpack.c.l.b16 %v306
        %v455 = vunpack.c.l.b16 %v307
        %v456 = vunpack.c.l.b16 %v308
        %v457 = vunpack.c.l.b16 %v309
        %v458 = vunpack.c.l.b16 %v310
        %v459 = vunpack.c.l.b16 %v311
        %v460 = vunpack.c.l.b16 %v312
        %v461 = vunpack.c.l.b16 %v313
        %v462 = vunpack.c.l.b16 %v314
        %v463 = vunpack.c.l.b16 %v315
        %v464 = vunpack.c.l.b16 %v316
        %v465 = vunpack.c.l.b16 %v317
        %v466 = vunpack.c.l.b16 %v318
        %v467 = vunpack.c.l.b16 %v319
        %v468 = vunpack.c.l.b16 %v320
        %v469 = vunpack.c.l.b16 %v321
        %v470 = vunpack.c.l.b16 %v322
        %v471 = vunpack.c.l.b16 %v323
        %v472 = vunpack.c.l.b16 %v324
        %v473 = vunpack.c.l.b16 %v325
        %v474 = vunpack.c.l.b16 %v326
        %v475 = vunpack.c.l.b16 %v327
        %v476 = vunpack.c.l.b16 %v328
        %v477 = vunpack.c.l.b16 %v329
        %v478 = vunpack.c.l.b16 %v330
        %v479 = vunpack.c.l.b16 %v331
        %v480 = vunpack.c.l.b16 %v332
        %v481 = vunpack.c.l.b16 %v333
        %v482 = vunpack.c.l.b16 %v334
        %v483 = vunpack.c.l.b16 %v335
        %v484 = vunpack.c.l.b16 %v336
        %v485 = vunpack.c.l.b16 %v337
        %v486 = vunpack.c.l.b16 %v338
        %v487 = vunpack.c.l.b16 %v339
        %v488 = vunpack.c.l.b16 %v340
        %v489 = vunpack.c.l.b16 %v341
        %v490 = vunpack.c.l.b16 %v342
        %v491 = vunpack.c.l.b16 %v343
        %v492 = vunpack.c.l.b16 %v344
        %v493 = vunpack.c.l.b16 %v345
        %v494 = vunpack.c.l.b16 %v346
        %v495 = vunpack.c.l.b16 %v347
        %v496 = vpack.c.b16 %v433, %v432
        %v497 = vpack.c.b16 %v435, %v434
        %v498 = vpack.c.b16 %v437, %v436
        %v499 = vpack.c.b16 %v439, %v438
        %v500 = vpack.c.b16 %v441, %v440
        %v501 = vpack.c.b16 %v443, %v442
        %v502 = vpack.c.b16 %v445, %v444
        %v503 = vpack.c.b16 %v447, %v446
        %v504 = vpack.c.b16 %v449, %v448
        %v505 = vpack.c.b16 %v451, %v450
        %v506 = vpack.c.b16 %v453, %v452
        %v507 = vpack.c.b16 %v455, %v454
        %v508 = vpack.c.b16 %v457, %v456
        %v509 = vpack.c.b16 %v459, %v458
        %v510 = vpack.c.b16 %v461, %v460
        %v511 = vpack.c.b16 %v463, %v462
        %v512 = vpack.c.b16 %v465, %v464
        %v513 = vpack.c.b16 %v467, %v466
        %v514 = vpack.c.b16 %v469, %v468
        %v515 = vpack.c.b16 %v471, %v470
        %v516 = vpack.c.b16 %v473, %v472
        %v517 = vpack.c.b16 %v475, %v474
        %v518 = vpack.c.b16 %v477, %v476
        %v519 = vpack.c.b16 %v479, %v478
        %v520 = vpack.c.b16 %v481, %v480
        %v521 = vpack.c.b16 %v483, %v482
        %v522 = vpack.c.b16 %v485, %v484
        %v523 = vpack.c.b16 %v487, %v486
        %v524 = vpack.c.b16 %v489, %v488
        %v525 = vpack.c.b16 %v491, %v490
        %v526 = vpack.c.b16 %v493, %v492
        %v527 = vpack.c.b16 %v495, %v494
        %v576 = vunpack.c.l.b16 %v348
        %v577 = vunpack.c.l.b16 %v349
        %v578 = vunpack.c.l.b16 %v350
        %v579 = vunpack.c.l.b16 %v351
        %v580 = vunpack.c.l.b16 %v352
        %v581 = vunpack.c.l.b16 %v353
        %v582 = vunpack.c.l.b16 %v354
        %v583 = vunpack.c.l.b16 %v355
        %v584 = vunpack.c.l.b16 %v356
        %v585 = vunpack.c.l.b16 %v357
        %v586 = vunpack.c.l.b16 %v358
        %v587 = vunpack.c.l.b16 %v359
        %v588 = vunpack.c.l.b16 %v360
        %v589 = vunpack.c.l.b16 %v361
        %v590 = vunpack.c.l.b16 %v362
        %v591 = vunpack.c.l.b16 %v363
        %v592 = vpack.c.b16 %v577, %v576
        %v593 = vpack.c.b16 %v579, %v578
        %v594 = vpack.c.b16 %v581, %v580
        %v595 = vpack.c.b16 %v583, %v582
        %v596 = vpack.c.b16 %v585, %v584
        %v597 = vpack.c.b16 %v587, %v586
        %v598 = vpack.c.b16 %v589, %v588
        %v599 = vpack.c.b16 %v591, %v590
        %608 = vmatpush.bf16.msra.mxu0 %v599
        %609 = vmatpush.bf16.msra.mxu0 %v598
        %610 = vmatpush.bf16.msra.mxu0 %v597
        %611 = vmatpush.bf16.msra.mxu0 %v596
        %612 = vmatpush.bf16.msra.mxu0 %v595
        %613 = vmatpush.bf16.msra.mxu0 %v594
        %614 = vmatpush.bf16.msra.mxu0 %v593
        %615 = vmatpush.bf16.msra.mxu0 %v592
        %616 = vmatmul.bf16.gmra.mxu0 %v496
        %v617 = vpop.f32.mrf.mxu0
        %v618 = vadd.f32 %v366, %v617
        %v619 = vpop.f32.mrf.mxu0
        %v620 = vadd.f32 %v366, %v619
        %621 = vmatmul.bf16.gmra.mxu0 %v497
        %v622 = vpop.f32.mrf.mxu0
        %v623 = vadd.f32 %v366, %v622
        %v624 = vpop.f32.mrf.mxu0
        %v625 = vadd.f32 %v366, %v624
        %626 = vmatmul.bf16.gmra.mxu0 %v498
        %v627 = vpop.f32.mrf.mxu0
        %v628 = vadd.f32 %v366, %v627
        %v629 = vpop.f32.mrf.mxu0
        %v630 = vadd.f32 %v366, %v629
        %631 = vmatmul.bf16.gmra.mxu0 %v499
        %v632 = vpop.f32.mrf.mxu0
        %v633 = vadd.f32 %v366, %v632
        %v634 = vpop.f32.mrf.mxu0
        %v635 = vadd.f32 %v366, %v634
        %636 = vmatmul.bf16.gmra.mxu0 %v500
        %v637 = vpop.f32.mrf.mxu0
        %v638 = vadd.f32 %v366, %v637
        %v639 = vpop.f32.mrf.mxu0
        %v640 = vadd.f32 %v366, %v639
        %641 = vmatmul.bf16.gmra.mxu0 %v501
        %v642 = vpop.f32.mrf.mxu0
        %v643 = vadd.f32 %v366, %v642
        %v644 = vpop.f32.mrf.mxu0
        %v645 = vadd.f32 %v366, %v644
        %646 = vmatmul.bf16.gmra.mxu0 %v502
        %v647 = vpop.f32.mrf.mxu0
        %v648 = vadd.f32 %v366, %v647
        %v649 = vpop.f32.mrf.mxu0
        %v650 = vadd.f32 %v366, %v649
        %651 = vmatmul.bf16.gmra.mxu0 %v503
        %v652 = vpop.f32.mrf.mxu0
        %v653 = vadd.f32 %v366, %v652
        %v654 = vpop.f32.mrf.mxu0
        %v655 = vadd.f32 %v366, %v654
        %656 = vmatmul.bf16.gmra.mxu0 %v504
        %v657 = vpop.f32.mrf.mxu0
        %v658 = vadd.f32 %v366, %v657
        %v659 = vpop.f32.mrf.mxu0
        %v660 = vadd.f32 %v366, %v659
        %661 = vmatmul.bf16.gmra.mxu0 %v505
        %v662 = vpop.f32.mrf.mxu0
        %v663 = vadd.f32 %v366, %v662
        %v664 = vpop.f32.mrf.mxu0
        %v665 = vadd.f32 %v366, %v664
        %666 = vmatmul.bf16.gmra.mxu0 %v506
        %v667 = vpop.f32.mrf.mxu0
        %v668 = vadd.f32 %v366, %v667
        %v669 = vpop.f32.mrf.mxu0
        %v670 = vadd.f32 %v366, %v669
        %671 = vmatmul.bf16.gmra.mxu0 %v507
        %v672 = vpop.f32.mrf.mxu0
        %v673 = vadd.f32 %v366, %v672
        %v674 = vpop.f32.mrf.mxu0
        %v675 = vadd.f32 %v366, %v674
        %676 = vmatmul.bf16.gmra.mxu0 %v508
        %v677 = vpop.f32.mrf.mxu0
        %v678 = vadd.f32 %v366, %v677
        %v679 = vpop.f32.mrf.mxu0
        %v680 = vadd.f32 %v366, %v679
        %681 = vmatmul.bf16.gmra.mxu0 %v509
        %v682 = vpop.f32.mrf.mxu0
        %v683 = vadd.f32 %v366, %v682
        %v684 = vpop.f32.mrf.mxu0
        %v685 = vadd.f32 %v366, %v684
        %686 = vmatmul.bf16.gmra.mxu0 %v510
        %v687 = vpop.f32.mrf.mxu0
        %v688 = vadd.f32 %v366, %v687
        %v689 = vpop.f32.mrf.mxu0
        %v690 = vadd.f32 %v366, %v689
        %691 = vmatmul.bf16.gmra.mxu0 %v511
        %v692 = vpop.f32.mrf.mxu0
        %v693 = vadd.f32 %v366, %v692
        %v694 = vpop.f32.mrf.mxu0
        %v695 = vadd.f32 %v366, %v694
        %696 = vmatmul.bf16.gmra.mxu0 %v512
        %v697 = vpop.f32.mrf.mxu0
        %v698 = vadd.f32 %v366, %v697
        %v699 = vpop.f32.mrf.mxu0
        %v700 = vadd.f32 %v366, %v699
        %701 = vmatmul.bf16.gmra.mxu0 %v513
        %v702 = vpop.f32.mrf.mxu0
        %v703 = vadd.f32 %v366, %v702
        %v704 = vpop.f32.mrf.mxu0
        %v705 = vadd.f32 %v366, %v704
        %706 = vmatmul.bf16.gmra.mxu0 %v514
        %v707 = vpop.f32.mrf.mxu0
        %v708 = vadd.f32 %v366, %v707
        %v709 = vpop.f32.mrf.mxu0
        %v710 = vadd.f32 %v366, %v709
        %711 = vmatmul.bf16.gmra.mxu0 %v515
        %v712 = vpop.f32.mrf.mxu0
        %v713 = vadd.f32 %v366, %v712
        %v714 = vpop.f32.mrf.mxu0
        %v715 = vadd.f32 %v366, %v714
        %716 = vmatmul.bf16.gmra.mxu0 %v516
        %v717 = vpop.f32.mrf.mxu0
        %v718 = vadd.f32 %v366, %v717
        %v719 = vpop.f32.mrf.mxu0
        %v720 = vadd.f32 %v366, %v719
        %721 = vmatmul.bf16.gmra.mxu0 %v517
        %v722 = vpop.f32.mrf.mxu0
        %v723 = vadd.f32 %v366, %v722
        %v724 = vpop.f32.mrf.mxu0
        %v725 = vadd.f32 %v366, %v724
        %726 = vmatmul.bf16.gmra.mxu0 %v518
        %v727 = vpop.f32.mrf.mxu0
        %v728 = vadd.f32 %v366, %v727
        %v729 = vpop.f32.mrf.mxu0
        %v730 = vadd.f32 %v366, %v729
        %731 = vmatmul.bf16.gmra.mxu0 %v519
        %v732 = vpop.f32.mrf.mxu0
        %v733 = vadd.f32 %v366, %v732
        %v734 = vpop.f32.mrf.mxu0
        %v735 = vadd.f32 %v366, %v734
        %736 = vmatmul.bf16.gmra.mxu0 %v520
        %v737 = vpop.f32.mrf.mxu0
        %v738 = vadd.f32 %v366, %v737
        %v739 = vpop.f32.mrf.mxu0
        %v740 = vadd.f32 %v366, %v739
        %741 = vmatmul.bf16.gmra.mxu0 %v521
        %v742 = vpop.f32.mrf.mxu0
        %v743 = vadd.f32 %v366, %v742
        %v744 = vpop.f32.mrf.mxu0
        %v745 = vadd.f32 %v366, %v744
        %746 = vmatmul.bf16.gmra.mxu0 %v522
        %v747 = vpop.f32.mrf.mxu0
        %v748 = vadd.f32 %v366, %v747
        %v749 = vpop.f32.mrf.mxu0
        %v750 = vadd.f32 %v366, %v749
        %751 = vmatmul.bf16.gmra.mxu0 %v523
        %v752 = vpop.f32.mrf.mxu0
        %v753 = vadd.f32 %v366, %v752
        %v754 = vpop.f32.mrf.mxu0
        %v755 = vadd.f32 %v366, %v754
        %756 = vmatmul.bf16.gmra.mxu0 %v524
        %v757 = vpop.f32.mrf.mxu0
        %v758 = vadd.f32 %v366, %v757
        %v759 = vpop.f32.mrf.mxu0
        %v760 = vadd.f32 %v366, %v759
        %761 = vmatmul.bf16.gmra.mxu0 %v525
        %v762 = vpop.f32.mrf.mxu0
        %v763 = vadd.f32 %v366, %v762
        %v764 = vpop.f32.mrf.mxu0
        %v765 = vadd.f32 %v366, %v764
        %766 = vmatmul.bf16.gmra.mxu0 %v526
        %v767 = vpop.f32.mrf.mxu0
        %v768 = vadd.f32 %v366, %v767
        %v769 = vpop.f32.mrf.mxu0
        %v770 = vadd.f32 %v366, %v769
        %771 = vmatmul.bf16.gmra.mxu0 %v527
        %v772 = vpop.f32.mrf.mxu0
        %v773 = vadd.f32 %v366, %v772
        %v774 = vpop.f32.mrf.mxu0
        %v775 = vadd.f32 %v366, %v774
        %776 = vdwg.mxu0
        %v777 = vmax.f32 %v618, 0.0
        %v778 = vmax.f32 %v620, 0.0
        %v779 = vmax.f32 %v623, 0.0
        %v780 = vmax.f32 %v625, 0.0
        %v781 = vmax.f32 %v628, 0.0
        %v782 = vmax.f32 %v630, 0.0
        %v783 = vmax.f32 %v633, 0.0
        %v784 = vmax.f32 %v635, 0.0
        %v785 = vmax.f32 %v638, 0.0
        %v786 = vmax.f32 %v640, 0.0
        %v787 = vmax.f32 %v643, 0.0
        %v788 = vmax.f32 %v645, 0.0
        %v789 = vmax.f32 %v648, 0.0
        %v790 = vmax.f32 %v650, 0.0
        %v791 = vmax.f32 %v653, 0.0
        %v792 = vmax.f32 %v655, 0.0
        %v793 = vmax.f32 %v658, 0.0
        %v794 = vmax.f32 %v660, 0.0
        %v795 = vmax.f32 %v663, 0.0
        %v796 = vmax.f32 %v665, 0.0
        %v797 = vmax.f32 %v668, 0.0
        %v798 = vmax.f32 %v670, 0.0
        %v799 = vmax.f32 %v673, 0.0
        %v800 = vmax.f32 %v675, 0.0
        %v801 = vmax.f32 %v678, 0.0
        %v802 = vmax.f32 %v680, 0.0
        %v803 = vmax.f32 %v683, 0.0
        %v804 = vmax.f32 %v685, 0.0
        %v805 = vmax.f32 %v688, 0.0
        %v806 = vmax.f32 %v690, 0.0
        %v807 = vmax.f32 %v693, 0.0
        %v808 = vmax.f32 %v695, 0.0
        %v809 = vmax.f32 %v698, 0.0
        %v810 = vmax.f32 %v700, 0.0
        %v811 = vmax.f32 %v703, 0.0
        %v812 = vmax.f32 %v705, 0.0
        %v813 = vmax.f32 %v708, 0.0
        %v814 = vmax.f32 %v710, 0.0
        %v815 = vmax.f32 %v713, 0.0
        %v816 = vmax.f32 %v715, 0.0
        %v817 = vmax.f32 %v718, 0.0
        %v818 = vmax.f32 %v720, 0.0
        %v819 = vmax.f32 %v723, 0.0
        %v820 = vmax.f32 %v725, 0.0
        %v821 = vmax.f32 %v728, 0.0
        %v822 = vmax.f32 %v730, 0.0
        %v823 = vmax.f32 %v733, 0.0
        %v824 = vmax.f32 %v735, 0.0
        %v825 = vmax.f32 %v738, 0.0
        %v826 = vmax.f32 %v740, 0.0
        %v827 = vmax.f32 %v743, 0.0
        %v828 = vmax.f32 %v745, 0.0
        %v829 = vmax.f32 %v748, 0.0
        %v830 = vmax.f32 %v750, 0.0
        %v831 = vmax.f32 %v753, 0.0
        %v832 = vmax.f32 %v755, 0.0
        %v833 = vmax.f32 %v758, 0.0
        %v834 = vmax.f32 %v760, 0.0
        %v835 = vmax.f32 %v763, 0.0
        %v836 = vmax.f32 %v765, 0.0
        %v837 = vmax.f32 %v768, 0.0
        %v838 = vmax.f32 %v770, 0.0
        %v839 = vmax.f32 %v773, 0.0
        %v840 = vmax.f32 %v775, 0.0
        %vm841 = vcmask 261120
        %842 = vst.msk [vmem:[#allocation2] sm:$0xff] %vm841, 0.0
        %843 = vst.msk [vmem:[#allocation2 + $0x8] sm:$0xff] %vm841, 0.0
        %vm844 = vcmask 254976
        %845 = vst.msk [vmem:[#allocation2 + $0x10] sm:$0x3] %vm844, 0.0
        %846 = vst.msk [vmem:[#allocation2 + $0x18] sm:$0xff] %vm841, 0.0
        %847 = vst.msk [vmem:[#allocation2 + $0x20] sm:$0xff] %vm841, 0.0
        %848 = vst.msk [vmem:[#allocation2 + $0x28] sm:$0x3] %vm844, 0.0
        %849 = vst.msk [vmem:[#allocation2 + $0x30] sm:$0xff] %vm841, 0.0
        %850 = vst.msk [vmem:[#allocation2 + $0x38] sm:$0xff] %vm841, 0.0
        %851 = vst.msk [vmem:[#allocation2 + $0x40] sm:$0x3] %vm844, 0.0
        %852 = vst.msk [vmem:[#allocation2 + $0x48] sm:$0xff] %vm841, 0.0
        %853 = vst.msk [vmem:[#allocation2 + $0x50] sm:$0xff] %vm841, 0.0
        %854 = vst.msk [vmem:[#allocation2 + $0x58] sm:$0x3] %vm844, 0.0
        %855 = vst.msk [vmem:[#allocation2 + $0x60] sm:$0xff] %vm841, 0.0
        %856 = vst.msk [vmem:[#allocation2 + $0x68] sm:$0xff] %vm841, 0.0
        %857 = vst.msk [vmem:[#allocation2 + $0x70] sm:$0x3] %vm844, 0.0
        %858 = vst.msk [vmem:[#allocation2 + $0x78] sm:$0xff] %vm841, 0.0
        %859 = vst.msk [vmem:[#allocation2 + $0x80] sm:$0xff] %vm841, 0.0
        %860 = vst.msk [vmem:[#allocation2 + $0x88] sm:$0x3] %vm844, 0.0
        %861 = vst.msk [vmem:[#allocation2 + $0x90] sm:$0xff] %vm841, 0.0
        %862 = vst.msk [vmem:[#allocation2 + $0x98] sm:$0xff] %vm841, 0.0
        %863 = vst.msk [vmem:[#allocation2 + $0xa0] sm:$0x3] %vm844, 0.0
        %864 = vst.msk [vmem:[#allocation2 + $0xa8] sm:$0xff] %vm841, 0.0
        %865 = vst.msk [vmem:[#allocation2 + $0xb0] sm:$0xff] %vm841, 0.0
        %866 = vst.msk [vmem:[#allocation2 + $0xb8] sm:$0x3] %vm844, 0.0
        %867 = vst.msk [vmem:[#allocation2 + $0xc0] sm:$0xff] %vm841, 0.0
        %868 = vst.msk [vmem:[#allocation2 + $0xc8] sm:$0xff] %vm841, 0.0
        %869 = vst.msk [vmem:[#allocation2 + $0xd0] sm:$0x3] %vm844, 0.0
        %870 = vst.msk [vmem:[#allocation2 + $0xd8] sm:$0xff] %vm841, 0.0
        %871 = vst.msk [vmem:[#allocation2 + $0xe0] sm:$0xff] %vm841, 0.0
        %872 = vst.msk [vmem:[#allocation2 + $0xe8] sm:$0x3] %vm844, 0.0
        %873 = vst.msk [vmem:[#allocation2 + $0xf0] sm:$0xff] %vm841, 0.0
        %874 = vst.msk [vmem:[#allocation2 + $0xf8] sm:$0xff] %vm841, 0.0
        %875 = vst.msk [vmem:[#allocation2 + $0x100] sm:$0x3] %vm844, 0.0
        %876 = vst.msk [vmem:[#allocation2 + $0x108] sm:$0xff] %vm841, 0.0
        %877 = vst.msk [vmem:[#allocation2 + $0x110] sm:$0xff] %vm841, 0.0
        %878 = vst.msk [vmem:[#allocation2 + $0x118] sm:$0x3] %vm844, 0.0
        %879 = vst.msk [vmem:[#allocation2 + $0x120] sm:$0xff] %vm841, 0.0
        %880 = vst.msk [vmem:[#allocation2 + $0x128] sm:$0xff] %vm841, 0.0
        %881 = vst.msk [vmem:[#allocation2 + $0x130] sm:$0x3] %vm844, 0.0
        %882 = vst.msk [vmem:[#allocation2 + $0x138] sm:$0xff] %vm841, 0.0
        %883 = vst.msk [vmem:[#allocation2 + $0x140] sm:$0xff] %vm841, 0.0
        %884 = vst.msk [vmem:[#allocation2 + $0x148] sm:$0x3] %vm844, 0.0
        %885 = vst.msk [vmem:[#allocation2 + $0x150] sm:$0xff] %vm841, 0.0
        %886 = vst.msk [vmem:[#allocation2 + $0x158] sm:$0xff] %vm841, 0.0
        %887 = vst.msk [vmem:[#allocation2 + $0x160] sm:$0x3] %vm844, 0.0
        %888 = vst.msk [vmem:[#allocation2 + $0x168] sm:$0xff] %vm841, 0.0
        %889 = vst.msk [vmem:[#allocation2 + $0x170] sm:$0xff] %vm841, 0.0
        %890 = vst.msk [vmem:[#allocation2 + $0x178] sm:$0x3] %vm844, 0.0
        %891 = vst.msk [vmem:[#allocation2 + $0x180] sm:$0xff] %vm841, 0.0
        %892 = vst.msk [vmem:[#allocation2 + $0x188] sm:$0xff] %vm841, 0.0
        %893 = vst.msk [vmem:[#allocation2 + $0x190] sm:$0x3] %vm844, 0.0
        %894 = vst.msk [vmem:[#allocation2 + $0x198] sm:$0xff] %vm841, 0.0
        %895 = vst.msk [vmem:[#allocation2 + $0x1a0] sm:$0xff] %vm841, 0.0
        %896 = vst.msk [vmem:[#allocation2 + $0x1a8] sm:$0x3] %vm844, 0.0
        %897 = vst.msk [vmem:[#allocation2 + $0x1b0] sm:$0xff] %vm841, 0.0
        %898 = vst.msk [vmem:[#allocation2 + $0x1b8] sm:$0xff] %vm841, 0.0
        %899 = vst.msk [vmem:[#allocation2 + $0x1c0] sm:$0x3] %vm844, 0.0
        %900 = vst.msk [vmem:[#allocation2 + $0x1c8] sm:$0xff] %vm841, 0.0
        %901 = vst.msk [vmem:[#allocation2 + $0x1d0] sm:$0xff] %vm841, 0.0
        %902 = vst.msk [vmem:[#allocation2 + $0x1d8] sm:$0x3] %vm844, 0.0
        %903 = vst.msk [vmem:[#allocation2 + $0x1e0] sm:$0xff] %vm841, 0.0
        %904 = vst.msk [vmem:[#allocation2 + $0x1e8] sm:$0xff] %vm841, 0.0
        %905 = vst.msk [vmem:[#allocation2 + $0x1f0] sm:$0x3] %vm844, 0.0
        %906 = vst.msk [vmem:[#allocation2 + $0x1f8] sm:$0xff] %vm841, 0.0
        %907 = vst.msk [vmem:[#allocation2 + $0x200] sm:$0xff] %vm841, 0.0
        %908 = vst.msk [vmem:[#allocation2 + $0x208] sm:$0x3] %vm844, 0.0
        %909 = vst.msk [vmem:[#allocation2 + $0x210] sm:$0xff] %vm841, 0.0
        %910 = vst.msk [vmem:[#allocation2 + $0x218] sm:$0xff] %vm841, 0.0
        %911 = vst.msk [vmem:[#allocation2 + $0x220] sm:$0x3] %vm844, 0.0
        %912 = vst.msk [vmem:[#allocation2 + $0x228] sm:$0xff] %vm841, 0.0
        %913 = vst.msk [vmem:[#allocation2 + $0x230] sm:$0xff] %vm841, 0.0
        %914 = vst.msk [vmem:[#allocation2 + $0x238] sm:$0x3] %vm844, 0.0
        %915 = vst.msk [vmem:[#allocation2 + $0x240] sm:$0xff] %vm841, 0.0
        %916 = vst.msk [vmem:[#allocation2 + $0x248] sm:$0xff] %vm841, 0.0
        %917 = vst.msk [vmem:[#allocation2 + $0x250] sm:$0x3] %vm844, 0.0
        %918 = vst.msk [vmem:[#allocation2 + $0x258] sm:$0xff] %vm841, 0.0
        %919 = vst.msk [vmem:[#allocation2 + $0x260] sm:$0xff] %vm841, 0.0
        %920 = vst.msk [vmem:[#allocation2 + $0x268] sm:$0x3] %vm844, 0.0
        %921 = vst.msk [vmem:[#allocation2 + $0x270] sm:$0xff] %vm841, 0.0
        %922 = vst.msk [vmem:[#allocation2 + $0x278] sm:$0xff] %vm841, 0.0
        %923 = vst.msk [vmem:[#allocation2 + $0x280] sm:$0x3] %vm844, 0.0
        %924 = vst.msk [vmem:[#allocation2 + $0x288] sm:$0xff] %vm841, 0.0
        %925 = vst.msk [vmem:[#allocation2 + $0x290] sm:$0xff] %vm841, 0.0
        %926 = vst.msk [vmem:[#allocation2 + $0x298] sm:$0x3] %vm844, 0.0
        %927 = vst.msk [vmem:[#allocation2 + $0x2a0] sm:$0xff] %vm841, 0.0
        %928 = vst.msk [vmem:[#allocation2 + $0x2a8] sm:$0xff] %vm841, 0.0
        %929 = vst.msk [vmem:[#allocation2 + $0x2b0] sm:$0x3] %vm844, 0.0
        %930 = vst.msk [vmem:[#allocation2 + $0x2b8] sm:$0xff] %vm841, 0.0
        %931 = vst.msk [vmem:[#allocation2 + $0x2c0] sm:$0xff] %vm841, 0.0
        %932 = vst.msk [vmem:[#allocation2 + $0x2c8] sm:$0x3] %vm844, 0.0
        %933 = vst.msk [vmem:[#allocation2 + $0x2d0] sm:$0xff] %vm841, 0.0
        %934 = vst.msk [vmem:[#allocation2 + $0x2d8] sm:$0xff] %vm841, 0.0
        %935 = vst.msk [vmem:[#allocation2 + $0x2e0] sm:$0x3] %vm844, 0.0
        %936 = vst.msk [vmem:[#allocation2 + $0x2e8] sm:$0xff] %vm841, 0.0
        %937 = vst.msk [vmem:[#allocation2 + $0x2f0] sm:$0xff] %vm841, 0.0
        %938 = vst.msk [vmem:[#allocation2 + $0x2f8] sm:$0x3] %vm844, 0.0
        %939 = vst.msk [vmem:[#allocation2 + $0x300] sm:$0xff] %vm841, 0.0
        %940 = vst.msk [vmem:[#allocation2 + $0x308] sm:$0xff] %vm841, 0.0
        %941 = vst.msk [vmem:[#allocation2 + $0x310] sm:$0x3] %vm844, 0.0
        %942 = vst.msk [vmem:[#allocation2 + $0x318] sm:$0xff] %vm841, 0.0
        %943 = vst.msk [vmem:[#allocation2 + $0x320] sm:$0xff] %vm841, 0.0
        %944 = vst.msk [vmem:[#allocation2 + $0x328] sm:$0x3] %vm844, 0.0
        %945 = vst.msk [vmem:[#allocation2 + $0x330] sm:$0xff] %vm841, 0.0
        %946 = vst.msk [vmem:[#allocation2 + $0x338] sm:$0xff] %vm841, 0.0
        %947 = vst.msk [vmem:[#allocation2 + $0x340] sm:$0x3] %vm844, 0.0
        %948 = vst.msk [vmem:[#allocation2 + $0x348] sm:$0xff] %vm841, 0.0
        %949 = vst.msk [vmem:[#allocation2 + $0x350] sm:$0xff] %vm841, 0.0
        %950 = vst.msk [vmem:[#allocation2 + $0x358] sm:$0x3] %vm844, 0.0
        %s951 = scalar_lea.vmem [#allocation2], 24
        %952 = vst.msk [vmem:[%s951 + $0x1] sm:$0xff] %vm841, %v777
        %953 = vst.msk [vmem:[%s951 + $0x9] sm:$0xff] %vm841, %v778
        %954 = vst.msk [vmem:[%s951 + $0x19] sm:$0xff] %vm841, %v779
        %955 = vst.msk [vmem:[%s951 + $0x21] sm:$0xff] %vm841, %v780
        %956 = vst.msk [vmem:[%s951 + $0x31] sm:$0xff] %vm841, %v781
        %957 = vst.msk [vmem:[%s951 + $0x39] sm:$0xff] %vm841, %v782
        %958 = vst.msk [vmem:[%s951 + $0x49] sm:$0xff] %vm841, %v783
        %959 = vst.msk [vmem:[%s951 + $0x51] sm:$0xff] %vm841, %v784
        %960 = vst.msk [vmem:[%s951 + $0x61] sm:$0xff] %vm841, %v785
        %961 = vst.msk [vmem:[%s951 + $0x69] sm:$0xff] %vm841, %v786
        %962 = vst.msk [vmem:[%s951 + $0x79] sm:$0xff] %vm841, %v787
        %963 = vst.msk [vmem:[%s951 + $0x81] sm:$0xff] %vm841, %v788
        %964 = vst.msk [vmem:[%s951 + $0x91] sm:$0xff] %vm841, %v789
        %965 = vst.msk [vmem:[%s951 + $0x99] sm:$0xff] %vm841, %v790
        %966 = vst.msk [vmem:[%s951 + $0xa9] sm:$0xff] %vm841, %v791
        %967 = vst.msk [vmem:[%s951 + $0xb1] sm:$0xff] %vm841, %v792
        %968 = vst.msk [vmem:[%s951 + $0xc1] sm:$0xff] %vm841, %v793
        %969 = vst.msk [vmem:[%s951 + $0xc9] sm:$0xff] %vm841, %v794
        %970 = vst.msk [vmem:[%s951 + $0xd9] sm:$0xff] %vm841, %v795
        %971 = vst.msk [vmem:[%s951 + $0xe1] sm:$0xff] %vm841, %v796
        %972 = vst.msk [vmem:[%s951 + $0xf1] sm:$0xff] %vm841, %v797
        %973 = vst.msk [vmem:[%s951 + $0xf9] sm:$0xff] %vm841, %v798
        %974 = vst.msk [vmem:[%s951 + $0x109] sm:$0xff] %vm841, %v799
        %975 = vst.msk [vmem:[%s951 + $0x111] sm:$0xff] %vm841, %v800
        %976 = vst.msk [vmem:[%s951 + $0x121] sm:$0xff] %vm841, %v801
        %977 = vst.msk [vmem:[%s951 + $0x129] sm:$0xff] %vm841, %v802
        %978 = vst.msk [vmem:[%s951 + $0x139] sm:$0xff] %vm841, %v803
        %979 = vst.msk [vmem:[%s951 + $0x141] sm:$0xff] %vm841, %v804
        %980 = vst.msk [vmem:[%s951 + $0x151] sm:$0xff] %vm841, %v805
        %981 = vst.msk [vmem:[%s951 + $0x159] sm:$0xff] %vm841, %v806
        %982 = vst.msk [vmem:[%s951 + $0x169] sm:$0xff] %vm841, %v807
        %983 = vst.msk [vmem:[%s951 + $0x171] sm:$0xff] %vm841, %v808
        %984 = vst.msk [vmem:[%s951 + $0x1b1] sm:$0xff] %vm841, %v809
        %985 = vst.msk [vmem:[%s951 + $0x1b9] sm:$0xff] %vm841, %v810
        %986 = vst.msk [vmem:[%s951 + $0x1c9] sm:$0xff] %vm841, %v811
        %987 = vst.msk [vmem:[%s951 + $0x1d1] sm:$0xff] %vm841, %v812
        %988 = vst.msk [vmem:[%s951 + $0x1e1] sm:$0xff] %vm841, %v813
        %989 = vst.msk [vmem:[%s951 + $0x1e9] sm:$0xff] %vm841, %v814
        %990 = vst.msk [vmem:[%s951 + $0x1f9] sm:$0xff] %vm841, %v815
        %991 = vst.msk [vmem:[%s951 + $0x201] sm:$0xff] %vm841, %v816
        %992 = vst.msk [vmem:[%s951 + $0x211] sm:$0xff] %vm841, %v817
        %993 = vst.msk [vmem:[%s951 + $0x219] sm:$0xff] %vm841, %v818
        %994 = vst.msk [vmem:[%s951 + $0x229] sm:$0xff] %vm841, %v819
        %995 = vst.msk [vmem:[%s951 + $0x231] sm:$0xff] %vm841, %v820
        %996 = vst.msk [vmem:[%s951 + $0x241] sm:$0xff] %vm841, %v821
        %997 = vst.msk [vmem:[%s951 + $0x249] sm:$0xff] %vm841, %v822
        %998 = vst.msk [vmem:[%s951 + $0x259] sm:$0xff] %vm841, %v823
        %999 = vst.msk [vmem:[%s951 + $0x261] sm:$0xff] %vm841, %v824
        %1000 = vst.msk [vmem:[%s951 + $0x271] sm:$0xff] %vm841, %v825
        %1001 = vst.msk [vmem:[%s951 + $0x279] sm:$0xff] %vm841, %v826
        %1002 = vst.msk [vmem:[%s951 + $0x289] sm:$0xff] %vm841, %v827
        %1003 = vst.msk [vmem:[%s951 + $0x291] sm:$0xff] %vm841, %v828
        %1004 = vst.msk [vmem:[%s951 + $0x2a1] sm:$0xff] %vm841, %v829
        %1005 = vst.msk [vmem:[%s951 + $0x2a9] sm:$0xff] %vm841, %v830
        %1006 = vst.msk [vmem:[%s951 + $0x2b9] sm:$0xff] %vm841, %v831
        %1007 = vst.msk [vmem:[%s951 + $0x2c1] sm:$0xff] %vm841, %v832
        %1008 = vst.msk [vmem:[%s951 + $0x2d1] sm:$0xff] %vm841, %v833
        %1009 = vst.msk [vmem:[%s951 + $0x2d9] sm:$0xff] %vm841, %v834
        %1010 = vst.msk [vmem:[%s951 + $0x2e9] sm:$0xff] %vm841, %v835
        %1011 = vst.msk [vmem:[%s951 + $0x2f1] sm:$0xff] %vm841, %v836
        %1012 = vst.msk [vmem:[%s951 + $0x301] sm:$0xff] %vm841, %v837
        %1013 = vst.msk [vmem:[%s951 + $0x309] sm:$0xff] %vm841, %v838
        %1014 = vst.msk [vmem:[%s951 + $0x319] sm:$0xff] %vm841, %v839
        %1015 = vst.msk [vmem:[%s951 + $0x321] sm:$0xff] %vm841, %v840
        %v1016 = vld [vmem:[#allocation2] sm:$0xff]
        %v1017 = vld [vmem:[#allocation2 + $0x8] sm:$0xff]
        %v1018 = vld [vmem:[#allocation2 + $0x18] sm:$0xff]
        %v1019 = vld [vmem:[#allocation2 + $0x20] sm:$0xff]
        %v1020 = vld [vmem:[#allocation2 + $0x30] sm:$0xff]
        %v1021 = vld [vmem:[#allocation2 + $0x38] sm:$0xff]
        %v1022 = vld [vmem:[#allocation2 + $0x48] sm:$0xff]
        %v1023 = vld [vmem:[#allocation2 + $0x50] sm:$0xff]
        %v1024 = vld [vmem:[#allocation2 + $0x60] sm:$0xff]
        %v1025 = vld [vmem:[#allocation2 + $0x68] sm:$0xff]
        %v1026 = vld [vmem:[#allocation2 + $0x78] sm:$0xff]
        %v1027 = vld [vmem:[#allocation2 + $0x80] sm:$0xff]
        %v1028 = vld [vmem:[#allocation2 + $0x90] sm:$0xff]
        %v1029 = vld [vmem:[#allocation2 + $0x98] sm:$0xff]
        %v1030 = vld [vmem:[#allocation2 + $0xa8] sm:$0xff]
        %v1031 = vld [vmem:[#allocation2 + $0xb0] sm:$0xff]
        %v1032 = vld [vmem:[#allocation2 + $0xc0] sm:$0xff]
        %v1033 = vld [vmem:[#allocation2 + $0xc8] sm:$0xff]
        %v1034 = vld [vmem:[#allocation2 + $0xd8] sm:$0xff]
        %v1035 = vld [vmem:[#allocation2 + $0xe0] sm:$0xff]
        %v1036 = vld [vmem:[#allocation2 + $0xf0] sm:$0xff]
        %v1037 = vld [vmem:[#allocation2 + $0xf8] sm:$0xff]
        %v1038 = vld [vmem:[#allocation2 + $0x108] sm:$0xff]
        %v1039 = vld [vmem:[#allocation2 + $0x110] sm:$0xff]
        %v1040 = vld [vmem:[#allocation2 + $0x120] sm:$0xff]
        %v1041 = vld [vmem:[#allocation2 + $0x128] sm:$0xff]
        %v1042 = vld [vmem:[#allocation2 + $0x138] sm:$0xff]
        %v1043 = vld [vmem:[#allocation2 + $0x140] sm:$0xff]
        %v1044 = vld [vmem:[#allocation2 + $0x150] sm:$0xff]
        %v1045 = vld [vmem:[#allocation2 + $0x158] sm:$0xff]
        %v1046 = vld [vmem:[#allocation2 + $0x168] sm:$0xff]
        %v1047 = vld [vmem:[#allocation2 + $0x170] sm:$0xff]
        %v1048 = vld [vmem:[#allocation2 + $0x1b0] sm:$0xff]
        %v1049 = vld [vmem:[#allocation2 + $0x1b8] sm:$0xff]
        %v1050 = vld [vmem:[#allocation2 + $0x1c8] sm:$0xff]
        %v1051 = vld [vmem:[#allocation2 + $0x1d0] sm:$0xff]
        %v1052 = vld [vmem:[#allocation2 + $0x1e0] sm:$0xff]
        %v1053 = vld [vmem:[#allocation2 + $0x1e8] sm:$0xff]
        %v1054 = vld [vmem:[#allocation2 + $0x1f8] sm:$0xff]
        %v1055 = vld [vmem:[#allocation2 + $0x200] sm:$0xff]
        %v1056 = vld [vmem:[#allocation2 + $0x210] sm:$0xff]
        %v1057 = vld [vmem:[#allocation2 + $0x218] sm:$0xff]
        %v1058 = vld [vmem:[#allocation2 + $0x228] sm:$0xff]
        %v1059 = vld [vmem:[#allocation2 + $0x230] sm:$0xff]
        %v1060 = vld [vmem:[#allocation2 + $0x240] sm:$0xff]
        %v1061 = vld [vmem:[#allocation2 + $0x248] sm:$0xff]
        %v1062 = vld [vmem:[#allocation2 + $0x258] sm:$0xff]
        %v1063 = vld [vmem:[#allocation2 + $0x260] sm:$0xff]
        %v1064 = vld [vmem:[#allocation2 + $0x270] sm:$0xff]
        %v1065 = vld [vmem:[#allocation2 + $0x278] sm:$0xff]
        %v1066 = vld [vmem:[#allocation2 + $0x288] sm:$0xff]
        %v1067 = vld [vmem:[#allocation2 + $0x290] sm:$0xff]
        %v1068 = vld [vmem:[#allocation2 + $0x2a0] sm:$0xff]
        %v1069 = vld [vmem:[#allocation2 + $0x2a8] sm:$0xff]
        %v1070 = vld [vmem:[#allocation2 + $0x2b8] sm:$0xff]
        %v1071 = vld [vmem:[#allocation2 + $0x2c0] sm:$0xff]
        %v1072 = vld [vmem:[#allocation2 + $0x2d0] sm:$0xff]
        %v1073 = vld [vmem:[#allocation2 + $0x2d8] sm:$0xff]
        %v1074 = vld [vmem:[#allocation2 + $0x2e8] sm:$0xff]
        %v1075 = vld [vmem:[#allocation2 + $0x2f0] sm:$0xff]
        %v1076 = vld [vmem:[#allocation2 + $0x300] sm:$0xff]
        %v1077 = vld [vmem:[#allocation2 + $0x308] sm:$0xff]
        %v1078 = vld [vmem:[#allocation2 + $0x318] sm:$0xff]
        %v1079 = vld [vmem:[#allocation2 + $0x320] sm:$0xff]
        %v1080 = vpack.c.bf16 %v1016, %v1016
        %v1081 = vpack.c.bf16 %v1017, %v1017
        %v1082 = vpack.c.bf16 %v1018, %v1018
        %v1083 = vpack.c.bf16 %v1019, %v1019
        %v1084 = vpack.c.bf16 %v1020, %v1020
        %v1085 = vpack.c.bf16 %v1021, %v1021
        %v1086 = vpack.c.bf16 %v1022, %v1022
        %v1087 = vpack.c.bf16 %v1023, %v1023
        %v1088 = vpack.c.bf16 %v1024, %v1024
        %v1089 = vpack.c.bf16 %v1025, %v1025
        %v1090 = vpack.c.bf16 %v1026, %v1026
        %v1091 = vpack.c.bf16 %v1027, %v1027
        %v1092 = vpack.c.bf16 %v1028, %v1028
        %v1093 = vpack.c.bf16 %v1029, %v1029
        %v1094 = vpack.c.bf16 %v1030, %v1030
        %v1095 = vpack.c.bf16 %v1031, %v1031
        %v1096 = vpack.c.bf16 %v1032, %v1032
        %v1097 = vpack.c.bf16 %v1033, %v1033
        %v1098 = vpack.c.bf16 %v1034, %v1034
        %v1099 = vpack.c.bf16 %v1035, %v1035
        %v1100 = vpack.c.bf16 %v1036, %v1036
        %v1101 = vpack.c.bf16 %v1037, %v1037
        %v1102 = vpack.c.bf16 %v1038, %v1038
        %v1103 = vpack.c.bf16 %v1039, %v1039
        %v1104 = vpack.c.bf16 %v1040, %v1040
        %v1105 = vpack.c.bf16 %v1041, %v1041
        %v1106 = vpack.c.bf16 %v1042, %v1042
        %v1107 = vpack.c.bf16 %v1043, %v1043
        %v1108 = vpack.c.bf16 %v1044, %v1044
        %v1109 = vpack.c.bf16 %v1045, %v1045
        %v1110 = vpack.c.bf16 %v1046, %v1046
        %v1111 = vpack.c.bf16 %v1047, %v1047
        %v1112 = vpack.c.bf16 %v1048, %v1048
        %v1113 = vpack.c.bf16 %v1049, %v1049
        %v1114 = vpack.c.bf16 %v1050, %v1050
        %v1115 = vpack.c.bf16 %v1051, %v1051
        %v1116 = vpack.c.bf16 %v1052, %v1052
        %v1117 = vpack.c.bf16 %v1053, %v1053
        %v1118 = vpack.c.bf16 %v1054, %v1054
        %v1119 = vpack.c.bf16 %v1055, %v1055
        %v1120 = vpack.c.bf16 %v1056, %v1056
        %v1121 = vpack.c.bf16 %v1057, %v1057
        %v1122 = vpack.c.bf16 %v1058, %v1058
        %v1123 = vpack.c.bf16 %v1059, %v1059
        %v1124 = vpack.c.bf16 %v1060, %v1060
        %v1125 = vpack.c.bf16 %v1061, %v1061
        %v1126 = vpack.c.bf16 %v1062, %v1062
        %v1127 = vpack.c.bf16 %v1063, %v1063
        %v1128 = vpack.c.bf16 %v1064, %v1064
        %v1129 = vpack.c.bf16 %v1065, %v1065
        %v1130 = vpack.c.bf16 %v1066, %v1066
        %v1131 = vpack.c.bf16 %v1067, %v1067
        %v1132 = vpack.c.bf16 %v1068, %v1068
        %v1133 = vpack.c.bf16 %v1069, %v1069
        %v1134 = vpack.c.bf16 %v1070, %v1070
        %v1135 = vpack.c.bf16 %v1071, %v1071
        %v1136 = vpack.c.bf16 %v1072, %v1072
        %v1137 = vpack.c.bf16 %v1073, %v1073
        %v1138 = vpack.c.bf16 %v1074, %v1074
        %v1139 = vpack.c.bf16 %v1075, %v1075
        %v1140 = vpack.c.bf16 %v1076, %v1076
        %v1141 = vpack.c.bf16 %v1077, %v1077
        %v1142 = vpack.c.bf16 %v1078, %v1078
        %v1143 = vpack.c.bf16 %v1079, %v1079
        %v1144 = vld [vmem:[#allocation2 + $0x1] sm:$0xff]
        %v1145 = vld [vmem:[#allocation2 + $0x9] sm:$0xff]
        %v1146 = vld [vmem:[#allocation2 + $0x19] sm:$0xff]
        %v1147 = vld [vmem:[#allocation2 + $0x21] sm:$0xff]
        %v1148 = vld [vmem:[#allocation2 + $0x31] sm:$0xff]
        %v1149 = vld [vmem:[#allocation2 + $0x39] sm:$0xff]
        %v1150 = vld [vmem:[#allocation2 + $0x49] sm:$0xff]
        %v1151 = vld [vmem:[#allocation2 + $0x51] sm:$0xff]
        %v1152 = vld [vmem:[#allocation2 + $0x61] sm:$0xff]
        %v1153 = vld [vmem:[#allocation2 + $0x69] sm:$0xff]
        %v1154 = vld [vmem:[#allocation2 + $0x79] sm:$0xff]
        %v1155 = vld [vmem:[#allocation2 + $0x81] sm:$0xff]
        %v1156 = vld [vmem:[#allocation2 + $0x91] sm:$0xff]
        %v1157 = vld [vmem:[#allocation2 + $0x99] sm:$0xff]
        %v1158 = vld [vmem:[#allocation2 + $0xa9] sm:$0xff]
        %v1159 = vld [vmem:[#allocation2 + $0xb1] sm:$0xff]
        %v1160 = vld [vmem:[#allocation2 + $0xc1] sm:$0xff]
        %v1161 = vld [vmem:[#allocation2 + $0xc9] sm:$0xff]
        %v1162 = vld [vmem:[#allocation2 + $0xd9] sm:$0xff]
        %v1163 = vld [vmem:[#allocation2 + $0xe1] sm:$0xff]
        %v1164 = vld [vmem:[#allocation2 + $0xf1] sm:$0xff]
        %v1165 = vld [vmem:[#allocation2 + $0xf9] sm:$0xff]
        %v1166 = vld [vmem:[#allocation2 + $0x109] sm:$0xff]
        %v1167 = vld [vmem:[#allocation2 + $0x111] sm:$0xff]
        %v1168 = vld [vmem:[#allocation2 + $0x121] sm:$0xff]
        %v1169 = vld [vmem:[#allocation2 + $0x129] sm:$0xff]
        %v1170 = vld [vmem:[#allocation2 + $0x139] sm:$0xff]
        %v1171 = vld [vmem:[#allocation2 + $0x141] sm:$0xff]
        %v1172 = vld [vmem:[#allocation2 + $0x151] sm:$0xff]
        %v1173 = vld [vmem:[#allocation2 + $0x159] sm:$0xff]
        %v1174 = vld [vmem:[#allocation2 + $0x169] sm:$0xff]
        %v1175 = vld [vmem:[#allocation2 + $0x171] sm:$0xff]
        %v1176 = vld [vmem:[#allocation2 + $0x1b1] sm:$0xff]
        %v1177 = vld [vmem:[#allocation2 + $0x1b9] sm:$0xff]
        %v1178 = vld [vmem:[#allocation2 + $0x1c9] sm:$0xff]
        %v1179 = vld [vmem:[#allocation2 + $0x1d1] sm:$0xff]
        %v1180 = vld [vmem:[#allocation2 + $0x1e1] sm:$0xff]
        %v1181 = vld [vmem:[#allocation2 + $0x1e9] sm:$0xff]
        %v1182 = vld [vmem:[#allocation2 + $0x1f9] sm:$0xff]
        %v1183 = vld [vmem:[#allocation2 + $0x201] sm:$0xff]
        %v1184 = vld [vmem:[#allocation2 + $0x211] sm:$0xff]
        %v1185 = vld [vmem:[#allocation2 + $0x219] sm:$0xff]
        %v1186 = vld [vmem:[#allocation2 + $0x229] sm:$0xff]
        %v1187 = vld [vmem:[#allocation2 + $0x231] sm:$0xff]
        %v1188 = vld [vmem:[#allocation2 + $0x241] sm:$0xff]
        %v1189 = vld [vmem:[#allocation2 + $0x249] sm:$0xff]
        %v1190 = vld [vmem:[#allocation2 + $0x259] sm:$0xff]
        %v1191 = vld [vmem:[#allocation2 + $0x261] sm:$0xff]
        %v1192 = vld [vmem:[#allocation2 + $0x271] sm:$0xff]
        %v1193 = vld [vmem:[#allocation2 + $0x279] sm:$0xff]
        %v1194 = vld [vmem:[#allocation2 + $0x289] sm:$0xff]
        %v1195 = vld [vmem:[#allocation2 + $0x291] sm:$0xff]
        %v1196 = vld [vmem:[#allocation2 + $0x2a1] sm:$0xff]
        %v1197 = vld [vmem:[#allocation2 + $0x2a9] sm:$0xff]
        %v1198 = vld [vmem:[#allocation2 + $0x2b9] sm:$0xff]
        %v1199 = vld [vmem:[#allocation2 + $0x2c1] sm:$0xff]
        %v1200 = vld [vmem:[#allocation2 + $0x2d1] sm:$0xff]
        %v1201 = vld [vmem:[#allocation2 + $0x2d9] sm:$0xff]
        %v1202 = vld [vmem:[#allocation2 + $0x2e9] sm:$0xff]
        %v1203 = vld [vmem:[#allocation2 + $0x2f1] sm:$0xff]
        %v1204 = vld [vmem:[#allocation2 + $0x301] sm:$0xff]
        %v1205 = vld [vmem:[#allocation2 + $0x309] sm:$0xff]
        %v1206 = vld [vmem:[#allocation2 + $0x319] sm:$0xff]
        %v1207 = vld [vmem:[#allocation2 + $0x321] sm:$0xff]
        %v1208 = vpack.c.bf16 %v1144, %v1144
        %v1209 = vpack.c.bf16 %v1145, %v1145
        %v1210 = vpack.c.bf16 %v1146, %v1146
        %v1211 = vpack.c.bf16 %v1147, %v1147
        %v1212 = vpack.c.bf16 %v1148, %v1148
        %v1213 = vpack.c.bf16 %v1149, %v1149
        %v1214 = vpack.c.bf16 %v1150, %v1150
        %v1215 = vpack.c.bf16 %v1151, %v1151
        %v1216 = vpack.c.bf16 %v1152, %v1152
        %v1217 = vpack.c.bf16 %v1153, %v1153
        %v1218 = vpack.c.bf16 %v1154, %v1154
        %v1219 = vpack.c.bf16 %v1155, %v1155
        %v1220 = vpack.c.bf16 %v1156, %v1156
        %v1221 = vpack.c.bf16 %v1157, %v1157
        %v1222 = vpack.c.bf16 %v1158, %v1158
        %v1223 = vpack.c.bf16 %v1159, %v1159
        %v1224 = vpack.c.bf16 %v1160, %v1160
        %v1225 = vpack.c.bf16 %v1161, %v1161
        %v1226 = vpack.c.bf16 %v1162, %v1162
        %v1227 = vpack.c.bf16 %v1163, %v1163
        %v1228 = vpack.c.bf16 %v1164, %v1164
        %v1229 = vpack.c.bf16 %v1165, %v1165
        %v1230 = vpack.c.bf16 %v1166, %v1166
        %v1231 = vpack.c.bf16 %v1167, %v1167
        %v1232 = vpack.c.bf16 %v1168, %v1168
        %v1233 = vpack.c.bf16 %v1169, %v1169
        %v1234 = vpack.c.bf16 %v1170, %v1170
        %v1235 = vpack.c.bf16 %v1171, %v1171
        %v1236 = vpack.c.bf16 %v1172, %v1172
        %v1237 = vpack.c.bf16 %v1173, %v1173
        %v1238 = vpack.c.bf16 %v1174, %v1174
        %v1239 = vpack.c.bf16 %v1175, %v1175
        %v1240 = vpack.c.bf16 %v1176, %v1176
        %v1241 = vpack.c.bf16 %v1177, %v1177
        %v1242 = vpack.c.bf16 %v1178, %v1178
        %v1243 = vpack.c.bf16 %v1179, %v1179
        %v1244 = vpack.c.bf16 %v1180, %v1180
        %v1245 = vpack.c.bf16 %v1181, %v1181
        %v1246 = vpack.c.bf16 %v1182, %v1182
        %v1247 = vpack.c.bf16 %v1183, %v1183
        %v1248 = vpack.c.bf16 %v1184, %v1184
        %v1249 = vpack.c.bf16 %v1185, %v1185
        %v1250 = vpack.c.bf16 %v1186, %v1186
        %v1251 = vpack.c.bf16 %v1187, %v1187
        %v1252 = vpack.c.bf16 %v1188, %v1188
        %v1253 = vpack.c.bf16 %v1189, %v1189
        %v1254 = vpack.c.bf16 %v1190, %v1190
        %v1255 = vpack.c.bf16 %v1191, %v1191
        %v1256 = vpack.c.bf16 %v1192, %v1192
        %v1257 = vpack.c.bf16 %v1193, %v1193
        %v1258 = vpack.c.bf16 %v1194, %v1194
        %v1259 = vpack.c.bf16 %v1195, %v1195
        %v1260 = vpack.c.bf16 %v1196, %v1196
        %v1261 = vpack.c.bf16 %v1197, %v1197
        %v1262 = vpack.c.bf16 %v1198, %v1198
        %v1263 = vpack.c.bf16 %v1199, %v1199
        %v1264 = vpack.c.bf16 %v1200, %v1200
        %v1265 = vpack.c.bf16 %v1201, %v1201
        %v1266 = vpack.c.bf16 %v1202, %v1202
        %v1267 = vpack.c.bf16 %v1203, %v1203
        %v1268 = vpack.c.bf16 %v1204, %v1204
        %v1269 = vpack.c.bf16 %v1205, %v1205
        %v1270 = vpack.c.bf16 %v1206, %v1206
        %v1271 = vpack.c.bf16 %v1207, %v1207
        %v1272 = vld [vmem:[#allocation2 + $0x2] sm:$0xff]
        %v1273 = vld [vmem:[#allocation2 + $0xa] sm:$0xff]
        %v1274 = vld [vmem:[#allocation2 + $0x1a] sm:$0xff]
        %v1275 = vld [vmem:[#allocation2 + $0x22] sm:$0xff]
        %v1276 = vld [vmem:[#allocation2 + $0x32] sm:$0xff]
        %v1277 = vld [vmem:[#allocation2 + $0x3a] sm:$0xff]
        %v1278 = vld [vmem:[#allocation2 + $0x4a] sm:$0xff]
        %v1279 = vld [vmem:[#allocation2 + $0x52] sm:$0xff]
        %v1280 = vld [vmem:[#allocation2 + $0x62] sm:$0xff]
        %v1281 = vld [vmem:[#allocation2 + $0x6a] sm:$0xff]
        %v1282 = vld [vmem:[#allocation2 + $0x7a] sm:$0xff]
        %v1283 = vld [vmem:[#allocation2 + $0x82] sm:$0xff]
        %v1284 = vld [vmem:[#allocation2 + $0x92] sm:$0xff]
        %v1285 = vld [vmem:[#allocation2 + $0x9a] sm:$0xff]
        %v1286 = vld [vmem:[#allocation2 + $0xaa] sm:$0xff]
        %v1287 = vld [vmem:[#allocation2 + $0xb2] sm:$0xff]
        %v1288 = vld [vmem:[#allocation2 + $0xc2] sm:$0xff]
        %v1289 = vld [vmem:[#allocation2 + $0xca] sm:$0xff]
        %v1290 = vld [vmem:[#allocation2 + $0xda] sm:$0xff]
        %v1291 = vld [vmem:[#allocation2 + $0xe2] sm:$0xff]
        %v1292 = vld [vmem:[#allocation2 + $0xf2] sm:$0xff]
        %v1293 = vld [vmem:[#allocation2 + $0xfa] sm:$0xff]
        %v1294 = vld [vmem:[#allocation2 + $0x10a] sm:$0xff]
        %v1295 = vld [vmem:[#allocation2 + $0x112] sm:$0xff]
        %v1296 = vld [vmem:[#allocation2 + $0x122] sm:$0xff]
        %v1297 = vld [vmem:[#allocation2 + $0x12a] sm:$0xff]
        %v1298 = vld [vmem:[#allocation2 + $0x13a] sm:$0xff]
        %v1299 = vld [vmem:[#allocation2 + $0x142] sm:$0xff]
        %v1300 = vld [vmem:[#allocation2 + $0x152] sm:$0xff]
        %v1301 = vld [vmem:[#allocation2 + $0x15a] sm:$0xff]
        %v1302 = vld [vmem:[#allocation2 + $0x16a] sm:$0xff]
        %v1303 = vld [vmem:[#allocation2 + $0x172] sm:$0xff]
        %v1304 = vld [vmem:[#allocation2 + $0x1b2] sm:$0xff]
        %v1305 = vld [vmem:[#allocation2 + $0x1ba] sm:$0xff]
        %v1306 = vld [vmem:[#allocation2 + $0x1ca] sm:$0xff]
        %v1307 = vld [vmem:[#allocation2 + $0x1d2] sm:$0xff]
        %v1308 = vld [vmem:[#allocation2 + $0x1e2] sm:$0xff]
        %v1309 = vld [vmem:[#allocation2 + $0x1ea] sm:$0xff]
        %v1310 = vld [vmem:[#allocation2 + $0x1fa] sm:$0xff]
        %v1311 = vld [vmem:[#allocation2 + $0x202] sm:$0xff]
        %v1312 = vld [vmem:[#allocation2 + $0x212] sm:$0xff]
        %v1313 = vld [vmem:[#allocation2 + $0x21a] sm:$0xff]
        %v1314 = vld [vmem:[#allocation2 + $0x22a] sm:$0xff]
        %v1315 = vld [vmem:[#allocation2 + $0x232] sm:$0xff]
        %v1316 = vld [vmem:[#allocation2 + $0x242] sm:$0xff]
        %v1317 = vld [vmem:[#allocation2 + $0x24a] sm:$0xff]
        %v1318 = vld [vmem:[#allocation2 + $0x25a] sm:$0xff]
        %v1319 = vld [vmem:[#allocation2 + $0x262] sm:$0xff]
        %v1320 = vld [vmem:[#allocation2 + $0x272] sm:$0xff]
        %v1321 = vld [vmem:[#allocation2 + $0x27a] sm:$0xff]
        %v1322 = vld [vmem:[#allocation2 + $0x28a] sm:$0xff]
        %v1323 = vld [vmem:[#allocation2 + $0x292] sm:$0xff]
        %v1324 = vld [vmem:[#allocation2 + $0x2a2] sm:$0xff]
        %v1325 = vld [vmem:[#allocation2 + $0x2aa] sm:$0xff]
        %v1326 = vld [vmem:[#allocation2 + $0x2ba] sm:$0xff]
        %v1327 = vld [vmem:[#allocation2 + $0x2c2] sm:$0xff]
        %v1328 = vld [vmem:[#allocation2 + $0x2d2] sm:$0xff]
        %v1329 = vld [vmem:[#allocation2 + $0x2da] sm:$0xff]
        %v1330 = vld [vmem:[#allocation2 + $0x2ea] sm:$0xff]
        %v1331 = vld [vmem:[#allocation2 + $0x2f2] sm:$0xff]
        %v1332 = vld [vmem:[#allocation2 + $0x302] sm:$0xff]
        %v1333 = vld [vmem:[#allocation2 + $0x30a] sm:$0xff]
        %v1334 = vld [vmem:[#allocation2 + $0x31a] sm:$0xff]
        %v1335 = vld [vmem:[#allocation2 + $0x322] sm:$0xff]
        %v1336 = vpack.c.bf16 %v1272, %v1272
        %v1337 = vpack.c.bf16 %v1273, %v1273
        %v1338 = vpack.c.bf16 %v1274, %v1274
        %v1339 = vpack.c.bf16 %v1275, %v1275
        %v1340 = vpack.c.bf16 %v1276, %v1276
        %v1341 = vpack.c.bf16 %v1277, %v1277
        %v1342 = vpack.c.bf16 %v1278, %v1278
        %v1343 = vpack.c.bf16 %v1279, %v1279
        %v1344 = vpack.c.bf16 %v1280, %v1280
        %v1345 = vpack.c.bf16 %v1281, %v1281
        %v1346 = vpack.c.bf16 %v1282, %v1282
        %v1347 = vpack.c.bf16 %v1283, %v1283
        %v1348 = vpack.c.bf16 %v1284, %v1284
        %v1349 = vpack.c.bf16 %v1285, %v1285
        %v1350 = vpack.c.bf16 %v1286, %v1286
        %v1351 = vpack.c.bf16 %v1287, %v1287
        %v1352 = vpack.c.bf16 %v1288, %v1288
        %v1353 = vpack.c.bf16 %v1289, %v1289
        %v1354 = vpack.c.bf16 %v1290, %v1290
        %v1355 = vpack.c.bf16 %v1291, %v1291
        %v1356 = vpack.c.bf16 %v1292, %v1292
        %v1357 = vpack.c.bf16 %v1293, %v1293
        %v1358 = vpack.c.bf16 %v1294, %v1294
        %v1359 = vpack.c.bf16 %v1295, %v1295
        %v1360 = vpack.c.bf16 %v1296, %v1296
        %v1361 = vpack.c.bf16 %v1297, %v1297
        %v1362 = vpack.c.bf16 %v1298, %v1298
        %v1363 = vpack.c.bf16 %v1299, %v1299
        %v1364 = vpack.c.bf16 %v1300, %v1300
        %v1365 = vpack.c.bf16 %v1301, %v1301
        %v1366 = vpack.c.bf16 %v1302, %v1302
        %v1367 = vpack.c.bf16 %v1303, %v1303
        %v1368 = vpack.c.bf16 %v1304, %v1304
        %v1369 = vpack.c.bf16 %v1305, %v1305
        %v1370 = vpack.c.bf16 %v1306, %v1306
        %v1371 = vpack.c.bf16 %v1307, %v1307
        %v1372 = vpack.c.bf16 %v1308, %v1308
        %v1373 = vpack.c.bf16 %v1309, %v1309
        %v1374 = vpack.c.bf16 %v1310, %v1310
        %v1375 = vpack.c.bf16 %v1311, %v1311
        %v1376 = vpack.c.bf16 %v1312, %v1312
        %v1377 = vpack.c.bf16 %v1313, %v1313
        %v1378 = vpack.c.bf16 %v1314, %v1314
        %v1379 = vpack.c.bf16 %v1315, %v1315
        %v1380 = vpack.c.bf16 %v1316, %v1316
        %v1381 = vpack.c.bf16 %v1317, %v1317
        %v1382 = vpack.c.bf16 %v1318, %v1318
        %v1383 = vpack.c.bf16 %v1319, %v1319
        %v1384 = vpack.c.bf16 %v1320, %v1320
        %v1385 = vpack.c.bf16 %v1321, %v1321
        %v1386 = vpack.c.bf16 %v1322, %v1322
        %v1387 = vpack.c.bf16 %v1323, %v1323
        %v1388 = vpack.c.bf16 %v1324, %v1324
        %v1389 = vpack.c.bf16 %v1325, %v1325
        %v1390 = vpack.c.bf16 %v1326, %v1326
        %v1391 = vpack.c.bf16 %v1327, %v1327
        %v1392 = vpack.c.bf16 %v1328, %v1328
        %v1393 = vpack.c.bf16 %v1329, %v1329
        %v1394 = vpack.c.bf16 %v1330, %v1330
        %v1395 = vpack.c.bf16 %v1331, %v1331
        %v1396 = vpack.c.bf16 %v1332, %v1332
        %v1397 = vpack.c.bf16 %v1333, %v1333
        %v1398 = vpack.c.bf16 %v1334, %v1334
        %v1399 = vpack.c.bf16 %v1335, %v1335
        %v1400 = vld [vmem:[%s951] sm:$0xff]
        %v1401 = vld [vmem:[%s951 + $0x8] sm:$0xff]
        %v1402 = vld [vmem:[%s951 + $0x18] sm:$0xff]
        %v1403 = vld [vmem:[%s951 + $0x20] sm:$0xff]
        %v1404 = vld [vmem:[%s951 + $0x30] sm:$0xff]
        %v1405 = vld [vmem:[%s951 + $0x38] sm:$0xff]
        %v1406 = vld [vmem:[%s951 + $0x48] sm:$0xff]
        %v1407 = vld [vmem:[%s951 + $0x50] sm:$0xff]
        %v1408 = vld [vmem:[%s951 + $0x60] sm:$0xff]
        %v1409 = vld [vmem:[%s951 + $0x68] sm:$0xff]
        %v1410 = vld [vmem:[%s951 + $0x78] sm:$0xff]
        %v1411 = vld [vmem:[%s951 + $0x80] sm:$0xff]
        %v1412 = vld [vmem:[%s951 + $0x90] sm:$0xff]
        %v1413 = vld [vmem:[%s951 + $0x98] sm:$0xff]
        %v1414 = vld [vmem:[%s951 + $0xa8] sm:$0xff]
        %v1415 = vld [vmem:[%s951 + $0xb0] sm:$0xff]
        %v1416 = vld [vmem:[%s951 + $0xc0] sm:$0xff]
        %v1417 = vld [vmem:[%s951 + $0xc8] sm:$0xff]
        %v1418 = vld [vmem:[%s951 + $0xd8] sm:$0xff]
        %v1419 = vld [vmem:[%s951 + $0xe0] sm:$0xff]
        %v1420 = vld [vmem:[%s951 + $0xf0] sm:$0xff]
        %v1421 = vld [vmem:[%s951 + $0xf8] sm:$0xff]
        %v1422 = vld [vmem:[%s951 + $0x108] sm:$0xff]
        %v1423 = vld [vmem:[%s951 + $0x110] sm:$0xff]
        %v1424 = vld [vmem:[%s951 + $0x120] sm:$0xff]
        %v1425 = vld [vmem:[%s951 + $0x128] sm:$0xff]
        %v1426 = vld [vmem:[%s951 + $0x138] sm:$0xff]
        %v1427 = vld [vmem:[%s951 + $0x140] sm:$0xff]
        %v1428 = vld [vmem:[%s951 + $0x150] sm:$0xff]
        %v1429 = vld [vmem:[%s951 + $0x158] sm:$0xff]
        %v1430 = vld [vmem:[%s951 + $0x168] sm:$0xff]
        %v1431 = vld [vmem:[%s951 + $0x170] sm:$0xff]
        %v1432 = vld [vmem:[%s951 + $0x1b0] sm:$0xff]
        %v1433 = vld [vmem:[%s951 + $0x1b8] sm:$0xff]
        %v1434 = vld [vmem:[%s951 + $0x1c8] sm:$0xff]
        %v1435 = vld [vmem:[%s951 + $0x1d0] sm:$0xff]
        %v1436 = vld [vmem:[%s951 + $0x1e0] sm:$0xff]
        %v1437 = vld [vmem:[%s951 + $0x1e8] sm:$0xff]
        %v1438 = vld [vmem:[%s951 + $0x1f8] sm:$0xff]
        %v1439 = vld [vmem:[%s951 + $0x200] sm:$0xff]
        %v1440 = vld [vmem:[%s951 + $0x210] sm:$0xff]
        %v1441 = vld [vmem:[%s951 + $0x218] sm:$0xff]
        %v1442 = vld [vmem:[%s951 + $0x228] sm:$0xff]
        %v1443 = vld [vmem:[%s951 + $0x230] sm:$0xff]
        %v1444 = vld [vmem:[%s951 + $0x240] sm:$0xff]
        %v1445 = vld [vmem:[%s951 + $0x248] sm:$0xff]
        %v1446 = vld [vmem:[%s951 + $0x258] sm:$0xff]
        %v1447 = vld [vmem:[%s951 + $0x260] sm:$0xff]
        %v1448 = vld [vmem:[%s951 + $0x270] sm:$0xff]
        %v1449 = vld [vmem:[%s951 + $0x278] sm:$0xff]
        %v1450 = vld [vmem:[%s951 + $0x288] sm:$0xff]
        %v1451 = vld [vmem:[%s951 + $0x290] sm:$0xff]
        %v1452 = vld [vmem:[%s951 + $0x2a0] sm:$0xff]
        %v1453 = vld [vmem:[%s951 + $0x2a8] sm:$0xff]
        %v1454 = vld [vmem:[%s951 + $0x2b8] sm:$0xff]
        %v1455 = vld [vmem:[%s951 + $0x2c0] sm:$0xff]
        %v1456 = vld [vmem:[%s951 + $0x2d0] sm:$0xff]
        %v1457 = vld [vmem:[%s951 + $0x2d8] sm:$0xff]
        %v1458 = vld [vmem:[%s951 + $0x2e8] sm:$0xff]
        %v1459 = vld [vmem:[%s951 + $0x2f0] sm:$0xff]
        %v1460 = vld [vmem:[%s951 + $0x300] sm:$0xff]
        %v1461 = vld [vmem:[%s951 + $0x308] sm:$0xff]
        %v1462 = vld [vmem:[%s951 + $0x318] sm:$0xff]
        %v1463 = vld [vmem:[%s951 + $0x320] sm:$0xff]
        %v1464 = vpack.c.bf16 %v1400, %v1400
        %v1465 = vpack.c.bf16 %v1401, %v1401
        %v1466 = vpack.c.bf16 %v1402, %v1402
        %v1467 = vpack.c.bf16 %v1403, %v1403
        %v1468 = vpack.c.bf16 %v1404, %v1404
        %v1469 = vpack.c.bf16 %v1405, %v1405
        %v1470 = vpack.c.bf16 %v1406, %v1406
        %v1471 = vpack.c.bf16 %v1407, %v1407
        %v1472 = vpack.c.bf16 %v1408, %v1408
        %v1473 = vpack.c.bf16 %v1409, %v1409
        %v1474 = vpack.c.bf16 %v1410, %v1410
        %v1475 = vpack.c.bf16 %v1411, %v1411
        %v1476 = vpack.c.bf16 %v1412, %v1412
        %v1477 = vpack.c.bf16 %v1413, %v1413
        %v1478 = vpack.c.bf16 %v1414, %v1414
        %v1479 = vpack.c.bf16 %v1415, %v1415
        %v1480 = vpack.c.bf16 %v1416, %v1416
        %v1481 = vpack.c.bf16 %v1417, %v1417
        %v1482 = vpack.c.bf16 %v1418, %v1418
        %v1483 = vpack.c.bf16 %v1419, %v1419
        %v1484 = vpack.c.bf16 %v1420, %v1420
        %v1485 = vpack.c.bf16 %v1421, %v1421
        %v1486 = vpack.c.bf16 %v1422, %v1422
        %v1487 = vpack.c.bf16 %v1423, %v1423
        %v1488 = vpack.c.bf16 %v1424, %v1424
        %v1489 = vpack.c.bf16 %v1425, %v1425
        %v1490 = vpack.c.bf16 %v1426, %v1426
        %v1491 = vpack.c.bf16 %v1427, %v1427
        %v1492 = vpack.c.bf16 %v1428, %v1428
        %v1493 = vpack.c.bf16 %v1429, %v1429
        %v1494 = vpack.c.bf16 %v1430, %v1430
        %v1495 = vpack.c.bf16 %v1431, %v1431
        %v1496 = vpack.c.bf16 %v1432, %v1432
        %v1497 = vpack.c.bf16 %v1433, %v1433
        %v1498 = vpack.c.bf16 %v1434, %v1434
        %v1499 = vpack.c.bf16 %v1435, %v1435
        %v1500 = vpack.c.bf16 %v1436, %v1436
        %v1501 = vpack.c.bf16 %v1437, %v1437
        %v1502 = vpack.c.bf16 %v1438, %v1438
        %v1503 = vpack.c.bf16 %v1439, %v1439
        %v1504 = vpack.c.bf16 %v1440, %v1440
        %v1505 = vpack.c.bf16 %v1441, %v1441
        %v1506 = vpack.c.bf16 %v1442, %v1442
        %v1507 = vpack.c.bf16 %v1443, %v1443
        %v1508 = vpack.c.bf16 %v1444, %v1444
        %v1509 = vpack.c.bf16 %v1445, %v1445
        %v1510 = vpack.c.bf16 %v1446, %v1446
        %v1511 = vpack.c.bf16 %v1447, %v1447
        %v1512 = vpack.c.bf16 %v1448, %v1448
        %v1513 = vpack.c.bf16 %v1449, %v1449
        %v1514 = vpack.c.bf16 %v1450, %v1450
        %v1515 = vpack.c.bf16 %v1451, %v1451
        %v1516 = vpack.c.bf16 %v1452, %v1452
        %v1517 = vpack.c.bf16 %v1453, %v1453
        %v1518 = vpack.c.bf16 %v1454, %v1454
        %v1519 = vpack.c.bf16 %v1455, %v1455
        %v1520 = vpack.c.bf16 %v1456, %v1456
        %v1521 = vpack.c.bf16 %v1457, %v1457
        %v1522 = vpack.c.bf16 %v1458, %v1458
        %v1523 = vpack.c.bf16 %v1459, %v1459
        %v1524 = vpack.c.bf16 %v1460, %v1460
        %v1525 = vpack.c.bf16 %v1461, %v1461
        %v1526 = vpack.c.bf16 %v1462, %v1462
        %v1527 = vpack.c.bf16 %v1463, %v1463
        %v1528 = vld [vmem:[%s951 + $0x1] sm:$0xff]
        %v1529 = vld [vmem:[%s951 + $0x9] sm:$0xff]
        %v1530 = vld [vmem:[%s951 + $0x19] sm:$0xff]
        %v1531 = vld [vmem:[%s951 + $0x21] sm:$0xff]
        %v1532 = vld [vmem:[%s951 + $0x31] sm:$0xff]
        %v1533 = vld [vmem:[%s951 + $0x39] sm:$0xff]
        %v1534 = vld [vmem:[%s951 + $0x49] sm:$0xff]
        %v1535 = vld [vmem:[%s951 + $0x51] sm:$0xff]
        %v1536 = vld [vmem:[%s951 + $0x61] sm:$0xff]
        %v1537 = vld [vmem:[%s951 + $0x69] sm:$0xff]
        %v1538 = vld [vmem:[%s951 + $0x79] sm:$0xff]
        %v1539 = vld [vmem:[%s951 + $0x81] sm:$0xff]
        %v1540 = vld [vmem:[%s951 + $0x91] sm:$0xff]
        %v1541 = vld [vmem:[%s951 + $0x99] sm:$0xff]
        %v1542 = vld [vmem:[%s951 + $0xa9] sm:$0xff]
        %v1543 = vld [vmem:[%s951 + $0xb1] sm:$0xff]
        %v1544 = vld [vmem:[%s951 + $0xc1] sm:$0xff]
        %v1545 = vld [vmem:[%s951 + $0xc9] sm:$0xff]
        %v1546 = vld [vmem:[%s951 + $0xd9] sm:$0xff]
        %v1547 = vld [vmem:[%s951 + $0xe1] sm:$0xff]
        %v1548 = vld [vmem:[%s951 + $0xf1] sm:$0xff]
        %v1549 = vld [vmem:[%s951 + $0xf9] sm:$0xff]
        %v1550 = vld [vmem:[%s951 + $0x109] sm:$0xff]
        %v1551 = vld [vmem:[%s951 + $0x111] sm:$0xff]
        %v1552 = vld [vmem:[%s951 + $0x121] sm:$0xff]
        %v1553 = vld [vmem:[%s951 + $0x129] sm:$0xff]
        %v1554 = vld [vmem:[%s951 + $0x139] sm:$0xff]
        %v1555 = vld [vmem:[%s951 + $0x141] sm:$0xff]
        %v1556 = vld [vmem:[%s951 + $0x151] sm:$0xff]
        %v1557 = vld [vmem:[%s951 + $0x159] sm:$0xff]
        %v1558 = vld [vmem:[%s951 + $0x169] sm:$0xff]
        %v1559 = vld [vmem:[%s951 + $0x171] sm:$0xff]
        %v1560 = vld [vmem:[%s951 + $0x1b1] sm:$0xff]
        %v1561 = vld [vmem:[%s951 + $0x1b9] sm:$0xff]
        %v1562 = vld [vmem:[%s951 + $0x1c9] sm:$0xff]
        %v1563 = vld [vmem:[%s951 + $0x1d1] sm:$0xff]
        %v1564 = vld [vmem:[%s951 + $0x1e1] sm:$0xff]
        %v1565 = vld [vmem:[%s951 + $0x1e9] sm:$0xff]
        %v1566 = vld [vmem:[%s951 + $0x1f9] sm:$0xff]
        %v1567 = vld [vmem:[%s951 + $0x201] sm:$0xff]
        %v1568 = vld [vmem:[%s951 + $0x211] sm:$0xff]
        %v1569 = vld [vmem:[%s951 + $0x219] sm:$0xff]
        %v1570 = vld [vmem:[%s951 + $0x229] sm:$0xff]
        %v1571 = vld [vmem:[%s951 + $0x231] sm:$0xff]
        %v1572 = vld [vmem:[%s951 + $0x241] sm:$0xff]
        %v1573 = vld [vmem:[%s951 + $0x249] sm:$0xff]
        %v1574 = vld [vmem:[%s951 + $0x259] sm:$0xff]
        %v1575 = vld [vmem:[%s951 + $0x261] sm:$0xff]
        %v1576 = vld [vmem:[%s951 + $0x271] sm:$0xff]
        %v1577 = vld [vmem:[%s951 + $0x279] sm:$0xff]
        %v1578 = vld [vmem:[%s951 + $0x289] sm:$0xff]
        %v1579 = vld [vmem:[%s951 + $0x291] sm:$0xff]
        %v1580 = vld [vmem:[%s951 + $0x2a1] sm:$0xff]
        %v1581 = vld [vmem:[%s951 + $0x2a9] sm:$0xff]
        %v1582 = vld [vmem:[%s951 + $0x2b9] sm:$0xff]
        %v1583 = vld [vmem:[%s951 + $0x2c1] sm:$0xff]
        %v1584 = vld [vmem:[%s951 + $0x2d1] sm:$0xff]
        %v1585 = vld [vmem:[%s951 + $0x2d9] sm:$0xff]
        %v1586 = vld [vmem:[%s951 + $0x2e9] sm:$0xff]
        %v1587 = vld [vmem:[%s951 + $0x2f1] sm:$0xff]
        %v1588 = vld [vmem:[%s951 + $0x301] sm:$0xff]
        %v1589 = vld [vmem:[%s951 + $0x309] sm:$0xff]
        %v1590 = vld [vmem:[%s951 + $0x319] sm:$0xff]
        %v1591 = vld [vmem:[%s951 + $0x321] sm:$0xff]
        %v1592 = vpack.c.bf16 %v1528, %v1528
        %v1593 = vpack.c.bf16 %v1529, %v1529
        %v1594 = vpack.c.bf16 %v1530, %v1530
        %v1595 = vpack.c.bf16 %v1531, %v1531
        %v1596 = vpack.c.bf16 %v1532, %v1532
        %v1597 = vpack.c.bf16 %v1533, %v1533
        %v1598 = vpack.c.bf16 %v1534, %v1534
        %v1599 = vpack.c.bf16 %v1535, %v1535
        %v1600 = vpack.c.bf16 %v1536, %v1536
        %v1601 = vpack.c.bf16 %v1537, %v1537
        %v1602 = vpack.c.bf16 %v1538, %v1538
        %v1603 = vpack.c.bf16 %v1539, %v1539
        %v1604 = vpack.c.bf16 %v1540, %v1540
        %v1605 = vpack.c.bf16 %v1541, %v1541
        %v1606 = vpack.c.bf16 %v1542, %v1542
        %v1607 = vpack.c.bf16 %v1543, %v1543
        %v1608 = vpack.c.bf16 %v1544, %v1544
        %v1609 = vpack.c.bf16 %v1545, %v1545
        %v1610 = vpack.c.bf16 %v1546, %v1546
        %v1611 = vpack.c.bf16 %v1547, %v1547
        %v1612 = vpack.c.bf16 %v1548, %v1548
        %v1613 = vpack.c.bf16 %v1549, %v1549
        %v1614 = vpack.c.bf16 %v1550, %v1550
        %v1615 = vpack.c.bf16 %v1551, %v1551
        %v1616 = vpack.c.bf16 %v1552, %v1552
        %v1617 = vpack.c.bf16 %v1553, %v1553
        %v1618 = vpack.c.bf16 %v1554, %v1554
        %v1619 = vpack.c.bf16 %v1555, %v1555
        %v1620 = vpack.c.bf16 %v1556, %v1556
        %v1621 = vpack.c.bf16 %v1557, %v1557
        %v1622 = vpack.c.bf16 %v1558, %v1558
        %v1623 = vpack.c.bf16 %v1559, %v1559
        %v1624 = vpack.c.bf16 %v1560, %v1560
        %v1625 = vpack.c.bf16 %v1561, %v1561
        %v1626 = vpack.c.bf16 %v1562, %v1562
        %v1627 = vpack.c.bf16 %v1563, %v1563
        %v1628 = vpack.c.bf16 %v1564, %v1564
        %v1629 = vpack.c.bf16 %v1565, %v1565
        %v1630 = vpack.c.bf16 %v1566, %v1566
        %v1631 = vpack.c.bf16 %v1567, %v1567
        %v1632 = vpack.c.bf16 %v1568, %v1568
        %v1633 = vpack.c.bf16 %v1569, %v1569
        %v1634 = vpack.c.bf16 %v1570, %v1570
        %v1635 = vpack.c.bf16 %v1571, %v1571
        %v1636 = vpack.c.bf16 %v1572, %v1572
        %v1637 = vpack.c.bf16 %v1573, %v1573
        %v1638 = vpack.c.bf16 %v1574, %v1574
        %v1639 = vpack.c.bf16 %v1575, %v1575
        %v1640 = vpack.c.bf16 %v1576, %v1576
        %v1641 = vpack.c.bf16 %v1577, %v1577
        %v1642 = vpack.c.bf16 %v1578, %v1578
        %v1643 = vpack.c.bf16 %v1579, %v1579
        %v1644 = vpack.c.bf16 %v1580, %v1580
        %v1645 = vpack.c.bf16 %v1581, %v1581
        %v1646 = vpack.c.bf16 %v1582, %v1582
        %v1647 = vpack.c.bf16 %v1583, %v1583
        %v1648 = vpack.c.bf16 %v1584, %v1584
        %v1649 = vpack.c.bf16 %v1585, %v1585
        %v1650 = vpack.c.bf16 %v1586, %v1586
        %v1651 = vpack.c.bf16 %v1587, %v1587
        %v1652 = vpack.c.bf16 %v1588, %v1588
        %v1653 = vpack.c.bf16 %v1589, %v1589
        %v1654 = vpack.c.bf16 %v1590, %v1590
        %v1655 = vpack.c.bf16 %v1591, %v1591
        %v1656 = vld [vmem:[%s951 + $0x2] sm:$0xff]
        %v1657 = vld [vmem:[%s951 + $0xa] sm:$0xff]
        %v1658 = vld [vmem:[%s951 + $0x1a] sm:$0xff]
        %v1659 = vld [vmem:[%s951 + $0x22] sm:$0xff]
        %v1660 = vld [vmem:[%s951 + $0x32] sm:$0xff]
        %v1661 = vld [vmem:[%s951 + $0x3a] sm:$0xff]
        %v1662 = vld [vmem:[%s951 + $0x4a] sm:$0xff]
        %v1663 = vld [vmem:[%s951 + $0x52] sm:$0xff]
        %v1664 = vld [vmem:[%s951 + $0x62] sm:$0xff]
        %v1665 = vld [vmem:[%s951 + $0x6a] sm:$0xff]
        %v1666 = vld [vmem:[%s951 + $0x7a] sm:$0xff]
        %v1667 = vld [vmem:[%s951 + $0x82] sm:$0xff]
        %v1668 = vld [vmem:[%s951 + $0x92] sm:$0xff]
        %v1669 = vld [vmem:[%s951 + $0x9a] sm:$0xff]
        %v1670 = vld [vmem:[%s951 + $0xaa] sm:$0xff]
        %v1671 = vld [vmem:[%s951 + $0xb2] sm:$0xff]
        %v1672 = vld [vmem:[%s951 + $0xc2] sm:$0xff]
        %v1673 = vld [vmem:[%s951 + $0xca] sm:$0xff]
        %v1674 = vld [vmem:[%s951 + $0xda] sm:$0xff]
        %v1675 = vld [vmem:[%s951 + $0xe2] sm:$0xff]
        %v1676 = vld [vmem:[%s951 + $0xf2] sm:$0xff]
        %v1677 = vld [vmem:[%s951 + $0xfa] sm:$0xff]
        %v1678 = vld [vmem:[%s951 + $0x10a] sm:$0xff]
        %v1679 = vld [vmem:[%s951 + $0x112] sm:$0xff]
        %v1680 = vld [vmem:[%s951 + $0x122] sm:$0xff]
        %v1681 = vld [vmem:[%s951 + $0x12a] sm:$0xff]
        %v1682 = vld [vmem:[%s951 + $0x13a] sm:$0xff]
        %v1683 = vld [vmem:[%s951 + $0x142] sm:$0xff]
        %v1684 = vld [vmem:[%s951 + $0x152] sm:$0xff]
        %v1685 = vld [vmem:[%s951 + $0x15a] sm:$0xff]
        %v1686 = vld [vmem:[%s951 + $0x16a] sm:$0xff]
        %v1687 = vld [vmem:[%s951 + $0x172] sm:$0xff]
        %v1688 = vld [vmem:[%s951 + $0x1b2] sm:$0xff]
        %v1689 = vld [vmem:[%s951 + $0x1ba] sm:$0xff]
        %v1690 = vld [vmem:[%s951 + $0x1ca] sm:$0xff]
        %v1691 = vld [vmem:[%s951 + $0x1d2] sm:$0xff]
        %v1692 = vld [vmem:[%s951 + $0x1e2] sm:$0xff]
        %v1693 = vld [vmem:[%s951 + $0x1ea] sm:$0xff]
        %v1694 = vld [vmem:[%s951 + $0x1fa] sm:$0xff]
        %v1695 = vld [vmem:[%s951 + $0x202] sm:$0xff]
        %v1696 = vld [vmem:[%s951 + $0x212] sm:$0xff]
        %v1697 = vld [vmem:[%s951 + $0x21a] sm:$0xff]
        %v1698 = vld [vmem:[%s951 + $0x22a] sm:$0xff]
        %v1699 = vld [vmem:[%s951 + $0x232] sm:$0xff]
        %v1700 = vld [vmem:[%s951 + $0x242] sm:$0xff]
        %v1701 = vld [vmem:[%s951 + $0x24a] sm:$0xff]
        %v1702 = vld [vmem:[%s951 + $0x25a] sm:$0xff]
        %v1703 = vld [vmem:[%s951 + $0x262] sm:$0xff]
        %v1704 = vld [vmem:[%s951 + $0x272] sm:$0xff]
        %v1705 = vld [vmem:[%s951 + $0x27a] sm:$0xff]
        %v1706 = vld [vmem:[%s951 + $0x28a] sm:$0xff]
        %v1707 = vld [vmem:[%s951 + $0x292] sm:$0xff]
        %v1708 = vld [vmem:[%s951 + $0x2a2] sm:$0xff]
        %v1709 = vld [vmem:[%s951 + $0x2aa] sm:$0xff]
        %v1710 = vld [vmem:[%s951 + $0x2ba] sm:$0xff]
        %v1711 = vld [vmem:[%s951 + $0x2c2] sm:$0xff]
        %v1712 = vld [vmem:[%s951 + $0x2d2] sm:$0xff]
        %v1713 = vld [vmem:[%s951 + $0x2da] sm:$0xff]
        %v1714 = vld [vmem:[%s951 + $0x2ea] sm:$0xff]
        %v1715 = vld [vmem:[%s951 + $0x2f2] sm:$0xff]
        %v1716 = vld [vmem:[%s951 + $0x302] sm:$0xff]
        %v1717 = vld [vmem:[%s951 + $0x30a] sm:$0xff]
        %v1718 = vld [vmem:[%s951 + $0x31a] sm:$0xff]
        %v1719 = vld [vmem:[%s951 + $0x322] sm:$0xff]
        %v1720 = vpack.c.bf16 %v1656, %v1656
        %v1721 = vpack.c.bf16 %v1657, %v1657
        %v1722 = vpack.c.bf16 %v1658, %v1658
        %v1723 = vpack.c.bf16 %v1659, %v1659
        %v1724 = vpack.c.bf16 %v1660, %v1660
        %v1725 = vpack.c.bf16 %v1661, %v1661
        %v1726 = vpack.c.bf16 %v1662, %v1662
        %v1727 = vpack.c.bf16 %v1663, %v1663
        %v1728 = vpack.c.bf16 %v1664, %v1664
        %v1729 = vpack.c.bf16 %v1665, %v1665
        %v1730 = vpack.c.bf16 %v1666, %v1666
        %v1731 = vpack.c.bf16 %v1667, %v1667
        %v1732 = vpack.c.bf16 %v1668, %v1668
        %v1733 = vpack.c.bf16 %v1669, %v1669
        %v1734 = vpack.c.bf16 %v1670, %v1670
        %v1735 = vpack.c.bf16 %v1671, %v1671
        %v1736 = vpack.c.bf16 %v1672, %v1672
        %v1737 = vpack.c.bf16 %v1673, %v1673
        %v1738 = vpack.c.bf16 %v1674, %v1674
        %v1739 = vpack.c.bf16 %v1675, %v1675
        %v1740 = vpack.c.bf16 %v1676, %v1676
        %v1741 = vpack.c.bf16 %v1677, %v1677
        %v1742 = vpack.c.bf16 %v1678, %v1678
        %v1743 = vpack.c.bf16 %v1679, %v1679
        %v1744 = vpack.c.bf16 %v1680, %v1680
        %v1745 = vpack.c.bf16 %v1681, %v1681
        %v1746 = vpack.c.bf16 %v1682, %v1682
        %v1747 = vpack.c.bf16 %v1683, %v1683
        %v1748 = vpack.c.bf16 %v1684, %v1684
        %v1749 = vpack.c.bf16 %v1685, %v1685
        %v1750 = vpack.c.bf16 %v1686, %v1686
        %v1751 = vpack.c.bf16 %v1687, %v1687
        %v1752 = vpack.c.bf16 %v1688, %v1688
        %v1753 = vpack.c.bf16 %v1689, %v1689
        %v1754 = vpack.c.bf16 %v1690, %v1690
        %v1755 = vpack.c.bf16 %v1691, %v1691
        %v1756 = vpack.c.bf16 %v1692, %v1692
        %v1757 = vpack.c.bf16 %v1693, %v1693
        %v1758 = vpack.c.bf16 %v1694, %v1694
        %v1759 = vpack.c.bf16 %v1695, %v1695
        %v1760 = vpack.c.bf16 %v1696, %v1696
        %v1761 = vpack.c.bf16 %v1697, %v1697
        %v1762 = vpack.c.bf16 %v1698, %v1698
        %v1763 = vpack.c.bf16 %v1699, %v1699
        %v1764 = vpack.c.bf16 %v1700, %v1700
        %v1765 = vpack.c.bf16 %v1701, %v1701
        %v1766 = vpack.c.bf16 %v1702, %v1702
        %v1767 = vpack.c.bf16 %v1703, %v1703
        %v1768 = vpack.c.bf16 %v1704, %v1704
        %v1769 = vpack.c.bf16 %v1705, %v1705
        %v1770 = vpack.c.bf16 %v1706, %v1706
        %v1771 = vpack.c.bf16 %v1707, %v1707
        %v1772 = vpack.c.bf16 %v1708, %v1708
        %v1773 = vpack.c.bf16 %v1709, %v1709
        %v1774 = vpack.c.bf16 %v1710, %v1710
        %v1775 = vpack.c.bf16 %v1711, %v1711
        %v1776 = vpack.c.bf16 %v1712, %v1712
        %v1777 = vpack.c.bf16 %v1713, %v1713
        %v1778 = vpack.c.bf16 %v1714, %v1714
        %v1779 = vpack.c.bf16 %v1715, %v1715
        %v1780 = vpack.c.bf16 %v1716, %v1716
        %v1781 = vpack.c.bf16 %v1717, %v1717
        %v1782 = vpack.c.bf16 %v1718, %v1718
        %v1783 = vpack.c.bf16 %v1719, %v1719
        %s1784 = scalar_lea.vmem [#allocation2], 48
        %v1785 = vld [vmem:[%s1784] sm:$0xff]
        %v1786 = vld [vmem:[%s1784 + $0x8] sm:$0xff]
        %v1787 = vld [vmem:[%s1784 + $0x18] sm:$0xff]
        %v1788 = vld [vmem:[%s1784 + $0x20] sm:$0xff]
        %v1789 = vld [vmem:[%s1784 + $0x30] sm:$0xff]
        %v1790 = vld [vmem:[%s1784 + $0x38] sm:$0xff]
        %v1791 = vld [vmem:[%s1784 + $0x48] sm:$0xff]
        %v1792 = vld [vmem:[%s1784 + $0x50] sm:$0xff]
        %v1793 = vld [vmem:[%s1784 + $0x60] sm:$0xff]
        %v1794 = vld [vmem:[%s1784 + $0x68] sm:$0xff]
        %v1795 = vld [vmem:[%s1784 + $0x78] sm:$0xff]
        %v1796 = vld [vmem:[%s1784 + $0x80] sm:$0xff]
        %v1797 = vld [vmem:[%s1784 + $0x90] sm:$0xff]
        %v1798 = vld [vmem:[%s1784 + $0x98] sm:$0xff]
        %v1799 = vld [vmem:[%s1784 + $0xa8] sm:$0xff]
        %v1800 = vld [vmem:[%s1784 + $0xb0] sm:$0xff]
        %v1801 = vld [vmem:[%s1784 + $0xc0] sm:$0xff]
        %v1802 = vld [vmem:[%s1784 + $0xc8] sm:$0xff]
        %v1803 = vld [vmem:[%s1784 + $0xd8] sm:$0xff]
        %v1804 = vld [vmem:[%s1784 + $0xe0] sm:$0xff]
        %v1805 = vld [vmem:[%s1784 + $0xf0] sm:$0xff]
        %v1806 = vld [vmem:[%s1784 + $0xf8] sm:$0xff]
        %v1807 = vld [vmem:[%s1784 + $0x108] sm:$0xff]
        %v1808 = vld [vmem:[%s1784 + $0x110] sm:$0xff]
        %v1809 = vld [vmem:[%s1784 + $0x120] sm:$0xff]
        %v1810 = vld [vmem:[%s1784 + $0x128] sm:$0xff]
        %v1811 = vld [vmem:[%s1784 + $0x138] sm:$0xff]
        %v1812 = vld [vmem:[%s1784 + $0x140] sm:$0xff]
        %v1813 = vld [vmem:[%s1784 + $0x150] sm:$0xff]
        %v1814 = vld [vmem:[%s1784 + $0x158] sm:$0xff]
        %v1815 = vld [vmem:[%s1784 + $0x168] sm:$0xff]
        %v1816 = vld [vmem:[%s1784 + $0x170] sm:$0xff]
        %v1817 = vld [vmem:[%s1784 + $0x1b0] sm:$0xff]
        %v1818 = vld [vmem:[%s1784 + $0x1b8] sm:$0xff]
        %v1819 = vld [vmem:[%s1784 + $0x1c8] sm:$0xff]
        %v1820 = vld [vmem:[%s1784 + $0x1d0] sm:$0xff]
        %v1821 = vld [vmem:[%s1784 + $0x1e0] sm:$0xff]
        %v1822 = vld [vmem:[%s1784 + $0x1e8] sm:$0xff]
        %v1823 = vld [vmem:[%s1784 + $0x1f8] sm:$0xff]
        %v1824 = vld [vmem:[%s1784 + $0x200] sm:$0xff]
        %v1825 = vld [vmem:[%s1784 + $0x210] sm:$0xff]
        %v1826 = vld [vmem:[%s1784 + $0x218] sm:$0xff]
        %v1827 = vld [vmem:[%s1784 + $0x228] sm:$0xff]
        %v1828 = vld [vmem:[%s1784 + $0x230] sm:$0xff]
        %v1829 = vld [vmem:[%s1784 + $0x240] sm:$0xff]
        %v1830 = vld [vmem:[%s1784 + $0x248] sm:$0xff]
        %v1831 = vld [vmem:[%s1784 + $0x258] sm:$0xff]
        %v1832 = vld [vmem:[%s1784 + $0x260] sm:$0xff]
        %v1833 = vld [vmem:[%s1784 + $0x270] sm:$0xff]
        %v1834 = vld [vmem:[%s1784 + $0x278] sm:$0xff]
        %v1835 = vld [vmem:[%s1784 + $0x288] sm:$0xff]
        %v1836 = vld [vmem:[%s1784 + $0x290] sm:$0xff]
        %v1837 = vld [vmem:[%s1784 + $0x2a0] sm:$0xff]
        %v1838 = vld [vmem:[%s1784 + $0x2a8] sm:$0xff]
        %v1839 = vld [vmem:[%s1784 + $0x2b8] sm:$0xff]
        %v1840 = vld [vmem:[%s1784 + $0x2c0] sm:$0xff]
        %v1841 = vld [vmem:[%s1784 + $0x2d0] sm:$0xff]
        %v1842 = vld [vmem:[%s1784 + $0x2d8] sm:$0xff]
        %v1843 = vld [vmem:[%s1784 + $0x2e8] sm:$0xff]
        %v1844 = vld [vmem:[%s1784 + $0x2f0] sm:$0xff]
        %v1845 = vld [vmem:[%s1784 + $0x300] sm:$0xff]
        %v1846 = vld [vmem:[%s1784 + $0x308] sm:$0xff]
        %v1847 = vld [vmem:[%s1784 + $0x318] sm:$0xff]
        %v1848 = vld [vmem:[%s1784 + $0x320] sm:$0xff]
        %v1849 = vpack.c.bf16 %v1785, %v1785
        %v1850 = vpack.c.bf16 %v1786, %v1786
        %v1851 = vpack.c.bf16 %v1787, %v1787
        %v1852 = vpack.c.bf16 %v1788, %v1788
        %v1853 = vpack.c.bf16 %v1789, %v1789
        %v1854 = vpack.c.bf16 %v1790, %v1790
        %v1855 = vpack.c.bf16 %v1791, %v1791
        %v1856 = vpack.c.bf16 %v1792, %v1792
        %v1857 = vpack.c.bf16 %v1793, %v1793
        %v1858 = vpack.c.bf16 %v1794, %v1794
        %v1859 = vpack.c.bf16 %v1795, %v1795
        %v1860 = vpack.c.bf16 %v1796, %v1796
        %v1861 = vpack.c.bf16 %v1797, %v1797
        %v1862 = vpack.c.bf16 %v1798, %v1798
        %v1863 = vpack.c.bf16 %v1799, %v1799
        %v1864 = vpack.c.bf16 %v1800, %v1800
        %v1865 = vpack.c.bf16 %v1801, %v1801
        %v1866 = vpack.c.bf16 %v1802, %v1802
        %v1867 = vpack.c.bf16 %v1803, %v1803
        %v1868 = vpack.c.bf16 %v1804, %v1804
        %v1869 = vpack.c.bf16 %v1805, %v1805
        %v1870 = vpack.c.bf16 %v1806, %v1806
        %v1871 = vpack.c.bf16 %v1807, %v1807
        %v1872 = vpack.c.bf16 %v1808, %v1808
        %v1873 = vpack.c.bf16 %v1809, %v1809
        %v1874 = vpack.c.bf16 %v1810, %v1810
        %v1875 = vpack.c.bf16 %v1811, %v1811
        %v1876 = vpack.c.bf16 %v1812, %v1812
        %v1877 = vpack.c.bf16 %v1813, %v1813
        %v1878 = vpack.c.bf16 %v1814, %v1814
        %v1879 = vpack.c.bf16 %v1815, %v1815
        %v1880 = vpack.c.bf16 %v1816, %v1816
        %v1881 = vpack.c.bf16 %v1817, %v1817
        %v1882 = vpack.c.bf16 %v1818, %v1818
        %v1883 = vpack.c.bf16 %v1819, %v1819
        %v1884 = vpack.c.bf16 %v1820, %v1820
        %v1885 = vpack.c.bf16 %v1821, %v1821
        %v1886 = vpack.c.bf16 %v1822, %v1822
        %v1887 = vpack.c.bf16 %v1823, %v1823
        %v1888 = vpack.c.bf16 %v1824, %v1824
        %v1889 = vpack.c.bf16 %v1825, %v1825
        %v1890 = vpack.c.bf16 %v1826, %v1826
        %v1891 = vpack.c.bf16 %v1827, %v1827
        %v1892 = vpack.c.bf16 %v1828, %v1828
        %v1893 = vpack.c.bf16 %v1829, %v1829
        %v1894 = vpack.c.bf16 %v1830, %v1830
        %v1895 = vpack.c.bf16 %v1831, %v1831
        %v1896 = vpack.c.bf16 %v1832, %v1832
        %v1897 = vpack.c.bf16 %v1833, %v1833
        %v1898 = vpack.c.bf16 %v1834, %v1834
        %v1899 = vpack.c.bf16 %v1835, %v1835
        %v1900 = vpack.c.bf16 %v1836, %v1836
        %v1901 = vpack.c.bf16 %v1837, %v1837
        %v1902 = vpack.c.bf16 %v1838, %v1838
        %v1903 = vpack.c.bf16 %v1839, %v1839
        %v1904 = vpack.c.bf16 %v1840, %v1840
        %v1905 = vpack.c.bf16 %v1841, %v1841
        %v1906 = vpack.c.bf16 %v1842, %v1842
        %v1907 = vpack.c.bf16 %v1843, %v1843
        %v1908 = vpack.c.bf16 %v1844, %v1844
        %v1909 = vpack.c.bf16 %v1845, %v1845
        %v1910 = vpack.c.bf16 %v1846, %v1846
        %v1911 = vpack.c.bf16 %v1847, %v1847
        %v1912 = vpack.c.bf16 %v1848, %v1848
        %v1913 = vld [vmem:[%s1784 + $0x1] sm:$0xff]
        %v1914 = vld [vmem:[%s1784 + $0x9] sm:$0xff]
        %v1915 = vld [vmem:[%s1784 + $0x19] sm:$0xff]
        %v1916 = vld [vmem:[%s1784 + $0x21] sm:$0xff]
        %v1917 = vld [vmem:[%s1784 + $0x31] sm:$0xff]
        %v1918 = vld [vmem:[%s1784 + $0x39] sm:$0xff]
        %v1919 = vld [vmem:[%s1784 + $0x49] sm:$0xff]
        %v1920 = vld [vmem:[%s1784 + $0x51] sm:$0xff]
        %v1921 = vld [vmem:[%s1784 + $0x61] sm:$0xff]
        %v1922 = vld [vmem:[%s1784 + $0x69] sm:$0xff]
        %v1923 = vld [vmem:[%s1784 + $0x79] sm:$0xff]
        %v1924 = vld [vmem:[%s1784 + $0x81] sm:$0xff]
        %v1925 = vld [vmem:[%s1784 + $0x91] sm:$0xff]
        %v1926 = vld [vmem:[%s1784 + $0x99] sm:$0xff]
        %v1927 = vld [vmem:[%s1784 + $0xa9] sm:$0xff]
        %v1928 = vld [vmem:[%s1784 + $0xb1] sm:$0xff]
        %v1929 = vld [vmem:[%s1784 + $0xc1] sm:$0xff]
        %v1930 = vld [vmem:[%s1784 + $0xc9] sm:$0xff]
        %v1931 = vld [vmem:[%s1784 + $0xd9] sm:$0xff]
        %v1932 = vld [vmem:[%s1784 + $0xe1] sm:$0xff]
        %v1933 = vld [vmem:[%s1784 + $0xf1] sm:$0xff]
        %v1934 = vld [vmem:[%s1784 + $0xf9] sm:$0xff]
        %v1935 = vld [vmem:[%s1784 + $0x109] sm:$0xff]
        %v1936 = vld [vmem:[%s1784 + $0x111] sm:$0xff]
        %v1937 = vld [vmem:[%s1784 + $0x121] sm:$0xff]
        %v1938 = vld [vmem:[%s1784 + $0x129] sm:$0xff]
        %v1939 = vld [vmem:[%s1784 + $0x139] sm:$0xff]
        %v1940 = vld [vmem:[%s1784 + $0x141] sm:$0xff]
        %v1941 = vld [vmem:[%s1784 + $0x151] sm:$0xff]
        %v1942 = vld [vmem:[%s1784 + $0x159] sm:$0xff]
        %v1943 = vld [vmem:[%s1784 + $0x169] sm:$0xff]
        %v1944 = vld [vmem:[%s1784 + $0x171] sm:$0xff]
        %v1945 = vld [vmem:[%s1784 + $0x1b1] sm:$0xff]
        %v1946 = vld [vmem:[%s1784 + $0x1b9] sm:$0xff]
        %v1947 = vld [vmem:[%s1784 + $0x1c9] sm:$0xff]
        %v1948 = vld [vmem:[%s1784 + $0x1d1] sm:$0xff]
        %v1949 = vld [vmem:[%s1784 + $0x1e1] sm:$0xff]
        %v1950 = vld [vmem:[%s1784 + $0x1e9] sm:$0xff]
        %v1951 = vld [vmem:[%s1784 + $0x1f9] sm:$0xff]
        %v1952 = vld [vmem:[%s1784 + $0x201] sm:$0xff]
        %v1953 = vld [vmem:[%s1784 + $0x211] sm:$0xff]
        %v1954 = vld [vmem:[%s1784 + $0x219] sm:$0xff]
        %v1955 = vld [vmem:[%s1784 + $0x229] sm:$0xff]
        %v1956 = vld [vmem:[%s1784 + $0x231] sm:$0xff]
        %v1957 = vld [vmem:[%s1784 + $0x241] sm:$0xff]
        %v1958 = vld [vmem:[%s1784 + $0x249] sm:$0xff]
        %v1959 = vld [vmem:[%s1784 + $0x259] sm:$0xff]
        %v1960 = vld [vmem:[%s1784 + $0x261] sm:$0xff]
        %v1961 = vld [vmem:[%s1784 + $0x271] sm:$0xff]
        %v1962 = vld [vmem:[%s1784 + $0x279] sm:$0xff]
        %v1963 = vld [vmem:[%s1784 + $0x289] sm:$0xff]
        %v1964 = vld [vmem:[%s1784 + $0x291] sm:$0xff]
        %v1965 = vld [vmem:[%s1784 + $0x2a1] sm:$0xff]
        %v1966 = vld [vmem:[%s1784 + $0x2a9] sm:$0xff]
        %v1967 = vld [vmem:[%s1784 + $0x2b9] sm:$0xff]
        %v1968 = vld [vmem:[%s1784 + $0x2c1] sm:$0xff]
        %v1969 = vld [vmem:[%s1784 + $0x2d1] sm:$0xff]
        %v1970 = vld [vmem:[%s1784 + $0x2d9] sm:$0xff]
        %v1971 = vld [vmem:[%s1784 + $0x2e9] sm:$0xff]
        %v1972 = vld [vmem:[%s1784 + $0x2f1] sm:$0xff]
        %v1973 = vld [vmem:[%s1784 + $0x301] sm:$0xff]
        %v1974 = vld [vmem:[%s1784 + $0x309] sm:$0xff]
        %v1975 = vld [vmem:[%s1784 + $0x319] sm:$0xff]
        %v1976 = vld [vmem:[%s1784 + $0x321] sm:$0xff]
        %v1977 = vpack.c.bf16 %v1913, %v1913
        %v1978 = vpack.c.bf16 %v1914, %v1914
        %v1979 = vpack.c.bf16 %v1915, %v1915
        %v1980 = vpack.c.bf16 %v1916, %v1916
        %v1981 = vpack.c.bf16 %v1917, %v1917
        %v1982 = vpack.c.bf16 %v1918, %v1918
        %v1983 = vpack.c.bf16 %v1919, %v1919
        %v1984 = vpack.c.bf16 %v1920, %v1920
        %v1985 = vpack.c.bf16 %v1921, %v1921
        %v1986 = vpack.c.bf16 %v1922, %v1922
        %v1987 = vpack.c.bf16 %v1923, %v1923
        %v1988 = vpack.c.bf16 %v1924, %v1924
        %v1989 = vpack.c.bf16 %v1925, %v1925
        %v1990 = vpack.c.bf16 %v1926, %v1926
        %v1991 = vpack.c.bf16 %v1927, %v1927
        %v1992 = vpack.c.bf16 %v1928, %v1928
        %v1993 = vpack.c.bf16 %v1929, %v1929
        %v1994 = vpack.c.bf16 %v1930, %v1930
        %v1995 = vpack.c.bf16 %v1931, %v1931
        %v1996 = vpack.c.bf16 %v1932, %v1932
        %v1997 = vpack.c.bf16 %v1933, %v1933
        %v1998 = vpack.c.bf16 %v1934, %v1934
        %v1999 = vpack.c.bf16 %v1935, %v1935
        %v2000 = vpack.c.bf16 %v1936, %v1936
        %v2001 = vpack.c.bf16 %v1937, %v1937
        %v2002 = vpack.c.bf16 %v1938, %v1938
        %v2003 = vpack.c.bf16 %v1939, %v1939
        %v2004 = vpack.c.bf16 %v1940, %v1940
        %v2005 = vpack.c.bf16 %v1941, %v1941
        %v2006 = vpack.c.bf16 %v1942, %v1942
        %v2007 = vpack.c.bf16 %v1943, %v1943
        %v2008 = vpack.c.bf16 %v1944, %v1944
        %v2009 = vpack.c.bf16 %v1945, %v1945
        %v2010 = vpack.c.bf16 %v1946, %v1946
        %v2011 = vpack.c.bf16 %v1947, %v1947
        %v2012 = vpack.c.bf16 %v1948, %v1948
        %v2013 = vpack.c.bf16 %v1949, %v1949
        %v2014 = vpack.c.bf16 %v1950, %v1950
        %v2015 = vpack.c.bf16 %v1951, %v1951
        %v2016 = vpack.c.bf16 %v1952, %v1952
        %v2017 = vpack.c.bf16 %v1953, %v1953
        %v2018 = vpack.c.bf16 %v1954, %v1954
        %v2019 = vpack.c.bf16 %v1955, %v1955
        %v2020 = vpack.c.bf16 %v1956, %v1956
        %v2021 = vpack.c.bf16 %v1957, %v1957
        %v2022 = vpack.c.bf16 %v1958, %v1958
        %v2023 = vpack.c.bf16 %v1959, %v1959
        %v2024 = vpack.c.bf16 %v1960, %v1960
        %v2025 = vpack.c.bf16 %v1961, %v1961
        %v2026 = vpack.c.bf16 %v1962, %v1962
        %v2027 = vpack.c.bf16 %v1963, %v1963
        %v2028 = vpack.c.bf16 %v1964, %v1964
        %v2029 = vpack.c.bf16 %v1965, %v1965
        %v2030 = vpack.c.bf16 %v1966, %v1966
        %v2031 = vpack.c.bf16 %v1967, %v1967
        %v2032 = vpack.c.bf16 %v1968, %v1968
        %v2033 = vpack.c.bf16 %v1969, %v1969
        %v2034 = vpack.c.bf16 %v1970, %v1970
        %v2035 = vpack.c.bf16 %v1971, %v1971
        %v2036 = vpack.c.bf16 %v1972, %v1972
        %v2037 = vpack.c.bf16 %v1973, %v1973
        %v2038 = vpack.c.bf16 %v1974, %v1974
        %v2039 = vpack.c.bf16 %v1975, %v1975
        %v2040 = vpack.c.bf16 %v1976, %v1976
        %v2041 = vld [vmem:[%s1784 + $0x2] sm:$0xff]
        %v2042 = vld [vmem:[%s1784 + $0xa] sm:$0xff]
        %v2043 = vld [vmem:[%s1784 + $0x1a] sm:$0xff]
        %v2044 = vld [vmem:[%s1784 + $0x22] sm:$0xff]
        %v2045 = vld [vmem:[%s1784 + $0x32] sm:$0xff]
        %v2046 = vld [vmem:[%s1784 + $0x3a] sm:$0xff]
        %v2047 = vld [vmem:[%s1784 + $0x4a] sm:$0xff]
        %v2048 = vld [vmem:[%s1784 + $0x52] sm:$0xff]
        %v2049 = vld [vmem:[%s1784 + $0x62] sm:$0xff]
        %v2050 = vld [vmem:[%s1784 + $0x6a] sm:$0xff]
        %v2051 = vld [vmem:[%s1784 + $0x7a] sm:$0xff]
        %v2052 = vld [vmem:[%s1784 + $0x82] sm:$0xff]
        %v2053 = vld [vmem:[%s1784 + $0x92] sm:$0xff]
        %v2054 = vld [vmem:[%s1784 + $0x9a] sm:$0xff]
        %v2055 = vld [vmem:[%s1784 + $0xaa] sm:$0xff]
        %v2056 = vld [vmem:[%s1784 + $0xb2] sm:$0xff]
        %v2057 = vld [vmem:[%s1784 + $0xc2] sm:$0xff]
        %v2058 = vld [vmem:[%s1784 + $0xca] sm:$0xff]
        %v2059 = vld [vmem:[%s1784 + $0xda] sm:$0xff]
        %v2060 = vld [vmem:[%s1784 + $0xe2] sm:$0xff]
        %v2061 = vld [vmem:[%s1784 + $0xf2] sm:$0xff]
        %v2062 = vld [vmem:[%s1784 + $0xfa] sm:$0xff]
        %v2063 = vld [vmem:[%s1784 + $0x10a] sm:$0xff]
        %v2064 = vld [vmem:[%s1784 + $0x112] sm:$0xff]
        %v2065 = vld [vmem:[%s1784 + $0x122] sm:$0xff]
        %v2066 = vld [vmem:[%s1784 + $0x12a] sm:$0xff]
        %v2067 = vld [vmem:[%s1784 + $0x13a] sm:$0xff]
        %v2068 = vld [vmem:[%s1784 + $0x142] sm:$0xff]
        %v2069 = vld [vmem:[%s1784 + $0x152] sm:$0xff]
        %v2070 = vld [vmem:[%s1784 + $0x15a] sm:$0xff]
        %v2071 = vld [vmem:[%s1784 + $0x16a] sm:$0xff]
        %v2072 = vld [vmem:[%s1784 + $0x172] sm:$0xff]
        %v2073 = vld [vmem:[%s1784 + $0x1b2] sm:$0xff]
        %v2074 = vld [vmem:[%s1784 + $0x1ba] sm:$0xff]
        %v2075 = vld [vmem:[%s1784 + $0x1ca] sm:$0xff]
        %v2076 = vld [vmem:[%s1784 + $0x1d2] sm:$0xff]
        %v2077 = vld [vmem:[%s1784 + $0x1e2] sm:$0xff]
        %v2078 = vld [vmem:[%s1784 + $0x1ea] sm:$0xff]
        %v2079 = vld [vmem:[%s1784 + $0x1fa] sm:$0xff]
        %v2080 = vld [vmem:[%s1784 + $0x202] sm:$0xff]
        %v2081 = vld [vmem:[%s1784 + $0x212] sm:$0xff]
        %v2082 = vld [vmem:[%s1784 + $0x21a] sm:$0xff]
        %v2083 = vld [vmem:[%s1784 + $0x22a] sm:$0xff]
        %v2084 = vld [vmem:[%s1784 + $0x232] sm:$0xff]
        %v2085 = vld [vmem:[%s1784 + $0x242] sm:$0xff]
        %v2086 = vld [vmem:[%s1784 + $0x24a] sm:$0xff]
        %v2087 = vld [vmem:[%s1784 + $0x25a] sm:$0xff]
        %v2088 = vld [vmem:[%s1784 + $0x262] sm:$0xff]
        %v2089 = vld [vmem:[%s1784 + $0x272] sm:$0xff]
        %v2090 = vld [vmem:[%s1784 + $0x27a] sm:$0xff]
        %v2091 = vld [vmem:[%s1784 + $0x28a] sm:$0xff]
        %v2092 = vld [vmem:[%s1784 + $0x292] sm:$0xff]
        %v2093 = vld [vmem:[%s1784 + $0x2a2] sm:$0xff]
        %v2094 = vld [vmem:[%s1784 + $0x2aa] sm:$0xff]
        %v2095 = vld [vmem:[%s1784 + $0x2ba] sm:$0xff]
        %v2096 = vld [vmem:[%s1784 + $0x2c2] sm:$0xff]
        %v2097 = vld [vmem:[%s1784 + $0x2d2] sm:$0xff]
        %v2098 = vld [vmem:[%s1784 + $0x2da] sm:$0xff]
        %v2099 = vld [vmem:[%s1784 + $0x2ea] sm:$0xff]
        %v2100 = vld [vmem:[%s1784 + $0x2f2] sm:$0xff]
        %v2101 = vld [vmem:[%s1784 + $0x302] sm:$0xff]
        %v2102 = vld [vmem:[%s1784 + $0x30a] sm:$0xff]
        %v2103 = vld [vmem:[%s1784 + $0x31a] sm:$0xff]
        %v2104 = vld [vmem:[%s1784 + $0x322] sm:$0xff]
        %v2105 = vpack.c.bf16 %v2041, %v2041
        %v2106 = vpack.c.bf16 %v2042, %v2042
        %v2107 = vpack.c.bf16 %v2043, %v2043
        %v2108 = vpack.c.bf16 %v2044, %v2044
        %v2109 = vpack.c.bf16 %v2045, %v2045
        %v2110 = vpack.c.bf16 %v2046, %v2046
        %v2111 = vpack.c.bf16 %v2047, %v2047
        %v2112 = vpack.c.bf16 %v2048, %v2048
        %v2113 = vpack.c.bf16 %v2049, %v2049
        %v2114 = vpack.c.bf16 %v2050, %v2050
        %v2115 = vpack.c.bf16 %v2051, %v2051
        %v2116 = vpack.c.bf16 %v2052, %v2052
        %v2117 = vpack.c.bf16 %v2053, %v2053
        %v2118 = vpack.c.bf16 %v2054, %v2054
        %v2119 = vpack.c.bf16 %v2055, %v2055
        %v2120 = vpack.c.bf16 %v2056, %v2056
        %v2121 = vpack.c.bf16 %v2057, %v2057
        %v2122 = vpack.c.bf16 %v2058, %v2058
        %v2123 = vpack.c.bf16 %v2059, %v2059
        %v2124 = vpack.c.bf16 %v2060, %v2060
        %v2125 = vpack.c.bf16 %v2061, %v2061
        %v2126 = vpack.c.bf16 %v2062, %v2062
        %v2127 = vpack.c.bf16 %v2063, %v2063
        %v2128 = vpack.c.bf16 %v2064, %v2064
        %v2129 = vpack.c.bf16 %v2065, %v2065
        %v2130 = vpack.c.bf16 %v2066, %v2066
        %v2131 = vpack.c.bf16 %v2067, %v2067
        %v2132 = vpack.c.bf16 %v2068, %v2068
        %v2133 = vpack.c.bf16 %v2069, %v2069
        %v2134 = vpack.c.bf16 %v2070, %v2070
        %v2135 = vpack.c.bf16 %v2071, %v2071
        %v2136 = vpack.c.bf16 %v2072, %v2072
        %v2137 = vpack.c.bf16 %v2073, %v2073
        %v2138 = vpack.c.bf16 %v2074, %v2074
        %v2139 = vpack.c.bf16 %v2075, %v2075
        %v2140 = vpack.c.bf16 %v2076, %v2076
        %v2141 = vpack.c.bf16 %v2077, %v2077
        %v2142 = vpack.c.bf16 %v2078, %v2078
        %v2143 = vpack.c.bf16 %v2079, %v2079
        %v2144 = vpack.c.bf16 %v2080, %v2080
        %v2145 = vpack.c.bf16 %v2081, %v2081
        %v2146 = vpack.c.bf16 %v2082, %v2082
        %v2147 = vpack.c.bf16 %v2083, %v2083
        %v2148 = vpack.c.bf16 %v2084, %v2084
        %v2149 = vpack.c.bf16 %v2085, %v2085
        %v2150 = vpack.c.bf16 %v2086, %v2086
        %v2151 = vpack.c.bf16 %v2087, %v2087
        %v2152 = vpack.c.bf16 %v2088, %v2088
        %v2153 = vpack.c.bf16 %v2089, %v2089
        %v2154 = vpack.c.bf16 %v2090, %v2090
        %v2155 = vpack.c.bf16 %v2091, %v2091
        %v2156 = vpack.c.bf16 %v2092, %v2092
        %v2157 = vpack.c.bf16 %v2093, %v2093
        %v2158 = vpack.c.bf16 %v2094, %v2094
        %v2159 = vpack.c.bf16 %v2095, %v2095
        %v2160 = vpack.c.bf16 %v2096, %v2096
        %v2161 = vpack.c.bf16 %v2097, %v2097
        %v2162 = vpack.c.bf16 %v2098, %v2098
        %v2163 = vpack.c.bf16 %v2099, %v2099
        %v2164 = vpack.c.bf16 %v2100, %v2100
        %v2165 = vpack.c.bf16 %v2101, %v2101
        %v2166 = vpack.c.bf16 %v2102, %v2102
        %v2167 = vpack.c.bf16 %v2103, %v2103
        %v2168 = vpack.c.bf16 %v2104, %v2104
        %v2233 = vunpack.c.l.b16 %v1080
        %v2234 = vunpack.c.l.b16 %v1081
        %v2235 = vunpack.c.l.b16 %v1082
        %v2236 = vunpack.c.l.b16 %v1083
        %v2237 = vunpack.c.l.b16 %v1084
        %v2238 = vunpack.c.l.b16 %v1085
        %v2239 = vunpack.c.l.b16 %v1086
        %v2240 = vunpack.c.l.b16 %v1087
        %v2241 = vunpack.c.l.b16 %v1088
        %v2242 = vunpack.c.l.b16 %v1089
        %v2243 = vunpack.c.l.b16 %v1090
        %v2244 = vunpack.c.l.b16 %v1091
        %v2245 = vunpack.c.l.b16 %v1092
        %v2246 = vunpack.c.l.b16 %v1093
        %v2247 = vunpack.c.l.b16 %v1094
        %v2248 = vunpack.c.l.b16 %v1095
        %v2249 = vunpack.c.l.b16 %v1096
        %v2250 = vunpack.c.l.b16 %v1097
        %v2251 = vunpack.c.l.b16 %v1098
        %v2252 = vunpack.c.l.b16 %v1099
        %v2253 = vunpack.c.l.b16 %v1100
        %v2254 = vunpack.c.l.b16 %v1101
        %v2255 = vunpack.c.l.b16 %v1102
        %v2256 = vunpack.c.l.b16 %v1103
        %v2257 = vunpack.c.l.b16 %v1104
        %v2258 = vunpack.c.l.b16 %v1105
        %v2259 = vunpack.c.l.b16 %v1106
        %v2260 = vunpack.c.l.b16 %v1107
        %v2261 = vunpack.c.l.b16 %v1108
        %v2262 = vunpack.c.l.b16 %v1109
        %v2263 = vunpack.c.l.b16 %v1110
        %v2264 = vunpack.c.l.b16 %v1111
        %v2265 = vunpack.c.l.b16 %v1112
        %v2266 = vunpack.c.l.b16 %v1113
        %v2267 = vunpack.c.l.b16 %v1114
        %v2268 = vunpack.c.l.b16 %v1115
        %v2269 = vunpack.c.l.b16 %v1116
        %v2270 = vunpack.c.l.b16 %v1117
        %v2271 = vunpack.c.l.b16 %v1118
        %v2272 = vunpack.c.l.b16 %v1119
        %v2273 = vunpack.c.l.b16 %v1120
        %v2274 = vunpack.c.l.b16 %v1121
        %v2275 = vunpack.c.l.b16 %v1122
        %v2276 = vunpack.c.l.b16 %v1123
        %v2277 = vunpack.c.l.b16 %v1124
        %v2278 = vunpack.c.l.b16 %v1125
        %v2279 = vunpack.c.l.b16 %v1126
        %v2280 = vunpack.c.l.b16 %v1127
        %v2281 = vunpack.c.l.b16 %v1128
        %v2282 = vunpack.c.l.b16 %v1129
        %v2283 = vunpack.c.l.b16 %v1130
        %v2284 = vunpack.c.l.b16 %v1131
        %v2285 = vunpack.c.l.b16 %v1132
        %v2286 = vunpack.c.l.b16 %v1133
        %v2287 = vunpack.c.l.b16 %v1134
        %v2288 = vunpack.c.l.b16 %v1135
        %v2289 = vunpack.c.l.b16 %v1136
        %v2290 = vunpack.c.l.b16 %v1137
        %v2291 = vunpack.c.l.b16 %v1138
        %v2292 = vunpack.c.l.b16 %v1139
        %v2293 = vunpack.c.l.b16 %v1140
        %v2294 = vunpack.c.l.b16 %v1141
        %v2295 = vunpack.c.l.b16 %v1142
        %v2296 = vunpack.c.l.b16 %v1143
        %v2297 = vpack.c.b16 %v2234, %v2233
        %v2298 = vpack.c.b16 %v2236, %v2235
        %v2299 = vpack.c.b16 %v2238, %v2237
        %v2300 = vpack.c.b16 %v2240, %v2239
        %v2301 = vpack.c.b16 %v2242, %v2241
        %v2302 = vpack.c.b16 %v2244, %v2243
        %v2303 = vpack.c.b16 %v2246, %v2245
        %v2304 = vpack.c.b16 %v2248, %v2247
        %v2305 = vpack.c.b16 %v2250, %v2249
        %v2306 = vpack.c.b16 %v2252, %v2251
        %v2307 = vpack.c.b16 %v2254, %v2253
        %v2308 = vpack.c.b16 %v2256, %v2255
        %v2309 = vpack.c.b16 %v2258, %v2257
        %v2310 = vpack.c.b16 %v2260, %v2259
        %v2311 = vpack.c.b16 %v2262, %v2261
        %v2312 = vpack.c.b16 %v2264, %v2263
        %v2313 = vpack.c.b16 %v2266, %v2265
        %v2314 = vpack.c.b16 %v2268, %v2267
        %v2315 = vpack.c.b16 %v2270, %v2269
        %v2316 = vpack.c.b16 %v2272, %v2271
        %v2317 = vpack.c.b16 %v2274, %v2273
        %v2318 = vpack.c.b16 %v2276, %v2275
        %v2319 = vpack.c.b16 %v2278, %v2277
        %v2320 = vpack.c.b16 %v2280, %v2279
        %v2321 = vpack.c.b16 %v2282, %v2281
        %v2322 = vpack.c.b16 %v2284, %v2283
        %v2323 = vpack.c.b16 %v2286, %v2285
        %v2324 = vpack.c.b16 %v2288, %v2287
        %v2325 = vpack.c.b16 %v2290, %v2289
        %v2326 = vpack.c.b16 %v2292, %v2291
        %v2327 = vpack.c.b16 %v2294, %v2293
        %v2328 = vpack.c.b16 %v2296, %v2295
        %v2393 = vunpack.c.l.b16 %v1208
        %v2394 = vunpack.c.l.b16 %v1209
        %v2395 = vunpack.c.l.b16 %v1210
        %v2396 = vunpack.c.l.b16 %v1211
        %v2397 = vunpack.c.l.b16 %v1212
        %v2398 = vunpack.c.l.b16 %v1213
        %v2399 = vunpack.c.l.b16 %v1214
        %v2400 = vunpack.c.l.b16 %v1215
        %v2401 = vunpack.c.l.b16 %v1216
        %v2402 = vunpack.c.l.b16 %v1217
        %v2403 = vunpack.c.l.b16 %v1218
        %v2404 = vunpack.c.l.b16 %v1219
        %v2405 = vunpack.c.l.b16 %v1220
        %v2406 = vunpack.c.l.b16 %v1221
        %v2407 = vunpack.c.l.b16 %v1222
        %v2408 = vunpack.c.l.b16 %v1223
        %v2409 = vunpack.c.l.b16 %v1224
        %v2410 = vunpack.c.l.b16 %v1225
        %v2411 = vunpack.c.l.b16 %v1226
        %v2412 = vunpack.c.l.b16 %v1227
        %v2413 = vunpack.c.l.b16 %v1228
        %v2414 = vunpack.c.l.b16 %v1229
        %v2415 = vunpack.c.l.b16 %v1230
        %v2416 = vunpack.c.l.b16 %v1231
        %v2417 = vunpack.c.l.b16 %v1232
        %v2418 = vunpack.c.l.b16 %v1233
        %v2419 = vunpack.c.l.b16 %v1234
        %v2420 = vunpack.c.l.b16 %v1235
        %v2421 = vunpack.c.l.b16 %v1236
        %v2422 = vunpack.c.l.b16 %v1237
        %v2423 = vunpack.c.l.b16 %v1238
        %v2424 = vunpack.c.l.b16 %v1239
        %v2425 = vunpack.c.l.b16 %v1240
        %v2426 = vunpack.c.l.b16 %v1241
        %v2427 = vunpack.c.l.b16 %v1242
        %v2428 = vunpack.c.l.b16 %v1243
        %v2429 = vunpack.c.l.b16 %v1244
        %v2430 = vunpack.c.l.b16 %v1245
        %v2431 = vunpack.c.l.b16 %v1246
        %v2432 = vunpack.c.l.b16 %v1247
        %v2433 = vunpack.c.l.b16 %v1248
        %v2434 = vunpack.c.l.b16 %v1249
        %v2435 = vunpack.c.l.b16 %v1250
        %v2436 = vunpack.c.l.b16 %v1251
        %v2437 = vunpack.c.l.b16 %v1252
        %v2438 = vunpack.c.l.b16 %v1253
        %v2439 = vunpack.c.l.b16 %v1254
        %v2440 = vunpack.c.l.b16 %v1255
        %v2441 = vunpack.c.l.b16 %v1256
        %v2442 = vunpack.c.l.b16 %v1257
        %v2443 = vunpack.c.l.b16 %v1258
        %v2444 = vunpack.c.l.b16 %v1259
        %v2445 = vunpack.c.l.b16 %v1260
        %v2446 = vunpack.c.l.b16 %v1261
        %v2447 = vunpack.c.l.b16 %v1262
        %v2448 = vunpack.c.l.b16 %v1263
        %v2449 = vunpack.c.l.b16 %v1264
        %v2450 = vunpack.c.l.b16 %v1265
        %v2451 = vunpack.c.l.b16 %v1266
        %v2452 = vunpack.c.l.b16 %v1267
        %v2453 = vunpack.c.l.b16 %v1268
        %v2454 = vunpack.c.l.b16 %v1269
        %v2455 = vunpack.c.l.b16 %v1270
        %v2456 = vunpack.c.l.b16 %v1271
        %v2457 = vpack.c.b16 %v2394, %v2393
        %v2458 = vpack.c.b16 %v2396, %v2395
        %v2459 = vpack.c.b16 %v2398, %v2397
        %v2460 = vpack.c.b16 %v2400, %v2399
        %v2461 = vpack.c.b16 %v2402, %v2401
        %v2462 = vpack.c.b16 %v2404, %v2403
        %v2463 = vpack.c.b16 %v2406, %v2405
        %v2464 = vpack.c.b16 %v2408, %v2407
        %v2465 = vpack.c.b16 %v2410, %v2409
        %v2466 = vpack.c.b16 %v2412, %v2411
        %v2467 = vpack.c.b16 %v2414, %v2413
        %v2468 = vpack.c.b16 %v2416, %v2415
        %v2469 = vpack.c.b16 %v2418, %v2417
        %v2470 = vpack.c.b16 %v2420, %v2419
        %v2471 = vpack.c.b16 %v2422, %v2421
        %v2472 = vpack.c.b16 %v2424, %v2423
        %v2473 = vpack.c.b16 %v2426, %v2425
        %v2474 = vpack.c.b16 %v2428, %v2427
        %v2475 = vpack.c.b16 %v2430, %v2429
        %v2476 = vpack.c.b16 %v2432, %v2431
        %v2477 = vpack.c.b16 %v2434, %v2433
        %v2478 = vpack.c.b16 %v2436, %v2435
        %v2479 = vpack.c.b16 %v2438, %v2437
        %v2480 = vpack.c.b16 %v2440, %v2439
        %v2481 = vpack.c.b16 %v2442, %v2441
        %v2482 = vpack.c.b16 %v2444, %v2443
        %v2483 = vpack.c.b16 %v2446, %v2445
        %v2484 = vpack.c.b16 %v2448, %v2447
        %v2485 = vpack.c.b16 %v2450, %v2449
        %v2486 = vpack.c.b16 %v2452, %v2451
        %v2487 = vpack.c.b16 %v2454, %v2453
        %v2488 = vpack.c.b16 %v2456, %v2455
        %2489 = vrot.lane.b32.xlu0 %v2457, 32
        %v2490 = vpop.permute.xlu0 %2489
        %2491 = vrot.lane.b32.xlu0 %v2458, 32
        %v2492 = vpop.permute.xlu0 %2491
        %2493 = vrot.lane.b32.xlu0 %v2459, 32
        %v2494 = vpop.permute.xlu0 %2493
        %2495 = vrot.lane.b32.xlu0 %v2460, 32
        %v2496 = vpop.permute.xlu0 %2495
        %2497 = vrot.lane.b32.xlu0 %v2461, 32
        %v2498 = vpop.permute.xlu0 %2497
        %2499 = vrot.lane.b32.xlu0 %v2462, 32
        %v2500 = vpop.permute.xlu0 %2499
        %2501 = vrot.lane.b32.xlu0 %v2463, 32
        %v2502 = vpop.permute.xlu0 %2501
        %2503 = vrot.lane.b32.xlu0 %v2464, 32
        %v2504 = vpop.permute.xlu0 %2503
        %2505 = vrot.lane.b32.xlu0 %v2465, 32
        %v2506 = vpop.permute.xlu0 %2505
        %2507 = vrot.lane.b32.xlu0 %v2466, 32
        %v2508 = vpop.permute.xlu0 %2507
        %2509 = vrot.lane.b32.xlu0 %v2467, 32
        %v2510 = vpop.permute.xlu0 %2509
        %2511 = vrot.lane.b32.xlu0 %v2468, 32
        %v2512 = vpop.permute.xlu0 %2511
        %2513 = vrot.lane.b32.xlu0 %v2469, 32
        %v2514 = vpop.permute.xlu0 %2513
        %2515 = vrot.lane.b32.xlu0 %v2470, 32
        %v2516 = vpop.permute.xlu0 %2515
        %2517 = vrot.lane.b32.xlu0 %v2471, 32
        %v2518 = vpop.permute.xlu0 %2517
        %2519 = vrot.lane.b32.xlu0 %v2472, 32
        %v2520 = vpop.permute.xlu0 %2519
        %2521 = vrot.lane.b32.xlu0 %v2473, 32
        %v2522 = vpop.permute.xlu0 %2521
        %2523 = vrot.lane.b32.xlu0 %v2474, 32
        %v2524 = vpop.permute.xlu0 %2523
        %2525 = vrot.lane.b32.xlu0 %v2475, 32
        %v2526 = vpop.permute.xlu0 %2525
        %2527 = vrot.lane.b32.xlu0 %v2476, 32
        %v2528 = vpop.permute.xlu0 %2527
        %2529 = vrot.lane.b32.xlu0 %v2477, 32
        %v2530 = vpop.permute.xlu0 %2529
        %2531 = vrot.lane.b32.xlu0 %v2478, 32
        %v2532 = vpop.permute.xlu0 %2531
        %2533 = vrot.lane.b32.xlu0 %v2479, 32
        %v2534 = vpop.permute.xlu0 %2533
        %2535 = vrot.lane.b32.xlu0 %v2480, 32
        %v2536 = vpop.permute.xlu0 %2535
        %2537 = vrot.lane.b32.xlu0 %v2481, 32
        %v2538 = vpop.permute.xlu0 %2537
        %2539 = vrot.lane.b32.xlu0 %v2482, 32
        %v2540 = vpop.permute.xlu0 %2539
        %2541 = vrot.lane.b32.xlu0 %v2483, 32
        %v2542 = vpop.permute.xlu0 %2541
        %2543 = vrot.lane.b32.xlu0 %v2484, 32
        %v2544 = vpop.permute.xlu0 %2543
        %2545 = vrot.lane.b32.xlu0 %v2485, 32
        %v2546 = vpop.permute.xlu0 %2545
        %2547 = vrot.lane.b32.xlu0 %v2486, 32
        %v2548 = vpop.permute.xlu0 %2547
        %2549 = vrot.lane.b32.xlu0 %v2487, 32
        %v2550 = vpop.permute.xlu0 %2549
        %2551 = vrot.lane.b32.xlu0 %v2488, 32
        %v2552 = vpop.permute.xlu0 %2551
        %v2617 = vunpack.c.l.b16 %v1336
        %v2618 = vunpack.c.l.b16 %v1337
        %v2619 = vunpack.c.l.b16 %v1338
        %v2620 = vunpack.c.l.b16 %v1339
        %v2621 = vunpack.c.l.b16 %v1340
        %v2622 = vunpack.c.l.b16 %v1341
        %v2623 = vunpack.c.l.b16 %v1342
        %v2624 = vunpack.c.l.b16 %v1343
        %v2625 = vunpack.c.l.b16 %v1344
        %v2626 = vunpack.c.l.b16 %v1345
        %v2627 = vunpack.c.l.b16 %v1346
        %v2628 = vunpack.c.l.b16 %v1347
        %v2629 = vunpack.c.l.b16 %v1348
        %v2630 = vunpack.c.l.b16 %v1349
        %v2631 = vunpack.c.l.b16 %v1350
        %v2632 = vunpack.c.l.b16 %v1351
        %v2633 = vunpack.c.l.b16 %v1352
        %v2634 = vunpack.c.l.b16 %v1353
        %v2635 = vunpack.c.l.b16 %v1354
        %v2636 = vunpack.c.l.b16 %v1355
        %v2637 = vunpack.c.l.b16 %v1356
        %v2638 = vunpack.c.l.b16 %v1357
        %v2639 = vunpack.c.l.b16 %v1358
        %v2640 = vunpack.c.l.b16 %v1359
        %v2641 = vunpack.c.l.b16 %v1360
        %v2642 = vunpack.c.l.b16 %v1361
        %v2643 = vunpack.c.l.b16 %v1362
        %v2644 = vunpack.c.l.b16 %v1363
        %v2645 = vunpack.c.l.b16 %v1364
        %v2646 = vunpack.c.l.b16 %v1365
        %v2647 = vunpack.c.l.b16 %v1366
        %v2648 = vunpack.c.l.b16 %v1367
        %v2649 = vunpack.c.l.b16 %v1368
        %v2650 = vunpack.c.l.b16 %v1369
        %v2651 = vunpack.c.l.b16 %v1370
        %v2652 = vunpack.c.l.b16 %v1371
        %v2653 = vunpack.c.l.b16 %v1372
        %v2654 = vunpack.c.l.b16 %v1373
        %v2655 = vunpack.c.l.b16 %v1374
        %v2656 = vunpack.c.l.b16 %v1375
        %v2657 = vunpack.c.l.b16 %v1376
        %v2658 = vunpack.c.l.b16 %v1377
        %v2659 = vunpack.c.l.b16 %v1378
        %v2660 = vunpack.c.l.b16 %v1379
        %v2661 = vunpack.c.l.b16 %v1380
        %v2662 = vunpack.c.l.b16 %v1381
        %v2663 = vunpack.c.l.b16 %v1382
        %v2664 = vunpack.c.l.b16 %v1383
        %v2665 = vunpack.c.l.b16 %v1384
        %v2666 = vunpack.c.l.b16 %v1385
        %v2667 = vunpack.c.l.b16 %v1386
        %v2668 = vunpack.c.l.b16 %v1387
        %v2669 = vunpack.c.l.b16 %v1388
        %v2670 = vunpack.c.l.b16 %v1389
        %v2671 = vunpack.c.l.b16 %v1390
        %v2672 = vunpack.c.l.b16 %v1391
        %v2673 = vunpack.c.l.b16 %v1392
        %v2674 = vunpack.c.l.b16 %v1393
        %v2675 = vunpack.c.l.b16 %v1394
        %v2676 = vunpack.c.l.b16 %v1395
        %v2677 = vunpack.c.l.b16 %v1396
        %v2678 = vunpack.c.l.b16 %v1397
        %v2679 = vunpack.c.l.b16 %v1398
        %v2680 = vunpack.c.l.b16 %v1399
        %v2681 = vpack.c.b16 %v2618, %v2617
        %v2682 = vpack.c.b16 %v2620, %v2619
        %v2683 = vpack.c.b16 %v2622, %v2621
        %v2684 = vpack.c.b16 %v2624, %v2623
        %v2685 = vpack.c.b16 %v2626, %v2625
        %v2686 = vpack.c.b16 %v2628, %v2627
        %v2687 = vpack.c.b16 %v2630, %v2629
        %v2688 = vpack.c.b16 %v2632, %v2631
        %v2689 = vpack.c.b16 %v2634, %v2633
        %v2690 = vpack.c.b16 %v2636, %v2635
        %v2691 = vpack.c.b16 %v2638, %v2637
        %v2692 = vpack.c.b16 %v2640, %v2639
        %v2693 = vpack.c.b16 %v2642, %v2641
        %v2694 = vpack.c.b16 %v2644, %v2643
        %v2695 = vpack.c.b16 %v2646, %v2645
        %v2696 = vpack.c.b16 %v2648, %v2647
        %v2697 = vpack.c.b16 %v2650, %v2649
        %v2698 = vpack.c.b16 %v2652, %v2651
        %v2699 = vpack.c.b16 %v2654, %v2653
        %v2700 = vpack.c.b16 %v2656, %v2655
        %v2701 = vpack.c.b16 %v2658, %v2657
        %v2702 = vpack.c.b16 %v2660, %v2659
        %v2703 = vpack.c.b16 %v2662, %v2661
        %v2704 = vpack.c.b16 %v2664, %v2663
        %v2705 = vpack.c.b16 %v2666, %v2665
        %v2706 = vpack.c.b16 %v2668, %v2667
        %v2707 = vpack.c.b16 %v2670, %v2669
        %v2708 = vpack.c.b16 %v2672, %v2671
        %v2709 = vpack.c.b16 %v2674, %v2673
        %v2710 = vpack.c.b16 %v2676, %v2675
        %v2711 = vpack.c.b16 %v2678, %v2677
        %v2712 = vpack.c.b16 %v2680, %v2679
        %2713 = vrot.lane.b32.xlu0 %v2681, 64
        %v2714 = vpop.permute.xlu0 %2713
        %2715 = vrot.lane.b32.xlu0 %v2682, 64
        %v2716 = vpop.permute.xlu0 %2715
        %2717 = vrot.lane.b32.xlu0 %v2683, 64
        %v2718 = vpop.permute.xlu0 %2717
        %2719 = vrot.lane.b32.xlu0 %v2684, 64
        %v2720 = vpop.permute.xlu0 %2719
        %2721 = vrot.lane.b32.xlu0 %v2685, 64
        %v2722 = vpop.permute.xlu0 %2721
        %2723 = vrot.lane.b32.xlu0 %v2686, 64
        %v2724 = vpop.permute.xlu0 %2723
        %2725 = vrot.lane.b32.xlu0 %v2687, 64
        %v2726 = vpop.permute.xlu0 %2725
        %2727 = vrot.lane.b32.xlu0 %v2688, 64
        %v2728 = vpop.permute.xlu0 %2727
        %2729 = vrot.lane.b32.xlu0 %v2689, 64
        %v2730 = vpop.permute.xlu0 %2729
        %2731 = vrot.lane.b32.xlu0 %v2690, 64
        %v2732 = vpop.permute.xlu0 %2731
        %2733 = vrot.lane.b32.xlu0 %v2691, 64
        %v2734 = vpop.permute.xlu0 %2733
        %2735 = vrot.lane.b32.xlu0 %v2692, 64
        %v2736 = vpop.permute.xlu0 %2735
        %2737 = vrot.lane.b32.xlu0 %v2693, 64
        %v2738 = vpop.permute.xlu0 %2737
        %2739 = vrot.lane.b32.xlu0 %v2694, 64
        %v2740 = vpop.permute.xlu0 %2739
        %2741 = vrot.lane.b32.xlu0 %v2695, 64
        %v2742 = vpop.permute.xlu0 %2741
        %2743 = vrot.lane.b32.xlu0 %v2696, 64
        %v2744 = vpop.permute.xlu0 %2743
        %2745 = vrot.lane.b32.xlu0 %v2697, 64
        %v2746 = vpop.permute.xlu0 %2745
        %2747 = vrot.lane.b32.xlu0 %v2698, 64
        %v2748 = vpop.permute.xlu0 %2747
        %2749 = vrot.lane.b32.xlu0 %v2699, 64
        %v2750 = vpop.permute.xlu0 %2749
        %2751 = vrot.lane.b32.xlu0 %v2700, 64
        %v2752 = vpop.permute.xlu0 %2751
        %2753 = vrot.lane.b32.xlu0 %v2701, 64
        %v2754 = vpop.permute.xlu0 %2753
        %2755 = vrot.lane.b32.xlu0 %v2702, 64
        %v2756 = vpop.permute.xlu0 %2755
        %2757 = vrot.lane.b32.xlu0 %v2703, 64
        %v2758 = vpop.permute.xlu0 %2757
        %2759 = vrot.lane.b32.xlu0 %v2704, 64
        %v2760 = vpop.permute.xlu0 %2759
        %2761 = vrot.lane.b32.xlu0 %v2705, 64
        %v2762 = vpop.permute.xlu0 %2761
        %2763 = vrot.lane.b32.xlu0 %v2706, 64
        %v2764 = vpop.permute.xlu0 %2763
        %2765 = vrot.lane.b32.xlu0 %v2707, 64
        %v2766 = vpop.permute.xlu0 %2765
        %2767 = vrot.lane.b32.xlu0 %v2708, 64
        %v2768 = vpop.permute.xlu0 %2767
        %2769 = vrot.lane.b32.xlu0 %v2709, 64
        %v2770 = vpop.permute.xlu0 %2769
        %2771 = vrot.lane.b32.xlu0 %v2710, 64
        %v2772 = vpop.permute.xlu0 %2771
        %2773 = vrot.lane.b32.xlu0 %v2711, 64
        %v2774 = vpop.permute.xlu0 %2773
        %2775 = vrot.lane.b32.xlu0 %v2712, 64
        %v2776 = vpop.permute.xlu0 %2775
        %v2841 = vunpack.c.l.b16 %v1464
        %v2842 = vunpack.c.l.b16 %v1465
        %v2843 = vunpack.c.l.b16 %v1466
        %v2844 = vunpack.c.l.b16 %v1467
        %v2845 = vunpack.c.l.b16 %v1468
        %v2846 = vunpack.c.l.b16 %v1469
        %v2847 = vunpack.c.l.b16 %v1470
        %v2848 = vunpack.c.l.b16 %v1471
        %v2849 = vunpack.c.l.b16 %v1472
        %v2850 = vunpack.c.l.b16 %v1473
        %v2851 = vunpack.c.l.b16 %v1474
        %v2852 = vunpack.c.l.b16 %v1475
        %v2853 = vunpack.c.l.b16 %v1476
        %v2854 = vunpack.c.l.b16 %v1477
        %v2855 = vunpack.c.l.b16 %v1478
        %v2856 = vunpack.c.l.b16 %v1479
        %v2857 = vunpack.c.l.b16 %v1480
        %v2858 = vunpack.c.l.b16 %v1481
        %v2859 = vunpack.c.l.b16 %v1482
        %v2860 = vunpack.c.l.b16 %v1483
        %v2861 = vunpack.c.l.b16 %v1484
        %v2862 = vunpack.c.l.b16 %v1485
        %v2863 = vunpack.c.l.b16 %v1486
        %v2864 = vunpack.c.l.b16 %v1487
        %v2865 = vunpack.c.l.b16 %v1488
        %v2866 = vunpack.c.l.b16 %v1489
        %v2867 = vunpack.c.l.b16 %v1490
        %v2868 = vunpack.c.l.b16 %v1491
        %v2869 = vunpack.c.l.b16 %v1492
        %v2870 = vunpack.c.l.b16 %v1493
        %v2871 = vunpack.c.l.b16 %v1494
        %v2872 = vunpack.c.l.b16 %v1495
        %v2873 = vunpack.c.l.b16 %v1496
        %v2874 = vunpack.c.l.b16 %v1497
        %v2875 = vunpack.c.l.b16 %v1498
        %v2876 = vunpack.c.l.b16 %v1499
        %v2877 = vunpack.c.l.b16 %v1500
        %v2878 = vunpack.c.l.b16 %v1501
        %v2879 = vunpack.c.l.b16 %v1502
        %v2880 = vunpack.c.l.b16 %v1503
        %v2881 = vunpack.c.l.b16 %v1504
        %v2882 = vunpack.c.l.b16 %v1505
        %v2883 = vunpack.c.l.b16 %v1506
        %v2884 = vunpack.c.l.b16 %v1507
        %v2885 = vunpack.c.l.b16 %v1508
        %v2886 = vunpack.c.l.b16 %v1509
        %v2887 = vunpack.c.l.b16 %v1510
        %v2888 = vunpack.c.l.b16 %v1511
        %v2889 = vunpack.c.l.b16 %v1512
        %v2890 = vunpack.c.l.b16 %v1513
        %v2891 = vunpack.c.l.b16 %v1514
        %v2892 = vunpack.c.l.b16 %v1515
        %v2893 = vunpack.c.l.b16 %v1516
        %v2894 = vunpack.c.l.b16 %v1517
        %v2895 = vunpack.c.l.b16 %v1518
        %v2896 = vunpack.c.l.b16 %v1519
        %v2897 = vunpack.c.l.b16 %v1520
        %v2898 = vunpack.c.l.b16 %v1521
        %v2899 = vunpack.c.l.b16 %v1522
        %v2900 = vunpack.c.l.b16 %v1523
        %v2901 = vunpack.c.l.b16 %v1524
        %v2902 = vunpack.c.l.b16 %v1525
        %v2903 = vunpack.c.l.b16 %v1526
        %v2904 = vunpack.c.l.b16 %v1527
        %v2905 = vpack.c.b16 %v2842, %v2841
        %v2906 = vpack.c.b16 %v2844, %v2843
        %v2907 = vpack.c.b16 %v2846, %v2845
        %v2908 = vpack.c.b16 %v2848, %v2847
        %v2909 = vpack.c.b16 %v2850, %v2849
        %v2910 = vpack.c.b16 %v2852, %v2851
        %v2911 = vpack.c.b16 %v2854, %v2853
        %v2912 = vpack.c.b16 %v2856, %v2855
        %v2913 = vpack.c.b16 %v2858, %v2857
        %v2914 = vpack.c.b16 %v2860, %v2859
        %v2915 = vpack.c.b16 %v2862, %v2861
        %v2916 = vpack.c.b16 %v2864, %v2863
        %v2917 = vpack.c.b16 %v2866, %v2865
        %v2918 = vpack.c.b16 %v2868, %v2867
        %v2919 = vpack.c.b16 %v2870, %v2869
        %v2920 = vpack.c.b16 %v2872, %v2871
        %v2921 = vpack.c.b16 %v2874, %v2873
        %v2922 = vpack.c.b16 %v2876, %v2875
        %v2923 = vpack.c.b16 %v2878, %v2877
        %v2924 = vpack.c.b16 %v2880, %v2879
        %v2925 = vpack.c.b16 %v2882, %v2881
        %v2926 = vpack.c.b16 %v2884, %v2883
        %v2927 = vpack.c.b16 %v2886, %v2885
        %v2928 = vpack.c.b16 %v2888, %v2887
        %v2929 = vpack.c.b16 %v2890, %v2889
        %v2930 = vpack.c.b16 %v2892, %v2891
        %v2931 = vpack.c.b16 %v2894, %v2893
        %v2932 = vpack.c.b16 %v2896, %v2895
        %v2933 = vpack.c.b16 %v2898, %v2897
        %v2934 = vpack.c.b16 %v2900, %v2899
        %v2935 = vpack.c.b16 %v2902, %v2901
        %v2936 = vpack.c.b16 %v2904, %v2903
        %2937 = vrot.lane.b32.xlu0 %v2905, 96
        %v2938 = vpop.permute.xlu0 %2937
        %2939 = vrot.lane.b32.xlu0 %v2906, 96
        %v2940 = vpop.permute.xlu0 %2939
        %2941 = vrot.lane.b32.xlu0 %v2907, 96
        %v2942 = vpop.permute.xlu0 %2941
        %2943 = vrot.lane.b32.xlu0 %v2908, 96
        %v2944 = vpop.permute.xlu0 %2943
        %2945 = vrot.lane.b32.xlu0 %v2909, 96
        %v2946 = vpop.permute.xlu0 %2945
        %2947 = vrot.lane.b32.xlu0 %v2910, 96
        %v2948 = vpop.permute.xlu0 %2947
        %2949 = vrot.lane.b32.xlu0 %v2911, 96
        %v2950 = vpop.permute.xlu0 %2949
        %2951 = vrot.lane.b32.xlu0 %v2912, 96
        %v2952 = vpop.permute.xlu0 %2951
        %2953 = vrot.lane.b32.xlu0 %v2913, 96
        %v2954 = vpop.permute.xlu0 %2953
        %2955 = vrot.lane.b32.xlu0 %v2914, 96
        %v2956 = vpop.permute.xlu0 %2955
        %2957 = vrot.lane.b32.xlu0 %v2915, 96
        %v2958 = vpop.permute.xlu0 %2957
        %2959 = vrot.lane.b32.xlu0 %v2916, 96
        %v2960 = vpop.permute.xlu0 %2959
        %2961 = vrot.lane.b32.xlu0 %v2917, 96
        %v2962 = vpop.permute.xlu0 %2961
        %2963 = vrot.lane.b32.xlu0 %v2918, 96
        %v2964 = vpop.permute.xlu0 %2963
        %2965 = vrot.lane.b32.xlu0 %v2919, 96
        %v2966 = vpop.permute.xlu0 %2965
        %2967 = vrot.lane.b32.xlu0 %v2920, 96
        %v2968 = vpop.permute.xlu0 %2967
        %2969 = vrot.lane.b32.xlu0 %v2921, 96
        %v2970 = vpop.permute.xlu0 %2969
        %2971 = vrot.lane.b32.xlu0 %v2922, 96
        %v2972 = vpop.permute.xlu0 %2971
        %2973 = vrot.lane.b32.xlu0 %v2923, 96
        %v2974 = vpop.permute.xlu0 %2973
        %2975 = vrot.lane.b32.xlu0 %v2924, 96
        %v2976 = vpop.permute.xlu0 %2975
        %2977 = vrot.lane.b32.xlu0 %v2925, 96
        %v2978 = vpop.permute.xlu0 %2977
        %2979 = vrot.lane.b32.xlu0 %v2926, 96
        %v2980 = vpop.permute.xlu0 %2979
        %2981 = vrot.lane.b32.xlu0 %v2927, 96
        %v2982 = vpop.permute.xlu0 %2981
        %2983 = vrot.lane.b32.xlu0 %v2928, 96
        %v2984 = vpop.permute.xlu0 %2983
        %2985 = vrot.lane.b32.xlu0 %v2929, 96
        %v2986 = vpop.permute.xlu0 %2985
        %2987 = vrot.lane.b32.xlu0 %v2930, 96
        %v2988 = vpop.permute.xlu0 %2987
        %2989 = vrot.lane.b32.xlu0 %v2931, 96
        %v2990 = vpop.permute.xlu0 %2989
        %2991 = vrot.lane.b32.xlu0 %v2932, 96
        %v2992 = vpop.permute.xlu0 %2991
        %2993 = vrot.lane.b32.xlu0 %v2933, 96
        %v2994 = vpop.permute.xlu0 %2993
        %2995 = vrot.lane.b32.xlu0 %v2934, 96
        %v2996 = vpop.permute.xlu0 %2995
        %2997 = vrot.lane.b32.xlu0 %v2935, 96
        %v2998 = vpop.permute.xlu0 %2997
        %2999 = vrot.lane.b32.xlu0 %v2936, 96
        %v3000 = vpop.permute.xlu0 %2999
        %v3065 = vunpack.c.l.b16 %v1592
        %v3066 = vunpack.c.l.b16 %v1593
        %v3067 = vunpack.c.l.b16 %v1594
        %v3068 = vunpack.c.l.b16 %v1595
        %v3069 = vunpack.c.l.b16 %v1596
        %v3070 = vunpack.c.l.b16 %v1597
        %v3071 = vunpack.c.l.b16 %v1598
        %v3072 = vunpack.c.l.b16 %v1599
        %v3073 = vunpack.c.l.b16 %v1600
        %v3074 = vunpack.c.l.b16 %v1601
        %v3075 = vunpack.c.l.b16 %v1602
        %v3076 = vunpack.c.l.b16 %v1603
        %v3077 = vunpack.c.l.b16 %v1604
        %v3078 = vunpack.c.l.b16 %v1605
        %v3079 = vunpack.c.l.b16 %v1606
        %v3080 = vunpack.c.l.b16 %v1607
        %v3081 = vunpack.c.l.b16 %v1608
        %v3082 = vunpack.c.l.b16 %v1609
        %v3083 = vunpack.c.l.b16 %v1610
        %v3084 = vunpack.c.l.b16 %v1611
        %v3085 = vunpack.c.l.b16 %v1612
        %v3086 = vunpack.c.l.b16 %v1613
        %v3087 = vunpack.c.l.b16 %v1614
        %v3088 = vunpack.c.l.b16 %v1615
        %v3089 = vunpack.c.l.b16 %v1616
        %v3090 = vunpack.c.l.b16 %v1617
        %v3091 = vunpack.c.l.b16 %v1618
        %v3092 = vunpack.c.l.b16 %v1619
        %v3093 = vunpack.c.l.b16 %v1620
        %v3094 = vunpack.c.l.b16 %v1621
        %v3095 = vunpack.c.l.b16 %v1622
        %v3096 = vunpack.c.l.b16 %v1623
        %v3097 = vunpack.c.l.b16 %v1624
        %v3098 = vunpack.c.l.b16 %v1625
        %v3099 = vunpack.c.l.b16 %v1626
        %v3100 = vunpack.c.l.b16 %v1627
        %v3101 = vunpack.c.l.b16 %v1628
        %v3102 = vunpack.c.l.b16 %v1629
        %v3103 = vunpack.c.l.b16 %v1630
        %v3104 = vunpack.c.l.b16 %v1631
        %v3105 = vunpack.c.l.b16 %v1632
        %v3106 = vunpack.c.l.b16 %v1633
        %v3107 = vunpack.c.l.b16 %v1634
        %v3108 = vunpack.c.l.b16 %v1635
        %v3109 = vunpack.c.l.b16 %v1636
        %v3110 = vunpack.c.l.b16 %v1637
        %v3111 = vunpack.c.l.b16 %v1638
        %v3112 = vunpack.c.l.b16 %v1639
        %v3113 = vunpack.c.l.b16 %v1640
        %v3114 = vunpack.c.l.b16 %v1641
        %v3115 = vunpack.c.l.b16 %v1642
        %v3116 = vunpack.c.l.b16 %v1643
        %v3117 = vunpack.c.l.b16 %v1644
        %v3118 = vunpack.c.l.b16 %v1645
        %v3119 = vunpack.c.l.b16 %v1646
        %v3120 = vunpack.c.l.b16 %v1647
        %v3121 = vunpack.c.l.b16 %v1648
        %v3122 = vunpack.c.l.b16 %v1649
        %v3123 = vunpack.c.l.b16 %v1650
        %v3124 = vunpack.c.l.b16 %v1651
        %v3125 = vunpack.c.l.b16 %v1652
        %v3126 = vunpack.c.l.b16 %v1653
        %v3127 = vunpack.c.l.b16 %v1654
        %v3128 = vunpack.c.l.b16 %v1655
        %v3129 = vpack.c.b16 %v3066, %v3065
        %v3130 = vpack.c.b16 %v3068, %v3067
        %v3131 = vpack.c.b16 %v3070, %v3069
        %v3132 = vpack.c.b16 %v3072, %v3071
        %v3133 = vpack.c.b16 %v3074, %v3073
        %v3134 = vpack.c.b16 %v3076, %v3075
        %v3135 = vpack.c.b16 %v3078, %v3077
        %v3136 = vpack.c.b16 %v3080, %v3079
        %v3137 = vpack.c.b16 %v3082, %v3081
        %v3138 = vpack.c.b16 %v3084, %v3083
        %v3139 = vpack.c.b16 %v3086, %v3085
        %v3140 = vpack.c.b16 %v3088, %v3087
        %v3141 = vpack.c.b16 %v3090, %v3089
        %v3142 = vpack.c.b16 %v3092, %v3091
        %v3143 = vpack.c.b16 %v3094, %v3093
        %v3144 = vpack.c.b16 %v3096, %v3095
        %v3145 = vpack.c.b16 %v3098, %v3097
        %v3146 = vpack.c.b16 %v3100, %v3099
        %v3147 = vpack.c.b16 %v3102, %v3101
        %v3148 = vpack.c.b16 %v3104, %v3103
        %v3149 = vpack.c.b16 %v3106, %v3105
        %v3150 = vpack.c.b16 %v3108, %v3107
        %v3151 = vpack.c.b16 %v3110, %v3109
        %v3152 = vpack.c.b16 %v3112, %v3111
        %v3153 = vpack.c.b16 %v3114, %v3113
        %v3154 = vpack.c.b16 %v3116, %v3115
        %v3155 = vpack.c.b16 %v3118, %v3117
        %v3156 = vpack.c.b16 %v3120, %v3119
        %v3157 = vpack.c.b16 %v3122, %v3121
        %v3158 = vpack.c.b16 %v3124, %v3123
        %v3159 = vpack.c.b16 %v3126, %v3125
        %v3160 = vpack.c.b16 %v3128, %v3127
        %v3225 = vunpack.c.l.b16 %v1720
        %v3226 = vunpack.c.l.b16 %v1721
        %v3227 = vunpack.c.l.b16 %v1722
        %v3228 = vunpack.c.l.b16 %v1723
        %v3229 = vunpack.c.l.b16 %v1724
        %v3230 = vunpack.c.l.b16 %v1725
        %v3231 = vunpack.c.l.b16 %v1726
        %v3232 = vunpack.c.l.b16 %v1727
        %v3233 = vunpack.c.l.b16 %v1728
        %v3234 = vunpack.c.l.b16 %v1729
        %v3235 = vunpack.c.l.b16 %v1730
        %v3236 = vunpack.c.l.b16 %v1731
        %v3237 = vunpack.c.l.b16 %v1732
        %v3238 = vunpack.c.l.b16 %v1733
        %v3239 = vunpack.c.l.b16 %v1734
        %v3240 = vunpack.c.l.b16 %v1735
        %v3241 = vunpack.c.l.b16 %v1736
        %v3242 = vunpack.c.l.b16 %v1737
        %v3243 = vunpack.c.l.b16 %v1738
        %v3244 = vunpack.c.l.b16 %v1739
        %v3245 = vunpack.c.l.b16 %v1740
        %v3246 = vunpack.c.l.b16 %v1741
        %v3247 = vunpack.c.l.b16 %v1742
        %v3248 = vunpack.c.l.b16 %v1743
        %v3249 = vunpack.c.l.b16 %v1744
        %v3250 = vunpack.c.l.b16 %v1745
        %v3251 = vunpack.c.l.b16 %v1746
        %v3252 = vunpack.c.l.b16 %v1747
        %v3253 = vunpack.c.l.b16 %v1748
        %v3254 = vunpack.c.l.b16 %v1749
        %v3255 = vunpack.c.l.b16 %v1750
        %v3256 = vunpack.c.l.b16 %v1751
        %v3257 = vunpack.c.l.b16 %v1752
        %v3258 = vunpack.c.l.b16 %v1753
        %v3259 = vunpack.c.l.b16 %v1754
        %v3260 = vunpack.c.l.b16 %v1755
        %v3261 = vunpack.c.l.b16 %v1756
        %v3262 = vunpack.c.l.b16 %v1757
        %v3263 = vunpack.c.l.b16 %v1758
        %v3264 = vunpack.c.l.b16 %v1759
        %v3265 = vunpack.c.l.b16 %v1760
        %v3266 = vunpack.c.l.b16 %v1761
        %v3267 = vunpack.c.l.b16 %v1762
        %v3268 = vunpack.c.l.b16 %v1763
        %v3269 = vunpack.c.l.b16 %v1764
        %v3270 = vunpack.c.l.b16 %v1765
        %v3271 = vunpack.c.l.b16 %v1766
        %v3272 = vunpack.c.l.b16 %v1767
        %v3273 = vunpack.c.l.b16 %v1768
        %v3274 = vunpack.c.l.b16 %v1769
        %v3275 = vunpack.c.l.b16 %v1770
        %v3276 = vunpack.c.l.b16 %v1771
        %v3277 = vunpack.c.l.b16 %v1772
        %v3278 = vunpack.c.l.b16 %v1773
        %v3279 = vunpack.c.l.b16 %v1774
        %v3280 = vunpack.c.l.b16 %v1775
        %v3281 = vunpack.c.l.b16 %v1776
        %v3282 = vunpack.c.l.b16 %v1777
        %v3283 = vunpack.c.l.b16 %v1778
        %v3284 = vunpack.c.l.b16 %v1779
        %v3285 = vunpack.c.l.b16 %v1780
        %v3286 = vunpack.c.l.b16 %v1781
        %v3287 = vunpack.c.l.b16 %v1782
        %v3288 = vunpack.c.l.b16 %v1783
        %v3289 = vpack.c.b16 %v3226, %v3225
        %v3290 = vpack.c.b16 %v3228, %v3227
        %v3291 = vpack.c.b16 %v3230, %v3229
        %v3292 = vpack.c.b16 %v3232, %v3231
        %v3293 = vpack.c.b16 %v3234, %v3233
        %v3294 = vpack.c.b16 %v3236, %v3235
        %v3295 = vpack.c.b16 %v3238, %v3237
        %v3296 = vpack.c.b16 %v3240, %v3239
        %v3297 = vpack.c.b16 %v3242, %v3241
        %v3298 = vpack.c.b16 %v3244, %v3243
        %v3299 = vpack.c.b16 %v3246, %v3245
        %v3300 = vpack.c.b16 %v3248, %v3247
        %v3301 = vpack.c.b16 %v3250, %v3249
        %v3302 = vpack.c.b16 %v3252, %v3251
        %v3303 = vpack.c.b16 %v3254, %v3253
        %v3304 = vpack.c.b16 %v3256, %v3255
        %v3305 = vpack.c.b16 %v3258, %v3257
        %v3306 = vpack.c.b16 %v3260, %v3259
        %v3307 = vpack.c.b16 %v3262, %v3261
        %v3308 = vpack.c.b16 %v3264, %v3263
        %v3309 = vpack.c.b16 %v3266, %v3265
        %v3310 = vpack.c.b16 %v3268, %v3267
        %v3311 = vpack.c.b16 %v3270, %v3269
        %v3312 = vpack.c.b16 %v3272, %v3271
        %v3313 = vpack.c.b16 %v3274, %v3273
        %v3314 = vpack.c.b16 %v3276, %v3275
        %v3315 = vpack.c.b16 %v3278, %v3277
        %v3316 = vpack.c.b16 %v3280, %v3279
        %v3317 = vpack.c.b16 %v3282, %v3281
        %v3318 = vpack.c.b16 %v3284, %v3283
        %v3319 = vpack.c.b16 %v3286, %v3285
        %v3320 = vpack.c.b16 %v3288, %v3287
        %3321 = vrot.lane.b32.xlu0 %v3289, 32
        %v3322 = vpop.permute.xlu0 %3321
        %3323 = vrot.lane.b32.xlu0 %v3290, 32
        %v3324 = vpop.permute.xlu0 %3323
        %3325 = vrot.lane.b32.xlu0 %v3291, 32
        %v3326 = vpop.permute.xlu0 %3325
        %3327 = vrot.lane.b32.xlu0 %v3292, 32
        %v3328 = vpop.permute.xlu0 %3327
        %3329 = vrot.lane.b32.xlu0 %v3293, 32
        %v3330 = vpop.permute.xlu0 %3329
        %3331 = vrot.lane.b32.xlu0 %v3294, 32
        %v3332 = vpop.permute.xlu0 %3331
        %3333 = vrot.lane.b32.xlu0 %v3295, 32
        %v3334 = vpop.permute.xlu0 %3333
        %3335 = vrot.lane.b32.xlu0 %v3296, 32
        %v3336 = vpop.permute.xlu0 %3335
        %3337 = vrot.lane.b32.xlu0 %v3297, 32
        %v3338 = vpop.permute.xlu0 %3337
        %3339 = vrot.lane.b32.xlu0 %v3298, 32
        %v3340 = vpop.permute.xlu0 %3339
        %3341 = vrot.lane.b32.xlu0 %v3299, 32
        %v3342 = vpop.permute.xlu0 %3341
        %3343 = vrot.lane.b32.xlu0 %v3300, 32
        %v3344 = vpop.permute.xlu0 %3343
        %3345 = vrot.lane.b32.xlu0 %v3301, 32
        %v3346 = vpop.permute.xlu0 %3345
        %3347 = vrot.lane.b32.xlu0 %v3302, 32
        %v3348 = vpop.permute.xlu0 %3347
        %3349 = vrot.lane.b32.xlu0 %v3303, 32
        %v3350 = vpop.permute.xlu0 %3349
        %3351 = vrot.lane.b32.xlu0 %v3304, 32
        %v3352 = vpop.permute.xlu0 %3351
        %3353 = vrot.lane.b32.xlu0 %v3305, 32
        %v3354 = vpop.permute.xlu0 %3353
        %3355 = vrot.lane.b32.xlu0 %v3306, 32
        %v3356 = vpop.permute.xlu0 %3355
        %3357 = vrot.lane.b32.xlu0 %v3307, 32
        %v3358 = vpop.permute.xlu0 %3357
        %3359 = vrot.lane.b32.xlu0 %v3308, 32
        %v3360 = vpop.permute.xlu0 %3359
        %3361 = vrot.lane.b32.xlu0 %v3309, 32
        %v3362 = vpop.permute.xlu0 %3361
        %3363 = vrot.lane.b32.xlu0 %v3310, 32
        %v3364 = vpop.permute.xlu0 %3363
        %3365 = vrot.lane.b32.xlu0 %v3311, 32
        %v3366 = vpop.permute.xlu0 %3365
        %3367 = vrot.lane.b32.xlu0 %v3312, 32
        %v3368 = vpop.permute.xlu0 %3367
        %3369 = vrot.lane.b32.xlu0 %v3313, 32
        %v3370 = vpop.permute.xlu0 %3369
        %3371 = vrot.lane.b32.xlu0 %v3314, 32
        %v3372 = vpop.permute.xlu0 %3371
        %3373 = vrot.lane.b32.xlu0 %v3315, 32
        %v3374 = vpop.permute.xlu0 %3373
        %3375 = vrot.lane.b32.xlu0 %v3316, 32
        %v3376 = vpop.permute.xlu0 %3375
        %3377 = vrot.lane.b32.xlu0 %v3317, 32
        %v3378 = vpop.permute.xlu0 %3377
        %3379 = vrot.lane.b32.xlu0 %v3318, 32
        %v3380 = vpop.permute.xlu0 %3379
        %3381 = vrot.lane.b32.xlu0 %v3319, 32
        %v3382 = vpop.permute.xlu0 %3381
        %3383 = vrot.lane.b32.xlu0 %v3320, 32
        %v3384 = vpop.permute.xlu0 %3383
        %v3449 = vunpack.c.l.b16 %v1849
        %v3450 = vunpack.c.l.b16 %v1850
        %v3451 = vunpack.c.l.b16 %v1851
        %v3452 = vunpack.c.l.b16 %v1852
        %v3453 = vunpack.c.l.b16 %v1853
        %v3454 = vunpack.c.l.b16 %v1854
        %v3455 = vunpack.c.l.b16 %v1855
        %v3456 = vunpack.c.l.b16 %v1856
        %v3457 = vunpack.c.l.b16 %v1857
        %v3458 = vunpack.c.l.b16 %v1858
        %v3459 = vunpack.c.l.b16 %v1859
        %v3460 = vunpack.c.l.b16 %v1860
        %v3461 = vunpack.c.l.b16 %v1861
        %v3462 = vunpack.c.l.b16 %v1862
        %v3463 = vunpack.c.l.b16 %v1863
        %v3464 = vunpack.c.l.b16 %v1864
        %v3465 = vunpack.c.l.b16 %v1865
        %v3466 = vunpack.c.l.b16 %v1866
        %v3467 = vunpack.c.l.b16 %v1867
        %v3468 = vunpack.c.l.b16 %v1868
        %v3469 = vunpack.c.l.b16 %v1869
        %v3470 = vunpack.c.l.b16 %v1870
        %v3471 = vunpack.c.l.b16 %v1871
        %v3472 = vunpack.c.l.b16 %v1872
        %v3473 = vunpack.c.l.b16 %v1873
        %v3474 = vunpack.c.l.b16 %v1874
        %v3475 = vunpack.c.l.b16 %v1875
        %v3476 = vunpack.c.l.b16 %v1876
        %v3477 = vunpack.c.l.b16 %v1877
        %v3478 = vunpack.c.l.b16 %v1878
        %v3479 = vunpack.c.l.b16 %v1879
        %v3480 = vunpack.c.l.b16 %v1880
        %v3481 = vunpack.c.l.b16 %v1881
        %v3482 = vunpack.c.l.b16 %v1882
        %v3483 = vunpack.c.l.b16 %v1883
        %v3484 = vunpack.c.l.b16 %v1884
        %v3485 = vunpack.c.l.b16 %v1885
        %v3486 = vunpack.c.l.b16 %v1886
        %v3487 = vunpack.c.l.b16 %v1887
        %v3488 = vunpack.c.l.b16 %v1888
        %v3489 = vunpack.c.l.b16 %v1889
        %v3490 = vunpack.c.l.b16 %v1890
        %v3491 = vunpack.c.l.b16 %v1891
        %v3492 = vunpack.c.l.b16 %v1892
        %v3493 = vunpack.c.l.b16 %v1893
        %v3494 = vunpack.c.l.b16 %v1894
        %v3495 = vunpack.c.l.b16 %v1895
        %v3496 = vunpack.c.l.b16 %v1896
        %v3497 = vunpack.c.l.b16 %v1897
        %v3498 = vunpack.c.l.b16 %v1898
        %v3499 = vunpack.c.l.b16 %v1899
        %v3500 = vunpack.c.l.b16 %v1900
        %v3501 = vunpack.c.l.b16 %v1901
        %v3502 = vunpack.c.l.b16 %v1902
        %v3503 = vunpack.c.l.b16 %v1903
        %v3504 = vunpack.c.l.b16 %v1904
        %v3505 = vunpack.c.l.b16 %v1905
        %v3506 = vunpack.c.l.b16 %v1906
        %v3507 = vunpack.c.l.b16 %v1907
        %v3508 = vunpack.c.l.b16 %v1908
        %v3509 = vunpack.c.l.b16 %v1909
        %v3510 = vunpack.c.l.b16 %v1910
        %v3511 = vunpack.c.l.b16 %v1911
        %v3512 = vunpack.c.l.b16 %v1912
        %v3513 = vpack.c.b16 %v3450, %v3449
        %v3514 = vpack.c.b16 %v3452, %v3451
        %v3515 = vpack.c.b16 %v3454, %v3453
        %v3516 = vpack.c.b16 %v3456, %v3455
        %v3517 = vpack.c.b16 %v3458, %v3457
        %v3518 = vpack.c.b16 %v3460, %v3459
        %v3519 = vpack.c.b16 %v3462, %v3461
        %v3520 = vpack.c.b16 %v3464, %v3463
        %v3521 = vpack.c.b16 %v3466, %v3465
        %v3522 = vpack.c.b16 %v3468, %v3467
        %v3523 = vpack.c.b16 %v3470, %v3469
        %v3524 = vpack.c.b16 %v3472, %v3471
        %v3525 = vpack.c.b16 %v3474, %v3473
        %v3526 = vpack.c.b16 %v3476, %v3475
        %v3527 = vpack.c.b16 %v3478, %v3477
        %v3528 = vpack.c.b16 %v3480, %v3479
        %v3529 = vpack.c.b16 %v3482, %v3481
        %v3530 = vpack.c.b16 %v3484, %v3483
        %v3531 = vpack.c.b16 %v3486, %v3485
        %v3532 = vpack.c.b16 %v3488, %v3487
        %v3533 = vpack.c.b16 %v3490, %v3489
        %v3534 = vpack.c.b16 %v3492, %v3491
        %v3535 = vpack.c.b16 %v3494, %v3493
        %v3536 = vpack.c.b16 %v3496, %v3495
        %v3537 = vpack.c.b16 %v3498, %v3497
        %v3538 = vpack.c.b16 %v3500, %v3499
        %v3539 = vpack.c.b16 %v3502, %v3501
        %v3540 = vpack.c.b16 %v3504, %v3503
        %v3541 = vpack.c.b16 %v3506, %v3505
        %v3542 = vpack.c.b16 %v3508, %v3507
        %v3543 = vpack.c.b16 %v3510, %v3509
        %v3544 = vpack.c.b16 %v3512, %v3511
        %3545 = vrot.lane.b32.xlu0 %v3513, 64
        %v3546 = vpop.permute.xlu0 %3545
        %3547 = vrot.lane.b32.xlu0 %v3514, 64
        %v3548 = vpop.permute.xlu0 %3547
        %3549 = vrot.lane.b32.xlu0 %v3515, 64
        %v3550 = vpop.permute.xlu0 %3549
        %3551 = vrot.lane.b32.xlu0 %v3516, 64
        %v3552 = vpop.permute.xlu0 %3551
        %3553 = vrot.lane.b32.xlu0 %v3517, 64
        %v3554 = vpop.permute.xlu0 %3553
        %3555 = vrot.lane.b32.xlu0 %v3518, 64
        %v3556 = vpop.permute.xlu0 %3555
        %3557 = vrot.lane.b32.xlu0 %v3519, 64
        %v3558 = vpop.permute.xlu0 %3557
        %3559 = vrot.lane.b32.xlu0 %v3520, 64
        %v3560 = vpop.permute.xlu0 %3559
        %3561 = vrot.lane.b32.xlu0 %v3521, 64
        %v3562 = vpop.permute.xlu0 %3561
        %3563 = vrot.lane.b32.xlu0 %v3522, 64
        %v3564 = vpop.permute.xlu0 %3563
        %3565 = vrot.lane.b32.xlu0 %v3523, 64
        %v3566 = vpop.permute.xlu0 %3565
        %3567 = vrot.lane.b32.xlu0 %v3524, 64
        %v3568 = vpop.permute.xlu0 %3567
        %3569 = vrot.lane.b32.xlu0 %v3525, 64
        %v3570 = vpop.permute.xlu0 %3569
        %3571 = vrot.lane.b32.xlu0 %v3526, 64
        %v3572 = vpop.permute.xlu0 %3571
        %3573 = vrot.lane.b32.xlu0 %v3527, 64
        %v3574 = vpop.permute.xlu0 %3573
        %3575 = vrot.lane.b32.xlu0 %v3528, 64
        %v3576 = vpop.permute.xlu0 %3575
        %3577 = vrot.lane.b32.xlu0 %v3529, 64
        %v3578 = vpop.permute.xlu0 %3577
        %3579 = vrot.lane.b32.xlu0 %v3530, 64
        %v3580 = vpop.permute.xlu0 %3579
        %3581 = vrot.lane.b32.xlu0 %v3531, 64
        %v3582 = vpop.permute.xlu0 %3581
        %3583 = vrot.lane.b32.xlu0 %v3532, 64
        %v3584 = vpop.permute.xlu0 %3583
        %3585 = vrot.lane.b32.xlu0 %v3533, 64
        %v3586 = vpop.permute.xlu0 %3585
        %3587 = vrot.lane.b32.xlu0 %v3534, 64
        %v3588 = vpop.permute.xlu0 %3587
        %3589 = vrot.lane.b32.xlu0 %v3535, 64
        %v3590 = vpop.permute.xlu0 %3589
        %3591 = vrot.lane.b32.xlu0 %v3536, 64
        %v3592 = vpop.permute.xlu0 %3591
        %3593 = vrot.lane.b32.xlu0 %v3537, 64
        %v3594 = vpop.permute.xlu0 %3593
        %3595 = vrot.lane.b32.xlu0 %v3538, 64
        %v3596 = vpop.permute.xlu0 %3595
        %3597 = vrot.lane.b32.xlu0 %v3539, 64
        %v3598 = vpop.permute.xlu0 %3597
        %3599 = vrot.lane.b32.xlu0 %v3540, 64
        %v3600 = vpop.permute.xlu0 %3599
        %3601 = vrot.lane.b32.xlu0 %v3541, 64
        %v3602 = vpop.permute.xlu0 %3601
        %3603 = vrot.lane.b32.xlu0 %v3542, 64
        %v3604 = vpop.permute.xlu0 %3603
        %3605 = vrot.lane.b32.xlu0 %v3543, 64
        %v3606 = vpop.permute.xlu0 %3605
        %3607 = vrot.lane.b32.xlu0 %v3544, 64
        %v3608 = vpop.permute.xlu0 %3607
        %v3673 = vunpack.c.l.b16 %v1977
        %v3674 = vunpack.c.l.b16 %v1978
        %v3675 = vunpack.c.l.b16 %v1979
        %v3676 = vunpack.c.l.b16 %v1980
        %v3677 = vunpack.c.l.b16 %v1981
        %v3678 = vunpack.c.l.b16 %v1982
        %v3679 = vunpack.c.l.b16 %v1983
        %v3680 = vunpack.c.l.b16 %v1984
        %v3681 = vunpack.c.l.b16 %v1985
        %v3682 = vunpack.c.l.b16 %v1986
        %v3683 = vunpack.c.l.b16 %v1987
        %v3684 = vunpack.c.l.b16 %v1988
        %v3685 = vunpack.c.l.b16 %v1989
        %v3686 = vunpack.c.l.b16 %v1990
        %v3687 = vunpack.c.l.b16 %v1991
        %v3688 = vunpack.c.l.b16 %v1992
        %v3689 = vunpack.c.l.b16 %v1993
        %v3690 = vunpack.c.l.b16 %v1994
        %v3691 = vunpack.c.l.b16 %v1995
        %v3692 = vunpack.c.l.b16 %v1996
        %v3693 = vunpack.c.l.b16 %v1997
        %v3694 = vunpack.c.l.b16 %v1998
        %v3695 = vunpack.c.l.b16 %v1999
        %v3696 = vunpack.c.l.b16 %v2000
        %v3697 = vunpack.c.l.b16 %v2001
        %v3698 = vunpack.c.l.b16 %v2002
        %v3699 = vunpack.c.l.b16 %v2003
        %v3700 = vunpack.c.l.b16 %v2004
        %v3701 = vunpack.c.l.b16 %v2005
        %v3702 = vunpack.c.l.b16 %v2006
        %v3703 = vunpack.c.l.b16 %v2007
        %v3704 = vunpack.c.l.b16 %v2008
        %v3705 = vunpack.c.l.b16 %v2009
        %v3706 = vunpack.c.l.b16 %v2010
        %v3707 = vunpack.c.l.b16 %v2011
        %v3708 = vunpack.c.l.b16 %v2012
        %v3709 = vunpack.c.l.b16 %v2013
        %v3710 = vunpack.c.l.b16 %v2014
        %v3711 = vunpack.c.l.b16 %v2015
        %v3712 = vunpack.c.l.b16 %v2016
        %v3713 = vunpack.c.l.b16 %v2017
        %v3714 = vunpack.c.l.b16 %v2018
        %v3715 = vunpack.c.l.b16 %v2019
        %v3716 = vunpack.c.l.b16 %v2020
        %v3717 = vunpack.c.l.b16 %v2021
        %v3718 = vunpack.c.l.b16 %v2022
        %v3719 = vunpack.c.l.b16 %v2023
        %v3720 = vunpack.c.l.b16 %v2024
        %v3721 = vunpack.c.l.b16 %v2025
        %v3722 = vunpack.c.l.b16 %v2026
        %v3723 = vunpack.c.l.b16 %v2027
        %v3724 = vunpack.c.l.b16 %v2028
        %v3725 = vunpack.c.l.b16 %v2029
        %v3726 = vunpack.c.l.b16 %v2030
        %v3727 = vunpack.c.l.b16 %v2031
        %v3728 = vunpack.c.l.b16 %v2032
        %v3729 = vunpack.c.l.b16 %v2033
        %v3730 = vunpack.c.l.b16 %v2034
        %v3731 = vunpack.c.l.b16 %v2035
        %v3732 = vunpack.c.l.b16 %v2036
        %v3733 = vunpack.c.l.b16 %v2037
        %v3734 = vunpack.c.l.b16 %v2038
        %v3735 = vunpack.c.l.b16 %v2039
        %v3736 = vunpack.c.l.b16 %v2040
        %v3737 = vpack.c.b16 %v3674, %v3673
        %v3738 = vpack.c.b16 %v3676, %v3675
        %v3739 = vpack.c.b16 %v3678, %v3677
        %v3740 = vpack.c.b16 %v3680, %v3679
        %v3741 = vpack.c.b16 %v3682, %v3681
        %v3742 = vpack.c.b16 %v3684, %v3683
        %v3743 = vpack.c.b16 %v3686, %v3685
        %v3744 = vpack.c.b16 %v3688, %v3687
        %v3745 = vpack.c.b16 %v3690, %v3689
        %v3746 = vpack.c.b16 %v3692, %v3691
        %v3747 = vpack.c.b16 %v3694, %v3693
        %v3748 = vpack.c.b16 %v3696, %v3695
        %v3749 = vpack.c.b16 %v3698, %v3697
        %v3750 = vpack.c.b16 %v3700, %v3699
        %v3751 = vpack.c.b16 %v3702, %v3701
        %v3752 = vpack.c.b16 %v3704, %v3703
        %v3753 = vpack.c.b16 %v3706, %v3705
        %v3754 = vpack.c.b16 %v3708, %v3707
        %v3755 = vpack.c.b16 %v3710, %v3709
        %v3756 = vpack.c.b16 %v3712, %v3711
        %v3757 = vpack.c.b16 %v3714, %v3713
        %v3758 = vpack.c.b16 %v3716, %v3715
        %v3759 = vpack.c.b16 %v3718, %v3717
        %v3760 = vpack.c.b16 %v3720, %v3719
        %v3761 = vpack.c.b16 %v3722, %v3721
        %v3762 = vpack.c.b16 %v3724, %v3723
        %v3763 = vpack.c.b16 %v3726, %v3725
        %v3764 = vpack.c.b16 %v3728, %v3727
        %v3765 = vpack.c.b16 %v3730, %v3729
        %v3766 = vpack.c.b16 %v3732, %v3731
        %v3767 = vpack.c.b16 %v3734, %v3733
        %v3768 = vpack.c.b16 %v3736, %v3735
        %3769 = vrot.lane.b32.xlu0 %v3737, 96
        %v3770 = vpop.permute.xlu0 %3769
        %3771 = vrot.lane.b32.xlu0 %v3738, 96
        %v3772 = vpop.permute.xlu0 %3771
        %3773 = vrot.lane.b32.xlu0 %v3739, 96
        %v3774 = vpop.permute.xlu0 %3773
        %3775 = vrot.lane.b32.xlu0 %v3740, 96
        %v3776 = vpop.permute.xlu0 %3775
        %3777 = vrot.lane.b32.xlu0 %v3741, 96
        %v3778 = vpop.permute.xlu0 %3777
        %3779 = vrot.lane.b32.xlu0 %v3742, 96
        %v3780 = vpop.permute.xlu0 %3779
        %3781 = vrot.lane.b32.xlu0 %v3743, 96
        %v3782 = vpop.permute.xlu0 %3781
        %3783 = vrot.lane.b32.xlu0 %v3744, 96
        %v3784 = vpop.permute.xlu0 %3783
        %3785 = vrot.lane.b32.xlu0 %v3745, 96
        %v3786 = vpop.permute.xlu0 %3785
        %3787 = vrot.lane.b32.xlu0 %v3746, 96
        %v3788 = vpop.permute.xlu0 %3787
        %3789 = vrot.lane.b32.xlu0 %v3747, 96
        %v3790 = vpop.permute.xlu0 %3789
        %3791 = vrot.lane.b32.xlu0 %v3748, 96
        %v3792 = vpop.permute.xlu0 %3791
        %3793 = vrot.lane.b32.xlu0 %v3749, 96
        %v3794 = vpop.permute.xlu0 %3793
        %3795 = vrot.lane.b32.xlu0 %v3750, 96
        %v3796 = vpop.permute.xlu0 %3795
        %3797 = vrot.lane.b32.xlu0 %v3751, 96
        %v3798 = vpop.permute.xlu0 %3797
        %3799 = vrot.lane.b32.xlu0 %v3752, 96
        %v3800 = vpop.permute.xlu0 %3799
        %3801 = vrot.lane.b32.xlu0 %v3753, 96
        %v3802 = vpop.permute.xlu0 %3801
        %3803 = vrot.lane.b32.xlu0 %v3754, 96
        %v3804 = vpop.permute.xlu0 %3803
        %3805 = vrot.lane.b32.xlu0 %v3755, 96
        %v3806 = vpop.permute.xlu0 %3805
        %3807 = vrot.lane.b32.xlu0 %v3756, 96
        %v3808 = vpop.permute.xlu0 %3807
        %3809 = vrot.lane.b32.xlu0 %v3757, 96
        %v3810 = vpop.permute.xlu0 %3809
        %3811 = vrot.lane.b32.xlu0 %v3758, 96
        %v3812 = vpop.permute.xlu0 %3811
        %3813 = vrot.lane.b32.xlu0 %v3759, 96
        %v3814 = vpop.permute.xlu0 %3813
        %3815 = vrot.lane.b32.xlu0 %v3760, 96
        %v3816 = vpop.permute.xlu0 %3815
        %3817 = vrot.lane.b32.xlu0 %v3761, 96
        %v3818 = vpop.permute.xlu0 %3817
        %3819 = vrot.lane.b32.xlu0 %v3762, 96
        %v3820 = vpop.permute.xlu0 %3819
        %3821 = vrot.lane.b32.xlu0 %v3763, 96
        %v3822 = vpop.permute.xlu0 %3821
        %3823 = vrot.lane.b32.xlu0 %v3764, 96
        %v3824 = vpop.permute.xlu0 %3823
        %3825 = vrot.lane.b32.xlu0 %v3765, 96
        %v3826 = vpop.permute.xlu0 %3825
        %3827 = vrot.lane.b32.xlu0 %v3766, 96
        %v3828 = vpop.permute.xlu0 %3827
        %3829 = vrot.lane.b32.xlu0 %v3767, 96
        %v3830 = vpop.permute.xlu0 %3829
        %3831 = vrot.lane.b32.xlu0 %v3768, 96
        %v3832 = vpop.permute.xlu0 %3831
        %v3897 = vunpack.c.l.b16 %v2105
        %v3898 = vunpack.c.l.b16 %v2106
        %v3899 = vunpack.c.l.b16 %v2107
        %v3900 = vunpack.c.l.b16 %v2108
        %v3901 = vunpack.c.l.b16 %v2109
        %v3902 = vunpack.c.l.b16 %v2110
        %v3903 = vunpack.c.l.b16 %v2111
        %v3904 = vunpack.c.l.b16 %v2112
        %v3905 = vunpack.c.l.b16 %v2113
        %v3906 = vunpack.c.l.b16 %v2114
        %v3907 = vunpack.c.l.b16 %v2115
        %v3908 = vunpack.c.l.b16 %v2116
        %v3909 = vunpack.c.l.b16 %v2117
        %v3910 = vunpack.c.l.b16 %v2118
        %v3911 = vunpack.c.l.b16 %v2119
        %v3912 = vunpack.c.l.b16 %v2120
        %v3913 = vunpack.c.l.b16 %v2121
        %v3914 = vunpack.c.l.b16 %v2122
        %v3915 = vunpack.c.l.b16 %v2123
        %v3916 = vunpack.c.l.b16 %v2124
        %v3917 = vunpack.c.l.b16 %v2125
        %v3918 = vunpack.c.l.b16 %v2126
        %v3919 = vunpack.c.l.b16 %v2127
        %v3920 = vunpack.c.l.b16 %v2128
        %v3921 = vunpack.c.l.b16 %v2129
        %v3922 = vunpack.c.l.b16 %v2130
        %v3923 = vunpack.c.l.b16 %v2131
        %v3924 = vunpack.c.l.b16 %v2132
        %v3925 = vunpack.c.l.b16 %v2133
        %v3926 = vunpack.c.l.b16 %v2134
        %v3927 = vunpack.c.l.b16 %v2135
        %v3928 = vunpack.c.l.b16 %v2136
        %v3929 = vunpack.c.l.b16 %v2137
        %v3930 = vunpack.c.l.b16 %v2138
        %v3931 = vunpack.c.l.b16 %v2139
        %v3932 = vunpack.c.l.b16 %v2140
        %v3933 = vunpack.c.l.b16 %v2141
        %v3934 = vunpack.c.l.b16 %v2142
        %v3935 = vunpack.c.l.b16 %v2143
        %v3936 = vunpack.c.l.b16 %v2144
        %v3937 = vunpack.c.l.b16 %v2145
        %v3938 = vunpack.c.l.b16 %v2146
        %v3939 = vunpack.c.l.b16 %v2147
        %v3940 = vunpack.c.l.b16 %v2148
        %v3941 = vunpack.c.l.b16 %v2149
        %v3942 = vunpack.c.l.b16 %v2150
        %v3943 = vunpack.c.l.b16 %v2151
        %v3944 = vunpack.c.l.b16 %v2152
        %v3945 = vunpack.c.l.b16 %v2153
        %v3946 = vunpack.c.l.b16 %v2154
        %v3947 = vunpack.c.l.b16 %v2155
        %v3948 = vunpack.c.l.b16 %v2156
        %v3949 = vunpack.c.l.b16 %v2157
        %v3950 = vunpack.c.l.b16 %v2158
        %v3951 = vunpack.c.l.b16 %v2159
        %v3952 = vunpack.c.l.b16 %v2160
        %v3953 = vunpack.c.l.b16 %v2161
        %v3954 = vunpack.c.l.b16 %v2162
        %v3955 = vunpack.c.l.b16 %v2163
        %v3956 = vunpack.c.l.b16 %v2164
        %v3957 = vunpack.c.l.b16 %v2165
        %v3958 = vunpack.c.l.b16 %v2166
        %v3959 = vunpack.c.l.b16 %v2167
        %v3960 = vunpack.c.l.b16 %v2168
        %v3961 = vpack.c.b16 %v3898, %v3897
        %v3962 = vpack.c.b16 %v3900, %v3899
        %v3963 = vpack.c.b16 %v3902, %v3901
        %v3964 = vpack.c.b16 %v3904, %v3903
        %v3965 = vpack.c.b16 %v3906, %v3905
        %v3966 = vpack.c.b16 %v3908, %v3907
        %v3967 = vpack.c.b16 %v3910, %v3909
        %v3968 = vpack.c.b16 %v3912, %v3911
        %v3969 = vpack.c.b16 %v3914, %v3913
        %v3970 = vpack.c.b16 %v3916, %v3915
        %v3971 = vpack.c.b16 %v3918, %v3917
        %v3972 = vpack.c.b16 %v3920, %v3919
        %v3973 = vpack.c.b16 %v3922, %v3921
        %v3974 = vpack.c.b16 %v3924, %v3923
        %v3975 = vpack.c.b16 %v3926, %v3925
        %v3976 = vpack.c.b16 %v3928, %v3927
        %v3977 = vpack.c.b16 %v3930, %v3929
        %v3978 = vpack.c.b16 %v3932, %v3931
        %v3979 = vpack.c.b16 %v3934, %v3933
        %v3980 = vpack.c.b16 %v3936, %v3935
        %v3981 = vpack.c.b16 %v3938, %v3937
        %v3982 = vpack.c.b16 %v3940, %v3939
        %v3983 = vpack.c.b16 %v3942, %v3941
        %v3984 = vpack.c.b16 %v3944, %v3943
        %v3985 = vpack.c.b16 %v3946, %v3945
        %v3986 = vpack.c.b16 %v3948, %v3947
        %v3987 = vpack.c.b16 %v3950, %v3949
        %v3988 = vpack.c.b16 %v3952, %v3951
        %v3989 = vpack.c.b16 %v3954, %v3953
        %v3990 = vpack.c.b16 %v3956, %v3955
        %v3991 = vpack.c.b16 %v3958, %v3957
        %v3992 = vpack.c.b16 %v3960, %v3959
        %v3995 = vsel %vm841, %v2297, %v2490
        %v3998 = vsel %vm841, %v2298, %v2492
        %v4001 = vsel %vm841, %v2299, %v2494
        %v4004 = vsel %vm841, %v2300, %v2496
        %v4007 = vsel %vm841, %v2301, %v2498
        %v4010 = vsel %vm841, %v2302, %v2500
        %v4013 = vsel %vm841, %v2303, %v2502
        %v4016 = vsel %vm841, %v2304, %v2504
        %v4019 = vsel %vm841, %v2305, %v2506
        %v4022 = vsel %vm841, %v2306, %v2508
        %v4025 = vsel %vm841, %v2307, %v2510
        %v4028 = vsel %vm841, %v2308, %v2512
        %v4031 = vsel %vm841, %v2309, %v2514
        %v4034 = vsel %vm841, %v2310, %v2516
        %v4037 = vsel %vm841, %v2311, %v2518
        %v4040 = vsel %vm841, %v2312, %v2520
        %v4043 = vsel %vm841, %v2313, %v2522
        %v4046 = vsel %vm841, %v2314, %v2524
        %v4049 = vsel %vm841, %v2315, %v2526
        %v4052 = vsel %vm841, %v2316, %v2528
        %v4055 = vsel %vm841, %v2317, %v2530
        %v4058 = vsel %vm841, %v2318, %v2532
        %v4061 = vsel %vm841, %v2319, %v2534
        %v4064 = vsel %vm841, %v2320, %v2536
        %v4067 = vsel %vm841, %v2321, %v2538
        %v4070 = vsel %vm841, %v2322, %v2540
        %v4073 = vsel %vm841, %v2323, %v2542
        %v4076 = vsel %vm841, %v2324, %v2544
        %v4079 = vsel %vm841, %v2325, %v2546
        %v4082 = vsel %vm841, %v2326, %v2548
        %v4085 = vsel %vm841, %v2327, %v2550
        %v4088 = vsel %vm841, %v2328, %v2552
        %vm4089 = vcmask 523264
        %v4091 = vsel %vm4089, %v3995, %v2714
        %v4093 = vsel %vm4089, %v3998, %v2716
        %v4095 = vsel %vm4089, %v4001, %v2718
        %v4097 = vsel %vm4089, %v4004, %v2720
        %v4099 = vsel %vm4089, %v4007, %v2722
        %v4101 = vsel %vm4089, %v4010, %v2724
        %v4103 = vsel %vm4089, %v4013, %v2726
        %v4105 = vsel %vm4089, %v4016, %v2728
        %v4107 = vsel %vm4089, %v4019, %v2730
        %v4109 = vsel %vm4089, %v4022, %v2732
        %v4111 = vsel %vm4089, %v4025, %v2734
        %v4113 = vsel %vm4089, %v4028, %v2736
        %v4115 = vsel %vm4089, %v4031, %v2738
        %v4117 = vsel %vm4089, %v4034, %v2740
        %v4119 = vsel %vm4089, %v4037, %v2742
        %v4121 = vsel %vm4089, %v4040, %v2744
        %v4123 = vsel %vm4089, %v4043, %v2746
        %v4125 = vsel %vm4089, %v4046, %v2748
        %v4127 = vsel %vm4089, %v4049, %v2750
        %v4129 = vsel %vm4089, %v4052, %v2752
        %v4131 = vsel %vm4089, %v4055, %v2754
        %v4133 = vsel %vm4089, %v4058, %v2756
        %v4135 = vsel %vm4089, %v4061, %v2758
        %v4137 = vsel %vm4089, %v4064, %v2760
        %v4139 = vsel %vm4089, %v4067, %v2762
        %v4141 = vsel %vm4089, %v4070, %v2764
        %v4143 = vsel %vm4089, %v4073, %v2766
        %v4145 = vsel %vm4089, %v4076, %v2768
        %v4147 = vsel %vm4089, %v4079, %v2770
        %v4149 = vsel %vm4089, %v4082, %v2772
        %v4151 = vsel %vm4089, %v4085, %v2774
        %v4153 = vsel %vm4089, %v4088, %v2776
        %vm4154 = vcmask 785408
        %v4156 = vsel %vm4154, %v4091, %v2938
        %v4159 = vsel %vm4154, %v4093, %v2940
        %v4162 = vsel %vm4154, %v4095, %v2942
        %v4165 = vsel %vm4154, %v4097, %v2944
        %v4168 = vsel %vm4154, %v4099, %v2946
        %v4171 = vsel %vm4154, %v4101, %v2948
        %v4174 = vsel %vm4154, %v4103, %v2950
        %v4177 = vsel %vm4154, %v4105, %v2952
        %v4180 = vsel %vm4154, %v4107, %v2954
        %v4183 = vsel %vm4154, %v4109, %v2956
        %v4186 = vsel %vm4154, %v4111, %v2958
        %v4189 = vsel %vm4154, %v4113, %v2960
        %v4192 = vsel %vm4154, %v4115, %v2962
        %v4195 = vsel %vm4154, %v4117, %v2964
        %v4198 = vsel %vm4154, %v4119, %v2966
        %v4201 = vsel %vm4154, %v4121, %v2968
        %v4204 = vsel %vm4154, %v4123, %v2970
        %v4207 = vsel %vm4154, %v4125, %v2972
        %v4210 = vsel %vm4154, %v4127, %v2974
        %v4213 = vsel %vm4154, %v4129, %v2976
        %v4216 = vsel %vm4154, %v4131, %v2978
        %v4219 = vsel %vm4154, %v4133, %v2980
        %v4222 = vsel %vm4154, %v4135, %v2982
        %v4225 = vsel %vm4154, %v4137, %v2984
        %v4228 = vsel %vm4154, %v4139, %v2986
        %v4231 = vsel %vm4154, %v4141, %v2988
        %v4234 = vsel %vm4154, %v4143, %v2990
        %v4237 = vsel %vm4154, %v4145, %v2992
        %v4240 = vsel %vm4154, %v4147, %v2994
        %v4243 = vsel %vm4154, %v4149, %v2996
        %v4246 = vsel %vm4154, %v4151, %v2998
        %v4249 = vsel %vm4154, %v4153, %v3000
        %v4253 = vsel %vm841, %v3129, %v3322
        %v4256 = vsel %vm841, %v3130, %v3324
        %v4259 = vsel %vm841, %v3131, %v3326
        %v4262 = vsel %vm841, %v3132, %v3328
        %v4265 = vsel %vm841, %v3133, %v3330
        %v4268 = vsel %vm841, %v3134, %v3332
        %v4271 = vsel %vm841, %v3135, %v3334
        %v4274 = vsel %vm841, %v3136, %v3336
        %v4277 = vsel %vm841, %v3137, %v3338
        %v4280 = vsel %vm841, %v3138, %v3340
        %v4283 = vsel %vm841, %v3139, %v3342
        %v4286 = vsel %vm841, %v3140, %v3344
        %v4289 = vsel %vm841, %v3141, %v3346
        %v4292 = vsel %vm841, %v3142, %v3348
        %v4295 = vsel %vm841, %v3143, %v3350
        %v4298 = vsel %vm841, %v3144, %v3352
        %v4301 = vsel %vm841, %v3145, %v3354
        %v4304 = vsel %vm841, %v3146, %v3356
        %v4307 = vsel %vm841, %v3147, %v3358
        %v4310 = vsel %vm841, %v3148, %v3360
        %v4313 = vsel %vm841, %v3149, %v3362
        %v4316 = vsel %vm841, %v3150, %v3364
        %v4319 = vsel %vm841, %v3151, %v3366
        %v4322 = vsel %vm841, %v3152, %v3368
        %v4325 = vsel %vm841, %v3153, %v3370
        %v4328 = vsel %vm841, %v3154, %v3372
        %v4331 = vsel %vm841, %v3155, %v3374
        %v4334 = vsel %vm841, %v3156, %v3376
        %v4337 = vsel %vm841, %v3157, %v3378
        %v4340 = vsel %vm841, %v3158, %v3380
        %v4343 = vsel %vm841, %v3159, %v3382
        %v4346 = vsel %vm841, %v3160, %v3384
        %v4348 = vsel %vm4089, %v4253, %v3546
        %v4350 = vsel %vm4089, %v4256, %v3548
        %v4352 = vsel %vm4089, %v4259, %v3550
        %v4354 = vsel %vm4089, %v4262, %v3552
        %v4356 = vsel %vm4089, %v4265, %v3554
        %v4358 = vsel %vm4089, %v4268, %v3556
        %v4360 = vsel %vm4089, %v4271, %v3558
        %v4362 = vsel %vm4089, %v4274, %v3560
        %v4364 = vsel %vm4089, %v4277, %v3562
        %v4366 = vsel %vm4089, %v4280, %v3564
        %v4368 = vsel %vm4089, %v4283, %v3566
        %v4370 = vsel %vm4089, %v4286, %v3568
        %v4372 = vsel %vm4089, %v4289, %v3570
        %v4374 = vsel %vm4089, %v4292, %v3572
        %v4376 = vsel %vm4089, %v4295, %v3574
        %v4378 = vsel %vm4089, %v4298, %v3576
        %v4380 = vsel %vm4089, %v4301, %v3578
        %v4382 = vsel %vm4089, %v4304, %v3580
        %v4384 = vsel %vm4089, %v4307, %v3582
        %v4386 = vsel %vm4089, %v4310, %v3584
        %v4388 = vsel %vm4089, %v4313, %v3586
        %v4390 = vsel %vm4089, %v4316, %v3588
        %v4392 = vsel %vm4089, %v4319, %v3590
        %v4394 = vsel %vm4089, %v4322, %v3592
        %v4396 = vsel %vm4089, %v4325, %v3594
        %v4398 = vsel %vm4089, %v4328, %v3596
        %v4400 = vsel %vm4089, %v4331, %v3598
        %v4402 = vsel %vm4089, %v4334, %v3600
        %v4404 = vsel %vm4089, %v4337, %v3602
        %v4406 = vsel %vm4089, %v4340, %v3604
        %v4408 = vsel %vm4089, %v4343, %v3606
        %v4410 = vsel %vm4089, %v4346, %v3608
        %v4412 = vsel %vm4154, %v4348, %v3770
        %v4415 = vsel %vm4154, %v4350, %v3772
        %v4418 = vsel %vm4154, %v4352, %v3774
        %v4421 = vsel %vm4154, %v4354, %v3776
        %v4424 = vsel %vm4154, %v4356, %v3778
        %v4427 = vsel %vm4154, %v4358, %v3780
        %v4430 = vsel %vm4154, %v4360, %v3782
        %v4433 = vsel %vm4154, %v4362, %v3784
        %v4436 = vsel %vm4154, %v4364, %v3786
        %v4439 = vsel %vm4154, %v4366, %v3788
        %v4442 = vsel %vm4154, %v4368, %v3790
        %v4445 = vsel %vm4154, %v4370, %v3792
        %v4448 = vsel %vm4154, %v4372, %v3794
        %v4451 = vsel %vm4154, %v4374, %v3796
        %v4454 = vsel %vm4154, %v4376, %v3798
        %v4457 = vsel %vm4154, %v4378, %v3800
        %v4460 = vsel %vm4154, %v4380, %v3802
        %v4463 = vsel %vm4154, %v4382, %v3804
        %v4466 = vsel %vm4154, %v4384, %v3806
        %v4469 = vsel %vm4154, %v4386, %v3808
        %v4472 = vsel %vm4154, %v4388, %v3810
        %v4475 = vsel %vm4154, %v4390, %v3812
        %v4478 = vsel %vm4154, %v4392, %v3814
        %v4481 = vsel %vm4154, %v4394, %v3816
        %v4484 = vsel %vm4154, %v4396, %v3818
        %v4487 = vsel %vm4154, %v4398, %v3820
        %v4490 = vsel %vm4154, %v4400, %v3822
        %v4493 = vsel %vm4154, %v4402, %v3824
        %v4496 = vsel %vm4154, %v4404, %v3826
        %v4499 = vsel %vm4154, %v4406, %v3828
        %v4502 = vsel %vm4154, %v4408, %v3830
        %v4505 = vsel %vm4154, %v4410, %v3832
        %v4507 = vld [vmem:[%s3] sm:$0xf]
        %v4508 = vld [vmem:[%s3 + $0x4] sm:$0xf]
        %v4509 = vld [vmem:[%s3 + $0x8] sm:$0xf]
        %v4510 = vld [vmem:[%s3 + $0xc] sm:$0xf]
        %v4511 = vld [vmem:[%s3 + $0x10] sm:$0xf]
        %v4512 = vld [vmem:[%s3 + $0x14] sm:$0xf]
        %v4513 = vld [vmem:[%s3 + $0x18] sm:$0xf]
        %v4514 = vld [vmem:[%s3 + $0x1c] sm:$0xf]
        %v4515 = vld [vmem:[%s3 + $0x20] sm:$0xf]
        %v4516 = vld [vmem:[%s3 + $0x24] sm:$0xf]
        %v4517 = vld [vmem:[%s3 + $0x28] sm:$0xf]
        %v4518 = vld [vmem:[%s3 + $0x2c] sm:$0xf]
        %v4519 = vld [vmem:[%s3 + $0x30] sm:$0xf]
        %v4520 = vld [vmem:[%s3 + $0x34] sm:$0xf]
        %v4521 = vld [vmem:[%s3 + $0x38] sm:$0xf]
        %v4522 = vld [vmem:[%s3 + $0x3c] sm:$0xf]
        %v4523 = vld [vmem:[%s3 + $0x40] sm:$0xf]
        %v4524 = vld [vmem:[%s3 + $0x44] sm:$0xf]
        %v4525 = vld [vmem:[%s3 + $0x48] sm:$0xf]
        %v4526 = vld [vmem:[%s3 + $0x4c] sm:$0xf]
        %v4527 = vld [vmem:[%s3 + $0x50] sm:$0xf]
        %v4528 = vld [vmem:[%s3 + $0x54] sm:$0xf]
        %v4529 = vld [vmem:[%s3 + $0x58] sm:$0xf]
        %v4530 = vld [vmem:[%s3 + $0x5c] sm:$0xf]
        %v4531 = vld [vmem:[%s3 + $0x60] sm:$0xf]
        %v4532 = vld [vmem:[%s3 + $0x64] sm:$0xf]
        %v4533 = vld [vmem:[%s3 + $0x68] sm:$0xf]
        %v4534 = vld [vmem:[%s3 + $0x6c] sm:$0xf]
        %v4535 = vld [vmem:[%s3 + $0x70] sm:$0xf]
        %v4536 = vld [vmem:[%s3 + $0x74] sm:$0xf]
        %v4537 = vld [vmem:[%s3 + $0x78] sm:$0xf]
        %v4538 = vld [vmem:[%s3 + $0x7c] sm:$0xf]
        %v4539 = vld [vmem:[%s3 + $0x80] sm:$0xf]
        %v4540 = vld [vmem:[%s3 + $0x84] sm:$0xf]
        %v4541 = vld [vmem:[%s3 + $0x88] sm:$0xf]
        %v4542 = vld [vmem:[%s3 + $0x8c] sm:$0xf]
        %v4543 = vld [vmem:[%s4] sm:$0x1]
        %v4545 = vperm.slane %v4543, 0
        %v4583 = vunpack.c.l.b16 %v4507
        %v4584 = vunpack.c.l.b16 %v4508
        %v4585 = vunpack.c.l.b16 %v4509
        %v4586 = vunpack.c.l.b16 %v4510
        %v4587 = vunpack.c.l.b16 %v4511
        %v4588 = vunpack.c.l.b16 %v4512
        %v4589 = vunpack.c.l.b16 %v4513
        %v4590 = vunpack.c.l.b16 %v4514
        %v4591 = vunpack.c.l.b16 %v4515
        %v4592 = vunpack.c.l.b16 %v4516
        %v4593 = vunpack.c.l.b16 %v4517
        %v4594 = vunpack.c.l.b16 %v4518
        %v4595 = vunpack.c.l.b16 %v4519
        %v4596 = vunpack.c.l.b16 %v4520
        %v4597 = vunpack.c.l.b16 %v4521
        %v4598 = vunpack.c.l.b16 %v4522
        %v4599 = vunpack.c.l.b16 %v4523
        %v4600 = vunpack.c.l.b16 %v4524
        %v4601 = vunpack.c.l.b16 %v4525
        %v4602 = vunpack.c.l.b16 %v4526
        %v4603 = vunpack.c.l.b16 %v4527
        %v4604 = vunpack.c.l.b16 %v4528
        %v4605 = vunpack.c.l.b16 %v4529
        %v4606 = vunpack.c.l.b16 %v4530
        %v4607 = vunpack.c.l.b16 %v4531
        %v4608 = vunpack.c.l.b16 %v4532
        %v4609 = vunpack.c.l.b16 %v4533
        %v4610 = vunpack.c.l.b16 %v4534
        %v4611 = vunpack.c.l.b16 %v4535
        %v4612 = vunpack.c.l.b16 %v4536
        %v4613 = vunpack.c.l.b16 %v4537
        %v4614 = vunpack.c.l.b16 %v4538
        %v4615 = vunpack.c.l.b16 %v4539
        %v4616 = vunpack.c.l.b16 %v4540
        %v4617 = vunpack.c.l.b16 %v4541
        %v4618 = vunpack.c.l.b16 %v4542
        %v4619 = vpack.c.b16 %v4584, %v4583
        %v4620 = vpack.c.b16 %v4586, %v4585
        %v4621 = vpack.c.b16 %v4588, %v4587
        %v4622 = vpack.c.b16 %v4590, %v4589
        %v4623 = vpack.c.b16 %v4592, %v4591
        %v4624 = vpack.c.b16 %v4594, %v4593
        %v4625 = vpack.c.b16 %v4596, %v4595
        %v4626 = vpack.c.b16 %v4598, %v4597
        %v4627 = vpack.c.b16 %v4600, %v4599
        %v4628 = vpack.c.b16 %v4602, %v4601
        %v4629 = vpack.c.b16 %v4604, %v4603
        %v4630 = vpack.c.b16 %v4606, %v4605
        %v4631 = vpack.c.b16 %v4608, %v4607
        %v4632 = vpack.c.b16 %v4610, %v4609
        %v4633 = vpack.c.b16 %v4612, %v4611
        %v4634 = vpack.c.b16 %v4614, %v4613
        %v4635 = vpack.c.b16 %v4616, %v4615
        %v4636 = vpack.c.b16 %v4618, %v4617
        %v4656 = vsel %vm841, %v3961, 0
        %v4659 = vsel %vm841, %v3962, 0
        %v4662 = vsel %vm841, %v3963, 0
        %v4665 = vsel %vm841, %v3964, 0
        %v4668 = vsel %vm841, %v3965, 0
        %v4671 = vsel %vm841, %v3966, 0
        %v4674 = vsel %vm841, %v3967, 0
        %v4677 = vsel %vm841, %v3968, 0
        %v4680 = vsel %vm841, %v3969, 0
        %v4683 = vsel %vm841, %v3970, 0
        %v4686 = vsel %vm841, %v3971, 0
        %v4689 = vsel %vm841, %v3972, 0
        %v4692 = vsel %vm841, %v3973, 0
        %v4695 = vsel %vm841, %v3974, 0
        %v4698 = vsel %vm841, %v3975, 0
        %v4701 = vsel %vm841, %v3976, 0
        %v4704 = vsel %vm841, %v3977, 0
        %v4707 = vsel %vm841, %v3978, 0
        %v4710 = vsel %vm841, %v3979, 0
        %v4713 = vsel %vm841, %v3980, 0
        %v4716 = vsel %vm841, %v3981, 0
        %v4719 = vsel %vm841, %v3982, 0
        %v4722 = vsel %vm841, %v3983, 0
        %v4725 = vsel %vm841, %v3984, 0
        %v4728 = vsel %vm841, %v3985, 0
        %v4731 = vsel %vm841, %v3986, 0
        %v4734 = vsel %vm841, %v3987, 0
        %v4737 = vsel %vm841, %v3988, 0
        %v4740 = vsel %vm841, %v3989, 0
        %v4743 = vsel %vm841, %v3990, 0
        %v4746 = vsel %vm841, %v3991, 0
        %v4749 = vsel %vm841, %v3992, 0
        %4751 = vmatpush.bf16.msra.mxu0 %v4626
        %4752 = vmatpush.bf16.msra.mxu0 %v4625
        %4753 = vmatpush.bf16.msra.mxu0 %v4624
        %4754 = vmatpush.bf16.msra.mxu0 %v4623
        %4755 = vmatpush.bf16.msra.mxu0 %v4622
        %4756 = vmatpush.bf16.msra.mxu0 %v4621
        %4757 = vmatpush.bf16.msra.mxu0 %v4620
        %4758 = vmatpush.bf16.msra.mxu0 %v4619
        %4759 = vmatmul.bf16.gmra.mxu0 %v4156
        %v4760 = vpop.f32.mrf.mxu0
        %v4761 = vadd.f32 %v4545, %v4760
        %v4762 = vpop.f32.mrf.mxu0
        %v4763 = vadd.f32 %v4545, %v4762
        %4764 = vmatmul.bf16.gmra.mxu0 %v4159
        %v4765 = vpop.f32.mrf.mxu0
        %v4766 = vadd.f32 %v4545, %v4765
        %v4767 = vpop.f32.mrf.mxu0
        %v4768 = vadd.f32 %v4545, %v4767
        %4769 = vmatmul.bf16.gmra.mxu0 %v4162
        %v4770 = vpop.f32.mrf.mxu0
        %v4771 = vadd.f32 %v4545, %v4770
        %v4772 = vpop.f32.mrf.mxu0
        %v4773 = vadd.f32 %v4545, %v4772
        %4774 = vmatmul.bf16.gmra.mxu0 %v4165
        %v4775 = vpop.f32.mrf.mxu0
        %v4776 = vadd.f32 %v4545, %v4775
        %v4777 = vpop.f32.mrf.mxu0
        %v4778 = vadd.f32 %v4545, %v4777
        %4779 = vmatmul.bf16.gmra.mxu0 %v4168
        %v4780 = vpop.f32.mrf.mxu0
        %v4781 = vadd.f32 %v4545, %v4780
        %v4782 = vpop.f32.mrf.mxu0
        %v4783 = vadd.f32 %v4545, %v4782
        %4784 = vmatmul.bf16.gmra.mxu0 %v4171
        %v4785 = vpop.f32.mrf.mxu0
        %v4786 = vadd.f32 %v4545, %v4785
        %v4787 = vpop.f32.mrf.mxu0
        %v4788 = vadd.f32 %v4545, %v4787
        %4789 = vmatmul.bf16.gmra.mxu0 %v4174
        %v4790 = vpop.f32.mrf.mxu0
        %v4791 = vadd.f32 %v4545, %v4790
        %v4792 = vpop.f32.mrf.mxu0
        %v4793 = vadd.f32 %v4545, %v4792
        %4794 = vmatmul.bf16.gmra.mxu0 %v4177
        %v4795 = vpop.f32.mrf.mxu0
        %v4796 = vadd.f32 %v4545, %v4795
        %v4797 = vpop.f32.mrf.mxu0
        %v4798 = vadd.f32 %v4545, %v4797
        %4799 = vmatmul.bf16.gmra.mxu0 %v4180
        %v4800 = vpop.f32.mrf.mxu0
        %v4801 = vadd.f32 %v4545, %v4800
        %v4802 = vpop.f32.mrf.mxu0
        %v4803 = vadd.f32 %v4545, %v4802
        %4804 = vmatmul.bf16.gmra.mxu0 %v4183
        %v4805 = vpop.f32.mrf.mxu0
        %v4806 = vadd.f32 %v4545, %v4805
        %v4807 = vpop.f32.mrf.mxu0
        %v4808 = vadd.f32 %v4545, %v4807
        %4809 = vmatmul.bf16.gmra.mxu0 %v4186
        %v4810 = vpop.f32.mrf.mxu0
        %v4811 = vadd.f32 %v4545, %v4810
        %v4812 = vpop.f32.mrf.mxu0
        %v4813 = vadd.f32 %v4545, %v4812
        %4814 = vmatmul.bf16.gmra.mxu0 %v4189
        %v4815 = vpop.f32.mrf.mxu0
        %v4816 = vadd.f32 %v4545, %v4815
        %v4817 = vpop.f32.mrf.mxu0
        %v4818 = vadd.f32 %v4545, %v4817
        %4819 = vmatmul.bf16.gmra.mxu0 %v4192
        %v4820 = vpop.f32.mrf.mxu0
        %v4821 = vadd.f32 %v4545, %v4820
        %v4822 = vpop.f32.mrf.mxu0
        %v4823 = vadd.f32 %v4545, %v4822
        %4824 = vmatmul.bf16.gmra.mxu0 %v4195
        %v4825 = vpop.f32.mrf.mxu0
        %v4826 = vadd.f32 %v4545, %v4825
        %v4827 = vpop.f32.mrf.mxu0
        %v4828 = vadd.f32 %v4545, %v4827
        %4829 = vmatmul.bf16.gmra.mxu0 %v4198
        %v4830 = vpop.f32.mrf.mxu0
        %v4831 = vadd.f32 %v4545, %v4830
        %v4832 = vpop.f32.mrf.mxu0
        %v4833 = vadd.f32 %v4545, %v4832
        %4834 = vmatmul.bf16.gmra.mxu0 %v4201
        %v4835 = vpop.f32.mrf.mxu0
        %v4836 = vadd.f32 %v4545, %v4835
        %v4837 = vpop.f32.mrf.mxu0
        %v4838 = vadd.f32 %v4545, %v4837
        %4839 = vmatmul.bf16.gmra.mxu0 %v4204
        %v4840 = vpop.f32.mrf.mxu0
        %v4841 = vadd.f32 %v4545, %v4840
        %v4842 = vpop.f32.mrf.mxu0
        %v4843 = vadd.f32 %v4545, %v4842
        %4844 = vmatmul.bf16.gmra.mxu0 %v4207
        %v4845 = vpop.f32.mrf.mxu0
        %v4846 = vadd.f32 %v4545, %v4845
        %v4847 = vpop.f32.mrf.mxu0
        %v4848 = vadd.f32 %v4545, %v4847
        %4849 = vmatmul.bf16.gmra.mxu0 %v4210
        %v4850 = vpop.f32.mrf.mxu0
        %v4851 = vadd.f32 %v4545, %v4850
        %v4852 = vpop.f32.mrf.mxu0
        %v4853 = vadd.f32 %v4545, %v4852
        %4854 = vmatmul.bf16.gmra.mxu0 %v4213
        %v4855 = vpop.f32.mrf.mxu0
        %v4856 = vadd.f32 %v4545, %v4855
        %v4857 = vpop.f32.mrf.mxu0
        %v4858 = vadd.f32 %v4545, %v4857
        %4859 = vmatmul.bf16.gmra.mxu0 %v4216
        %v4860 = vpop.f32.mrf.mxu0
        %v4861 = vadd.f32 %v4545, %v4860
        %v4862 = vpop.f32.mrf.mxu0
        %v4863 = vadd.f32 %v4545, %v4862
        %4864 = vmatmul.bf16.gmra.mxu0 %v4219
        %v4865 = vpop.f32.mrf.mxu0
        %v4866 = vadd.f32 %v4545, %v4865
        %v4867 = vpop.f32.mrf.mxu0
        %v4868 = vadd.f32 %v4545, %v4867
        %4869 = vmatmul.bf16.gmra.mxu0 %v4222
        %v4870 = vpop.f32.mrf.mxu0
        %v4871 = vadd.f32 %v4545, %v4870
        %v4872 = vpop.f32.mrf.mxu0
        %v4873 = vadd.f32 %v4545, %v4872
        %4874 = vmatmul.bf16.gmra.mxu0 %v4225
        %v4875 = vpop.f32.mrf.mxu0
        %v4876 = vadd.f32 %v4545, %v4875
        %v4877 = vpop.f32.mrf.mxu0
        %v4878 = vadd.f32 %v4545, %v4877
        %4879 = vmatmul.bf16.gmra.mxu0 %v4228
        %v4880 = vpop.f32.mrf.mxu0
        %v4881 = vadd.f32 %v4545, %v4880
        %v4882 = vpop.f32.mrf.mxu0
        %v4883 = vadd.f32 %v4545, %v4882
        %4884 = vmatmul.bf16.gmra.mxu0 %v4231
        %v4885 = vpop.f32.mrf.mxu0
        %v4886 = vadd.f32 %v4545, %v4885
        %v4887 = vpop.f32.mrf.mxu0
        %v4888 = vadd.f32 %v4545, %v4887
        %4889 = vmatmul.bf16.gmra.mxu0 %v4234
        %v4890 = vpop.f32.mrf.mxu0
        %v4891 = vadd.f32 %v4545, %v4890
        %v4892 = vpop.f32.mrf.mxu0
        %v4893 = vadd.f32 %v4545, %v4892
        %4894 = vmatmul.bf16.gmra.mxu0 %v4237
        %v4895 = vpop.f32.mrf.mxu0
        %v4896 = vadd.f32 %v4545, %v4895
        %v4897 = vpop.f32.mrf.mxu0
        %v4898 = vadd.f32 %v4545, %v4897
        %4899 = vmatmul.bf16.gmra.mxu0 %v4240
        %v4900 = vpop.f32.mrf.mxu0
        %v4901 = vadd.f32 %v4545, %v4900
        %v4902 = vpop.f32.mrf.mxu0
        %v4903 = vadd.f32 %v4545, %v4902
        %4904 = vmatmul.bf16.gmra.mxu0 %v4243
        %v4905 = vpop.f32.mrf.mxu0
        %v4906 = vadd.f32 %v4545, %v4905
        %v4907 = vpop.f32.mrf.mxu0
        %v4908 = vadd.f32 %v4545, %v4907
        %4909 = vmatmul.bf16.gmra.mxu0 %v4246
        %v4910 = vpop.f32.mrf.mxu0
        %v4911 = vadd.f32 %v4545, %v4910
        %v4912 = vpop.f32.mrf.mxu0
        %v4913 = vadd.f32 %v4545, %v4912
        %4914 = vmatmul.bf16.gmra.mxu0 %v4249
        %v4915 = vpop.f32.mrf.mxu0
        %v4916 = vadd.f32 %v4545, %v4915
        %v4917 = vpop.f32.mrf.mxu0
        %v4918 = vadd.f32 %v4545, %v4917
        %4919 = vdwg.mxu0
        %4920 = vmatpush.bf16.msra.mxu0 %v4634
        %4921 = vmatpush.bf16.msra.mxu0 %v4633
        %4922 = vmatpush.bf16.msra.mxu0 %v4632
        %4923 = vmatpush.bf16.msra.mxu0 %v4631
        %4924 = vmatpush.bf16.msra.mxu0 %v4630
        %4925 = vmatpush.bf16.msra.mxu0 %v4629
        %4926 = vmatpush.bf16.msra.mxu0 %v4628
        %4927 = vmatpush.bf16.msra.mxu0 %v4627
        %4928 = vmatmul.bf16.gmra.mxu0 %v4412
        %v4929 = vpop.f32.mrf.mxu0
        %v4930 = vadd.f32 %v4761, %v4929
        %v4931 = vpop.f32.mrf.mxu0
        %v4932 = vadd.f32 %v4763, %v4931
        %4933 = vmatmul.bf16.gmra.mxu0 %v4415
        %v4934 = vpop.f32.mrf.mxu0
        %v4935 = vadd.f32 %v4766, %v4934
        %v4936 = vpop.f32.mrf.mxu0
        %v4937 = vadd.f32 %v4768, %v4936
        %4938 = vmatmul.bf16.gmra.mxu0 %v4418
        %v4939 = vpop.f32.mrf.mxu0
        %v4940 = vadd.f32 %v4771, %v4939
        %v4941 = vpop.f32.mrf.mxu0
        %v4942 = vadd.f32 %v4773, %v4941
        %4943 = vmatmul.bf16.gmra.mxu0 %v4421
        %v4944 = vpop.f32.mrf.mxu0
        %v4945 = vadd.f32 %v4776, %v4944
        %v4946 = vpop.f32.mrf.mxu0
        %v4947 = vadd.f32 %v4778, %v4946
        %4948 = vmatmul.bf16.gmra.mxu0 %v4424
        %v4949 = vpop.f32.mrf.mxu0
        %v4950 = vadd.f32 %v4781, %v4949
        %v4951 = vpop.f32.mrf.mxu0
        %v4952 = vadd.f32 %v4783, %v4951
        %4953 = vmatmul.bf16.gmra.mxu0 %v4427
        %v4954 = vpop.f32.mrf.mxu0
        %v4955 = vadd.f32 %v4786, %v4954
        %v4956 = vpop.f32.mrf.mxu0
        %v4957 = vadd.f32 %v4788, %v4956
        %4958 = vmatmul.bf16.gmra.mxu0 %v4430
        %v4959 = vpop.f32.mrf.mxu0
        %v4960 = vadd.f32 %v4791, %v4959
        %v4961 = vpop.f32.mrf.mxu0
        %v4962 = vadd.f32 %v4793, %v4961
        %4963 = vmatmul.bf16.gmra.mxu0 %v4433
        %v4964 = vpop.f32.mrf.mxu0
        %v4965 = vadd.f32 %v4796, %v4964
        %v4966 = vpop.f32.mrf.mxu0
        %v4967 = vadd.f32 %v4798, %v4966
        %4968 = vmatmul.bf16.gmra.mxu0 %v4436
        %v4969 = vpop.f32.mrf.mxu0
        %v4970 = vadd.f32 %v4801, %v4969
        %v4971 = vpop.f32.mrf.mxu0
        %v4972 = vadd.f32 %v4803, %v4971
        %4973 = vmatmul.bf16.gmra.mxu0 %v4439
        %v4974 = vpop.f32.mrf.mxu0
        %v4975 = vadd.f32 %v4806, %v4974
        %v4976 = vpop.f32.mrf.mxu0
        %v4977 = vadd.f32 %v4808, %v4976
        %4978 = vmatmul.bf16.gmra.mxu0 %v4442
        %v4979 = vpop.f32.mrf.mxu0
        %v4980 = vadd.f32 %v4811, %v4979
        %v4981 = vpop.f32.mrf.mxu0
        %v4982 = vadd.f32 %v4813, %v4981
        %4983 = vmatmul.bf16.gmra.mxu0 %v4445
        %v4984 = vpop.f32.mrf.mxu0
        %v4985 = vadd.f32 %v4816, %v4984
        %v4986 = vpop.f32.mrf.mxu0
        %v4987 = vadd.f32 %v4818, %v4986
        %4988 = vmatmul.bf16.gmra.mxu0 %v4448
        %v4989 = vpop.f32.mrf.mxu0
        %v4990 = vadd.f32 %v4821, %v4989
        %v4991 = vpop.f32.mrf.mxu0
        %v4992 = vadd.f32 %v4823, %v4991
        %4993 = vmatmul.bf16.gmra.mxu0 %v4451
        %v4994 = vpop.f32.mrf.mxu0
        %v4995 = vadd.f32 %v4826, %v4994
        %v4996 = vpop.f32.mrf.mxu0
        %v4997 = vadd.f32 %v4828, %v4996
        %4998 = vmatmul.bf16.gmra.mxu0 %v4454
        %v4999 = vpop.f32.mrf.mxu0
        %v5000 = vadd.f32 %v4831, %v4999
        %v5001 = vpop.f32.mrf.mxu0
        %v5002 = vadd.f32 %v4833, %v5001
        %5003 = vmatmul.bf16.gmra.mxu0 %v4457
        %v5004 = vpop.f32.mrf.mxu0
        %v5005 = vadd.f32 %v4836, %v5004
        %v5006 = vpop.f32.mrf.mxu0
        %v5007 = vadd.f32 %v4838, %v5006
        %5008 = vmatmul.bf16.gmra.mxu0 %v4460
        %v5009 = vpop.f32.mrf.mxu0
        %v5010 = vadd.f32 %v4841, %v5009
        %v5011 = vpop.f32.mrf.mxu0
        %v5012 = vadd.f32 %v4843, %v5011
        %5013 = vmatmul.bf16.gmra.mxu0 %v4463
        %v5014 = vpop.f32.mrf.mxu0
        %v5015 = vadd.f32 %v4846, %v5014
        %v5016 = vpop.f32.mrf.mxu0
        %v5017 = vadd.f32 %v4848, %v5016
        %5018 = vmatmul.bf16.gmra.mxu0 %v4466
        %v5019 = vpop.f32.mrf.mxu0
        %v5020 = vadd.f32 %v4851, %v5019
        %v5021 = vpop.f32.mrf.mxu0
        %v5022 = vadd.f32 %v4853, %v5021
        %5023 = vmatmul.bf16.gmra.mxu0 %v4469
        %v5024 = vpop.f32.mrf.mxu0
        %v5025 = vadd.f32 %v4856, %v5024
        %v5026 = vpop.f32.mrf.mxu0
        %v5027 = vadd.f32 %v4858, %v5026
        %5028 = vmatmul.bf16.gmra.mxu0 %v4472
        %v5029 = vpop.f32.mrf.mxu0
        %v5030 = vadd.f32 %v4861, %v5029
        %v5031 = vpop.f32.mrf.mxu0
        %v5032 = vadd.f32 %v4863, %v5031
        %5033 = vmatmul.bf16.gmra.mxu0 %v4475
        %v5034 = vpop.f32.mrf.mxu0
        %v5035 = vadd.f32 %v4866, %v5034
        %v5036 = vpop.f32.mrf.mxu0
        %v5037 = vadd.f32 %v4868, %v5036
        %5038 = vmatmul.bf16.gmra.mxu0 %v4478
        %v5039 = vpop.f32.mrf.mxu0
        %v5040 = vadd.f32 %v4871, %v5039
        %v5041 = vpop.f32.mrf.mxu0
        %v5042 = vadd.f32 %v4873, %v5041
        %5043 = vmatmul.bf16.gmra.mxu0 %v4481
        %v5044 = vpop.f32.mrf.mxu0
        %v5045 = vadd.f32 %v4876, %v5044
        %v5046 = vpop.f32.mrf.mxu0
        %v5047 = vadd.f32 %v4878, %v5046
        %5048 = vmatmul.bf16.gmra.mxu0 %v4484
        %v5049 = vpop.f32.mrf.mxu0
        %v5050 = vadd.f32 %v4881, %v5049
        %v5051 = vpop.f32.mrf.mxu0
        %v5052 = vadd.f32 %v4883, %v5051
        %5053 = vmatmul.bf16.gmra.mxu0 %v4487
        %v5054 = vpop.f32.mrf.mxu0
        %v5055 = vadd.f32 %v4886, %v5054
        %v5056 = vpop.f32.mrf.mxu0
        %v5057 = vadd.f32 %v4888, %v5056
        %5058 = vmatmul.bf16.gmra.mxu0 %v4490
        %v5059 = vpop.f32.mrf.mxu0
        %v5060 = vadd.f32 %v4891, %v5059
        %v5061 = vpop.f32.mrf.mxu0
        %v5062 = vadd.f32 %v4893, %v5061
        %5063 = vmatmul.bf16.gmra.mxu0 %v4493
        %v5064 = vpop.f32.mrf.mxu0
        %v5065 = vadd.f32 %v4896, %v5064
        %v5066 = vpop.f32.mrf.mxu0
        %v5067 = vadd.f32 %v4898, %v5066
        %5068 = vmatmul.bf16.gmra.mxu0 %v4496
        %v5069 = vpop.f32.mrf.mxu0
        %v5070 = vadd.f32 %v4901, %v5069
        %v5071 = vpop.f32.mrf.mxu0
        %v5072 = vadd.f32 %v4903, %v5071
        %5073 = vmatmul.bf16.gmra.mxu0 %v4499
        %v5074 = vpop.f32.mrf.mxu0
        %v5075 = vadd.f32 %v4906, %v5074
        %v5076 = vpop.f32.mrf.mxu0
        %v5077 = vadd.f32 %v4908, %v5076
        %5078 = vmatmul.bf16.gmra.mxu0 %v4502
        %v5079 = vpop.f32.mrf.mxu0
        %v5080 = vadd.f32 %v4911, %v5079
        %v5081 = vpop.f32.mrf.mxu0
        %v5082 = vadd.f32 %v4913, %v5081
        %5083 = vmatmul.bf16.gmra.mxu0 %v4505
        %v5084 = vpop.f32.mrf.mxu0
        %v5085 = vadd.f32 %v4916, %v5084
        %v5086 = vpop.f32.mrf.mxu0
        %v5087 = vadd.f32 %v4918, %v5086
        %5088 = vdwg.mxu0
        %5089 = vmatpush.bf16.msra.mxu0 0
        %5090 = vmatpush.bf16.msra.mxu0 0
        %5091 = vmatpush.bf16.msra.mxu0 0
        %5092 = vmatpush.bf16.msra.mxu0 0
        %5093 = vmatpush.bf16.msra.mxu0 0
        %5094 = vmatpush.bf16.msra.mxu0 0
        %5095 = vmatpush.bf16.msra.mxu0 %v4636
        %5096 = vmatpush.bf16.msra.mxu0 %v4635
        %5097 = vmatmul.bf16.gmra.mxu0 %v4656
        %v5098 = vpop.f32.mrf.mxu0
        %v5099 = vadd.f32 %v4930, %v5098
        %v5100 = vpop.f32.mrf.mxu0
        %v5101 = vadd.f32 %v4932, %v5100
        %5102 = vmatmul.bf16.gmra.mxu0 %v4659
        %v5103 = vpop.f32.mrf.mxu0
        %v5104 = vadd.f32 %v4935, %v5103
        %v5105 = vpop.f32.mrf.mxu0
        %v5106 = vadd.f32 %v4937, %v5105
        %5107 = vmatmul.bf16.gmra.mxu0 %v4662
        %v5108 = vpop.f32.mrf.mxu0
        %v5109 = vadd.f32 %v4940, %v5108
        %v5110 = vpop.f32.mrf.mxu0
        %v5111 = vadd.f32 %v4942, %v5110
        %5112 = vmatmul.bf16.gmra.mxu0 %v4665
        %v5113 = vpop.f32.mrf.mxu0
        %v5114 = vadd.f32 %v4945, %v5113
        %v5115 = vpop.f32.mrf.mxu0
        %v5116 = vadd.f32 %v4947, %v5115
        %5117 = vmatmul.bf16.gmra.mxu0 %v4668
        %v5118 = vpop.f32.mrf.mxu0
        %v5119 = vadd.f32 %v4950, %v5118
        %v5120 = vpop.f32.mrf.mxu0
        %v5121 = vadd.f32 %v4952, %v5120
        %5122 = vmatmul.bf16.gmra.mxu0 %v4671
        %v5123 = vpop.f32.mrf.mxu0
        %v5124 = vadd.f32 %v4955, %v5123
        %v5125 = vpop.f32.mrf.mxu0
        %v5126 = vadd.f32 %v4957, %v5125
        %5127 = vmatmul.bf16.gmra.mxu0 %v4674
        %v5128 = vpop.f32.mrf.mxu0
        %v5129 = vadd.f32 %v4960, %v5128
        %v5130 = vpop.f32.mrf.mxu0
        %v5131 = vadd.f32 %v4962, %v5130
        %5132 = vmatmul.bf16.gmra.mxu0 %v4677
        %v5133 = vpop.f32.mrf.mxu0
        %v5134 = vadd.f32 %v4965, %v5133
        %v5135 = vpop.f32.mrf.mxu0
        %v5136 = vadd.f32 %v4967, %v5135
        %5137 = vmatmul.bf16.gmra.mxu0 %v4680
        %v5138 = vpop.f32.mrf.mxu0
        %v5139 = vadd.f32 %v4970, %v5138
        %v5140 = vpop.f32.mrf.mxu0
        %v5141 = vadd.f32 %v4972, %v5140
        %5142 = vmatmul.bf16.gmra.mxu0 %v4683
        %v5143 = vpop.f32.mrf.mxu0
        %v5144 = vadd.f32 %v4975, %v5143
        %v5145 = vpop.f32.mrf.mxu0
        %v5146 = vadd.f32 %v4977, %v5145
        %5147 = vmatmul.bf16.gmra.mxu0 %v4686
        %v5148 = vpop.f32.mrf.mxu0
        %v5149 = vadd.f32 %v4980, %v5148
        %v5150 = vpop.f32.mrf.mxu0
        %v5151 = vadd.f32 %v4982, %v5150
        %5152 = vmatmul.bf16.gmra.mxu0 %v4689
        %v5153 = vpop.f32.mrf.mxu0
        %v5154 = vadd.f32 %v4985, %v5153
        %v5155 = vpop.f32.mrf.mxu0
        %v5156 = vadd.f32 %v4987, %v5155
        %5157 = vmatmul.bf16.gmra.mxu0 %v4692
        %v5158 = vpop.f32.mrf.mxu0
        %v5159 = vadd.f32 %v4990, %v5158
        %v5160 = vpop.f32.mrf.mxu0
        %v5161 = vadd.f32 %v4992, %v5160
        %5162 = vmatmul.bf16.gmra.mxu0 %v4695
        %v5163 = vpop.f32.mrf.mxu0
        %v5164 = vadd.f32 %v4995, %v5163
        %v5165 = vpop.f32.mrf.mxu0
        %v5166 = vadd.f32 %v4997, %v5165
        %5167 = vmatmul.bf16.gmra.mxu0 %v4698
        %v5168 = vpop.f32.mrf.mxu0
        %v5169 = vadd.f32 %v5000, %v5168
        %v5170 = vpop.f32.mrf.mxu0
        %v5171 = vadd.f32 %v5002, %v5170
        %5172 = vmatmul.bf16.gmra.mxu0 %v4701
        %v5173 = vpop.f32.mrf.mxu0
        %v5174 = vadd.f32 %v5005, %v5173
        %v5175 = vpop.f32.mrf.mxu0
        %v5176 = vadd.f32 %v5007, %v5175
        %5177 = vmatmul.bf16.gmra.mxu0 %v4704
        %v5178 = vpop.f32.mrf.mxu0
        %v5179 = vadd.f32 %v5010, %v5178
        %v5180 = vpop.f32.mrf.mxu0
        %v5181 = vadd.f32 %v5012, %v5180
        %5182 = vmatmul.bf16.gmra.mxu0 %v4707
        %v5183 = vpop.f32.mrf.mxu0
        %v5184 = vadd.f32 %v5015, %v5183
        %v5185 = vpop.f32.mrf.mxu0
        %v5186 = vadd.f32 %v5017, %v5185
        %5187 = vmatmul.bf16.gmra.mxu0 %v4710
        %v5188 = vpop.f32.mrf.mxu0
        %v5189 = vadd.f32 %v5020, %v5188
        %v5190 = vpop.f32.mrf.mxu0
        %v5191 = vadd.f32 %v5022, %v5190
        %5192 = vmatmul.bf16.gmra.mxu0 %v4713
        %v5193 = vpop.f32.mrf.mxu0
        %v5194 = vadd.f32 %v5025, %v5193
        %v5195 = vpop.f32.mrf.mxu0
        %v5196 = vadd.f32 %v5027, %v5195
        %5197 = vmatmul.bf16.gmra.mxu0 %v4716
        %v5198 = vpop.f32.mrf.mxu0
        %v5199 = vadd.f32 %v5030, %v5198
        %v5200 = vpop.f32.mrf.mxu0
        %v5201 = vadd.f32 %v5032, %v5200
        %5202 = vmatmul.bf16.gmra.mxu0 %v4719
        %v5203 = vpop.f32.mrf.mxu0
        %v5204 = vadd.f32 %v5035, %v5203
        %v5205 = vpop.f32.mrf.mxu0
        %v5206 = vadd.f32 %v5037, %v5205
        %5207 = vmatmul.bf16.gmra.mxu0 %v4722
        %v5208 = vpop.f32.mrf.mxu0
        %v5209 = vadd.f32 %v5040, %v5208
        %v5210 = vpop.f32.mrf.mxu0
        %v5211 = vadd.f32 %v5042, %v5210
        %5212 = vmatmul.bf16.gmra.mxu0 %v4725
        %v5213 = vpop.f32.mrf.mxu0
        %v5214 = vadd.f32 %v5045, %v5213
        %v5215 = vpop.f32.mrf.mxu0
        %v5216 = vadd.f32 %v5047, %v5215
        %5217 = vmatmul.bf16.gmra.mxu0 %v4728
        %v5218 = vpop.f32.mrf.mxu0
        %v5219 = vadd.f32 %v5050, %v5218
        %v5220 = vpop.f32.mrf.mxu0
        %v5221 = vadd.f32 %v5052, %v5220
        %5222 = vmatmul.bf16.gmra.mxu0 %v4731
        %v5223 = vpop.f32.mrf.mxu0
        %v5224 = vadd.f32 %v5055, %v5223
        %v5225 = vpop.f32.mrf.mxu0
        %v5226 = vadd.f32 %v5057, %v5225
        %5227 = vmatmul.bf16.gmra.mxu0 %v4734
        %v5228 = vpop.f32.mrf.mxu0
        %v5229 = vadd.f32 %v5060, %v5228
        %v5230 = vpop.f32.mrf.mxu0
        %v5231 = vadd.f32 %v5062, %v5230
        %5232 = vmatmul.bf16.gmra.mxu0 %v4737
        %v5233 = vpop.f32.mrf.mxu0
        %v5234 = vadd.f32 %v5065, %v5233
        %v5235 = vpop.f32.mrf.mxu0
        %v5236 = vadd.f32 %v5067, %v5235
        %5237 = vmatmul.bf16.gmra.mxu0 %v4740
        %v5238 = vpop.f32.mrf.mxu0
        %v5239 = vadd.f32 %v5070, %v5238
        %v5240 = vpop.f32.mrf.mxu0
        %v5241 = vadd.f32 %v5072, %v5240
        %5242 = vmatmul.bf16.gmra.mxu0 %v4743
        %v5243 = vpop.f32.mrf.mxu0
        %v5244 = vadd.f32 %v5075, %v5243
        %v5245 = vpop.f32.mrf.mxu0
        %v5246 = vadd.f32 %v5077, %v5245
        %5247 = vmatmul.bf16.gmra.mxu0 %v4746
        %v5248 = vpop.f32.mrf.mxu0
        %v5249 = vadd.f32 %v5080, %v5248
        %v5250 = vpop.f32.mrf.mxu0
        %v5251 = vadd.f32 %v5082, %v5250
        %5252 = vmatmul.bf16.gmra.mxu0 %v4749
        %v5253 = vpop.f32.mrf.mxu0
        %v5254 = vadd.f32 %v5085, %v5253
        %v5255 = vpop.f32.mrf.mxu0
        %v5256 = vadd.f32 %v5087, %v5255
        %5257 = vdwg.mxu0
        %v5258 = vmax.f32 %v5099, 0.0
        %v5259 = vmax.f32 %v5101, 0.0
        %v5260 = vmax.f32 %v5104, 0.0
        %v5261 = vmax.f32 %v5106, 0.0
        %v5262 = vmax.f32 %v5109, 0.0
        %v5263 = vmax.f32 %v5111, 0.0
        %v5264 = vmax.f32 %v5114, 0.0
        %v5265 = vmax.f32 %v5116, 0.0
        %v5266 = vmax.f32 %v5119, 0.0
        %v5267 = vmax.f32 %v5121, 0.0
        %v5268 = vmax.f32 %v5124, 0.0
        %v5269 = vmax.f32 %v5126, 0.0
        %v5270 = vmax.f32 %v5129, 0.0
        %v5271 = vmax.f32 %v5131, 0.0
        %v5272 = vmax.f32 %v5134, 0.0
        %v5273 = vmax.f32 %v5136, 0.0
        %v5274 = vmax.f32 %v5139, 0.0
        %v5275 = vmax.f32 %v5141, 0.0
        %v5276 = vmax.f32 %v5144, 0.0
        %v5277 = vmax.f32 %v5146, 0.0
        %v5278 = vmax.f32 %v5149, 0.0
        %v5279 = vmax.f32 %v5151, 0.0
        %v5280 = vmax.f32 %v5154, 0.0
        %v5281 = vmax.f32 %v5156, 0.0
        %v5282 = vmax.f32 %v5159, 0.0
        %v5283 = vmax.f32 %v5161, 0.0
        %v5284 = vmax.f32 %v5164, 0.0
        %v5285 = vmax.f32 %v5166, 0.0
        %v5286 = vmax.f32 %v5169, 0.0
        %v5287 = vmax.f32 %v5171, 0.0
        %v5288 = vmax.f32 %v5174, 0.0
        %v5289 = vmax.f32 %v5176, 0.0
        %v5290 = vmax.f32 %v5179, 0.0
        %v5291 = vmax.f32 %v5181, 0.0
        %v5292 = vmax.f32 %v5184, 0.0
        %v5293 = vmax.f32 %v5186, 0.0
        %v5294 = vmax.f32 %v5189, 0.0
        %v5295 = vmax.f32 %v5191, 0.0
        %v5296 = vmax.f32 %v5194, 0.0
        %v5297 = vmax.f32 %v5196, 0.0
        %v5298 = vmax.f32 %v5199, 0.0
        %v5299 = vmax.f32 %v5201, 0.0
        %v5300 = vmax.f32 %v5204, 0.0
        %v5301 = vmax.f32 %v5206, 0.0
        %v5302 = vmax.f32 %v5209, 0.0
        %v5303 = vmax.f32 %v5211, 0.0
        %v5304 = vmax.f32 %v5214, 0.0
        %v5305 = vmax.f32 %v5216, 0.0
        %v5306 = vmax.f32 %v5219, 0.0
        %v5307 = vmax.f32 %v5221, 0.0
        %v5308 = vmax.f32 %v5224, 0.0
        %v5309 = vmax.f32 %v5226, 0.0
        %v5310 = vmax.f32 %v5229, 0.0
        %v5311 = vmax.f32 %v5231, 0.0
        %v5312 = vmax.f32 %v5234, 0.0
        %v5313 = vmax.f32 %v5236, 0.0
        %v5314 = vmax.f32 %v5239, 0.0
        %v5315 = vmax.f32 %v5241, 0.0
        %v5316 = vmax.f32 %v5244, 0.0
        %v5317 = vmax.f32 %v5246, 0.0
        %v5318 = vmax.f32 %v5249, 0.0
        %v5319 = vmax.f32 %v5251, 0.0
        %v5320 = vmax.f32 %v5254, 0.0
        %v5321 = vmax.f32 %v5256, 0.0
        %v5322 = vpack.c.bf16 %v5259, %v5258
        %v5323 = vpack.c.bf16 %v5261, %v5260
        %v5324 = vpack.c.bf16 %v5263, %v5262
        %v5325 = vpack.c.bf16 %v5265, %v5264
        %v5326 = vpack.c.bf16 %v5267, %v5266
        %v5327 = vpack.c.bf16 %v5269, %v5268
        %v5328 = vpack.c.bf16 %v5271, %v5270
        %v5329 = vpack.c.bf16 %v5273, %v5272
        %v5330 = vpack.c.bf16 %v5275, %v5274
        %v5331 = vpack.c.bf16 %v5277, %v5276
        %v5332 = vpack.c.bf16 %v5279, %v5278
        %v5333 = vpack.c.bf16 %v5281, %v5280
        %v5334 = vpack.c.bf16 %v5283, %v5282
        %v5335 = vpack.c.bf16 %v5285, %v5284
        %v5336 = vpack.c.bf16 %v5287, %v5286
        %v5337 = vpack.c.bf16 %v5289, %v5288
        %v5338 = vpack.c.bf16 %v5291, %v5290
        %v5339 = vpack.c.bf16 %v5293, %v5292
        %v5340 = vpack.c.bf16 %v5295, %v5294
        %v5341 = vpack.c.bf16 %v5297, %v5296
        %v5342 = vpack.c.bf16 %v5299, %v5298
        %v5343 = vpack.c.bf16 %v5301, %v5300
        %v5344 = vpack.c.bf16 %v5303, %v5302
        %v5345 = vpack.c.bf16 %v5305, %v5304
        %v5346 = vpack.c.bf16 %v5307, %v5306
        %v5347 = vpack.c.bf16 %v5309, %v5308
        %v5348 = vpack.c.bf16 %v5311, %v5310
        %v5349 = vpack.c.bf16 %v5313, %v5312
        %v5350 = vpack.c.bf16 %v5315, %v5314
        %v5351 = vpack.c.bf16 %v5317, %v5316
        %v5352 = vpack.c.bf16 %v5319, %v5318
        %v5353 = vpack.c.bf16 %v5321, %v5320
        %v5354 = vld [vmem:[%s5] sm:$0xf]
        %v5355 = vld [vmem:[%s5 + $0x4] sm:$0xf]
        %v5356 = vld [vmem:[%s5 + $0x8] sm:$0xf]
        %v5357 = vld [vmem:[%s5 + $0xc] sm:$0xf]
        %v5358 = vld [vmem:[%s6] sm:$0x1]
        %v5360 = vperm.slane %v5358, 0
        %v5366 = vunpack.c.l.b16 %v5354
        %v5367 = vunpack.c.l.b16 %v5355
        %v5368 = vunpack.c.l.b16 %v5356
        %v5369 = vunpack.c.l.b16 %v5357
        %v5370 = vpack.c.b16 %v5367, %v5366
        %v5371 = vpack.c.b16 %v5369, %v5368
        %v5375 = vsel %vm841, %v5322, 0
        %v5378 = vsel %vm841, %v5323, 0
        %v5381 = vsel %vm841, %v5324, 0
        %v5384 = vsel %vm841, %v5325, 0
        %v5387 = vsel %vm841, %v5326, 0
        %v5390 = vsel %vm841, %v5327, 0
        %v5393 = vsel %vm841, %v5328, 0
        %v5396 = vsel %vm841, %v5329, 0
        %v5399 = vsel %vm841, %v5330, 0
        %v5402 = vsel %vm841, %v5331, 0
        %v5405 = vsel %vm841, %v5332, 0
        %v5408 = vsel %vm841, %v5333, 0
        %v5411 = vsel %vm841, %v5334, 0
        %v5414 = vsel %vm841, %v5335, 0
        %v5417 = vsel %vm841, %v5336, 0
        %v5420 = vsel %vm841, %v5337, 0
        %v5423 = vsel %vm841, %v5338, 0
        %v5426 = vsel %vm841, %v5339, 0
        %v5429 = vsel %vm841, %v5340, 0
        %v5432 = vsel %vm841, %v5341, 0
        %v5435 = vsel %vm841, %v5342, 0
        %v5438 = vsel %vm841, %v5343, 0
        %v5441 = vsel %vm841, %v5344, 0
        %v5444 = vsel %vm841, %v5345, 0
        %v5447 = vsel %vm841, %v5346, 0
        %v5450 = vsel %vm841, %v5347, 0
        %v5453 = vsel %vm841, %v5348, 0
        %v5456 = vsel %vm841, %v5349, 0
        %v5459 = vsel %vm841, %v5350, 0
        %v5462 = vsel %vm841, %v5351, 0
        %v5465 = vsel %vm841, %v5352, 0
        %v5468 = vsel %vm841, %v5353, 0
        %5470 = vmatpush.bf16.msra.mxu0 0
        %5471 = vmatpush.bf16.msra.mxu0 0
        %5472 = vmatpush.bf16.msra.mxu0 0
        %5473 = vmatpush.bf16.msra.mxu0 0
        %5474 = vmatpush.bf16.msra.mxu0 0
        %5475 = vmatpush.bf16.msra.mxu0 0
        %5476 = vmatpush.bf16.msra.mxu0 %v5371
        %5477 = vmatpush.bf16.msra.mxu0 %v5370
        %5478 = vmatmul.bf16.gmra.mxu0 %v5375
        %v5479 = vpop.f32.mrf.mxu0
        %v5480 = vadd.f32 %v5360, %v5479
        %v5481 = vpop.f32.mrf.mxu0
        %v5482 = vadd.f32 %v5360, %v5481
        %5483 = vmatmul.bf16.gmra.mxu0 %v5378
        %v5484 = vpop.f32.mrf.mxu0
        %v5485 = vadd.f32 %v5360, %v5484
        %v5486 = vpop.f32.mrf.mxu0
        %v5487 = vadd.f32 %v5360, %v5486
        %5488 = vmatmul.bf16.gmra.mxu0 %v5381
        %v5489 = vpop.f32.mrf.mxu0
        %v5490 = vadd.f32 %v5360, %v5489
        %v5491 = vpop.f32.mrf.mxu0
        %v5492 = vadd.f32 %v5360, %v5491
        %5493 = vmatmul.bf16.gmra.mxu0 %v5384
        %v5494 = vpop.f32.mrf.mxu0
        %v5495 = vadd.f32 %v5360, %v5494
        %v5496 = vpop.f32.mrf.mxu0
        %v5497 = vadd.f32 %v5360, %v5496
        %5498 = vmatmul.bf16.gmra.mxu0 %v5387
        %v5499 = vpop.f32.mrf.mxu0
        %v5500 = vadd.f32 %v5360, %v5499
        %v5501 = vpop.f32.mrf.mxu0
        %v5502 = vadd.f32 %v5360, %v5501
        %5503 = vmatmul.bf16.gmra.mxu0 %v5390
        %v5504 = vpop.f32.mrf.mxu0
        %v5505 = vadd.f32 %v5360, %v5504
        %v5506 = vpop.f32.mrf.mxu0
        %v5507 = vadd.f32 %v5360, %v5506
        %5508 = vmatmul.bf16.gmra.mxu0 %v5393
        %v5509 = vpop.f32.mrf.mxu0
        %v5510 = vadd.f32 %v5360, %v5509
        %v5511 = vpop.f32.mrf.mxu0
        %v5512 = vadd.f32 %v5360, %v5511
        %5513 = vmatmul.bf16.gmra.mxu0 %v5396
        %v5514 = vpop.f32.mrf.mxu0
        %v5515 = vadd.f32 %v5360, %v5514
        %v5516 = vpop.f32.mrf.mxu0
        %v5517 = vadd.f32 %v5360, %v5516
        %5518 = vmatmul.bf16.gmra.mxu0 %v5399
        %v5519 = vpop.f32.mrf.mxu0
        %v5520 = vadd.f32 %v5360, %v5519
        %v5521 = vpop.f32.mrf.mxu0
        %v5522 = vadd.f32 %v5360, %v5521
        %5523 = vmatmul.bf16.gmra.mxu0 %v5402
        %v5524 = vpop.f32.mrf.mxu0
        %v5525 = vadd.f32 %v5360, %v5524
        %v5526 = vpop.f32.mrf.mxu0
        %v5527 = vadd.f32 %v5360, %v5526
        %5528 = vmatmul.bf16.gmra.mxu0 %v5405
        %v5529 = vpop.f32.mrf.mxu0
        %v5530 = vadd.f32 %v5360, %v5529
        %v5531 = vpop.f32.mrf.mxu0
        %v5532 = vadd.f32 %v5360, %v5531
        %5533 = vmatmul.bf16.gmra.mxu0 %v5408
        %v5534 = vpop.f32.mrf.mxu0
        %v5535 = vadd.f32 %v5360, %v5534
        %v5536 = vpop.f32.mrf.mxu0
        %v5537 = vadd.f32 %v5360, %v5536
        %5538 = vmatmul.bf16.gmra.mxu0 %v5411
        %v5539 = vpop.f32.mrf.mxu0
        %v5540 = vadd.f32 %v5360, %v5539
        %v5541 = vpop.f32.mrf.mxu0
        %v5542 = vadd.f32 %v5360, %v5541
        %5543 = vmatmul.bf16.gmra.mxu0 %v5414
        %v5544 = vpop.f32.mrf.mxu0
        %v5545 = vadd.f32 %v5360, %v5544
        %v5546 = vpop.f32.mrf.mxu0
        %v5547 = vadd.f32 %v5360, %v5546
        %5548 = vmatmul.bf16.gmra.mxu0 %v5417
        %v5549 = vpop.f32.mrf.mxu0
        %v5550 = vadd.f32 %v5360, %v5549
        %v5551 = vpop.f32.mrf.mxu0
        %v5552 = vadd.f32 %v5360, %v5551
        %5553 = vmatmul.bf16.gmra.mxu0 %v5420
        %v5554 = vpop.f32.mrf.mxu0
        %v5555 = vadd.f32 %v5360, %v5554
        %v5556 = vpop.f32.mrf.mxu0
        %v5557 = vadd.f32 %v5360, %v5556
        %5558 = vmatmul.bf16.gmra.mxu0 %v5423
        %v5559 = vpop.f32.mrf.mxu0
        %v5560 = vadd.f32 %v5360, %v5559
        %v5561 = vpop.f32.mrf.mxu0
        %v5562 = vadd.f32 %v5360, %v5561
        %5563 = vmatmul.bf16.gmra.mxu0 %v5426
        %v5564 = vpop.f32.mrf.mxu0
        %v5565 = vadd.f32 %v5360, %v5564
        %v5566 = vpop.f32.mrf.mxu0
        %v5567 = vadd.f32 %v5360, %v5566
        %5568 = vmatmul.bf16.gmra.mxu0 %v5429
        %v5569 = vpop.f32.mrf.mxu0
        %v5570 = vadd.f32 %v5360, %v5569
        %v5571 = vpop.f32.mrf.mxu0
        %v5572 = vadd.f32 %v5360, %v5571
        %5573 = vmatmul.bf16.gmra.mxu0 %v5432
        %v5574 = vpop.f32.mrf.mxu0
        %v5575 = vadd.f32 %v5360, %v5574
        %v5576 = vpop.f32.mrf.mxu0
        %v5577 = vadd.f32 %v5360, %v5576
        %5578 = vmatmul.bf16.gmra.mxu0 %v5435
        %v5579 = vpop.f32.mrf.mxu0
        %v5580 = vadd.f32 %v5360, %v5579
        %v5581 = vpop.f32.mrf.mxu0
        %v5582 = vadd.f32 %v5360, %v5581
        %5583 = vmatmul.bf16.gmra.mxu0 %v5438
        %v5584 = vpop.f32.mrf.mxu0
        %v5585 = vadd.f32 %v5360, %v5584
        %v5586 = vpop.f32.mrf.mxu0
        %v5587 = vadd.f32 %v5360, %v5586
        %5588 = vmatmul.bf16.gmra.mxu0 %v5441
        %v5589 = vpop.f32.mrf.mxu0
        %v5590 = vadd.f32 %v5360, %v5589
        %v5591 = vpop.f32.mrf.mxu0
        %v5592 = vadd.f32 %v5360, %v5591
        %5593 = vmatmul.bf16.gmra.mxu0 %v5444
        %v5594 = vpop.f32.mrf.mxu0
        %v5595 = vadd.f32 %v5360, %v5594
        %v5596 = vpop.f32.mrf.mxu0
        %v5597 = vadd.f32 %v5360, %v5596
        %5598 = vmatmul.bf16.gmra.mxu0 %v5447
        %v5599 = vpop.f32.mrf.mxu0
        %v5600 = vadd.f32 %v5360, %v5599
        %v5601 = vpop.f32.mrf.mxu0
        %v5602 = vadd.f32 %v5360, %v5601
        %5603 = vmatmul.bf16.gmra.mxu0 %v5450
        %v5604 = vpop.f32.mrf.mxu0
        %v5605 = vadd.f32 %v5360, %v5604
        %v5606 = vpop.f32.mrf.mxu0
        %v5607 = vadd.f32 %v5360, %v5606
        %5608 = vmatmul.bf16.gmra.mxu0 %v5453
        %v5609 = vpop.f32.mrf.mxu0
        %v5610 = vadd.f32 %v5360, %v5609
        %v5611 = vpop.f32.mrf.mxu0
        %v5612 = vadd.f32 %v5360, %v5611
        %5613 = vmatmul.bf16.gmra.mxu0 %v5456
        %v5614 = vpop.f32.mrf.mxu0
        %v5615 = vadd.f32 %v5360, %v5614
        %v5616 = vpop.f32.mrf.mxu0
        %v5617 = vadd.f32 %v5360, %v5616
        %5618 = vmatmul.bf16.gmra.mxu0 %v5459
        %v5619 = vpop.f32.mrf.mxu0
        %v5620 = vadd.f32 %v5360, %v5619
        %v5621 = vpop.f32.mrf.mxu0
        %v5622 = vadd.f32 %v5360, %v5621
        %5623 = vmatmul.bf16.gmra.mxu0 %v5462
        %v5624 = vpop.f32.mrf.mxu0
        %v5625 = vadd.f32 %v5360, %v5624
        %v5626 = vpop.f32.mrf.mxu0
        %v5627 = vadd.f32 %v5360, %v5626
        %5628 = vmatmul.bf16.gmra.mxu0 %v5465
        %v5629 = vpop.f32.mrf.mxu0
        %v5630 = vadd.f32 %v5360, %v5629
        %v5631 = vpop.f32.mrf.mxu0
        %v5632 = vadd.f32 %v5360, %v5631
        %5633 = vmatmul.bf16.gmra.mxu0 %v5468
        %v5634 = vpop.f32.mrf.mxu0
        %v5635 = vadd.f32 %v5360, %v5634
        %v5636 = vpop.f32.mrf.mxu0
        %v5637 = vadd.f32 %v5360, %v5636
        %5638 = vdwg.mxu0
        %v5639 = vunpack.c.l.bf16 %v284
        %v5640 = vunpack.c.l.bf16 %v285
        %v5641 = vunpack.c.l.bf16 %v286
        %v5642 = vunpack.c.l.bf16 %v287
        %v5643 = vunpack.c.l.bf16 %v288
        %v5644 = vunpack.c.l.bf16 %v289
        %v5645 = vunpack.c.l.bf16 %v290
        %v5646 = vunpack.c.l.bf16 %v291
        %v5647 = vunpack.c.l.bf16 %v292
        %v5648 = vunpack.c.l.bf16 %v293
        %v5649 = vunpack.c.l.bf16 %v294
        %v5650 = vunpack.c.l.bf16 %v295
        %v5651 = vunpack.c.l.bf16 %v296
        %v5652 = vunpack.c.l.bf16 %v297
        %v5653 = vunpack.c.l.bf16 %v298
        %v5654 = vunpack.c.l.bf16 %v299
        %v5655 = vunpack.c.l.bf16 %v300
        %v5656 = vunpack.c.l.bf16 %v301
        %v5657 = vunpack.c.l.bf16 %v302
        %v5658 = vunpack.c.l.bf16 %v303
        %v5659 = vunpack.c.l.bf16 %v304
        %v5660 = vunpack.c.l.bf16 %v305
        %v5661 = vunpack.c.l.bf16 %v306
        %v5662 = vunpack.c.l.bf16 %v307
        %v5663 = vunpack.c.l.bf16 %v308
        %v5664 = vunpack.c.l.bf16 %v309
        %v5665 = vunpack.c.l.bf16 %v310
        %v5666 = vunpack.c.l.bf16 %v311
        %v5667 = vunpack.c.l.bf16 %v312
        %v5668 = vunpack.c.l.bf16 %v313
        %v5669 = vunpack.c.l.bf16 %v314
        %v5670 = vunpack.c.l.bf16 %v315
        %v5671 = vunpack.c.l.bf16 %v316
        %v5672 = vunpack.c.l.bf16 %v317
        %v5673 = vunpack.c.l.bf16 %v318
        %v5674 = vunpack.c.l.bf16 %v319
        %v5675 = vunpack.c.l.bf16 %v320
        %v5676 = vunpack.c.l.bf16 %v321
        %v5677 = vunpack.c.l.bf16 %v322
        %v5678 = vunpack.c.l.bf16 %v323
        %v5679 = vunpack.c.l.bf16 %v324
        %v5680 = vunpack.c.l.bf16 %v325
        %v5681 = vunpack.c.l.bf16 %v326
        %v5682 = vunpack.c.l.bf16 %v327
        %v5683 = vunpack.c.l.bf16 %v328
        %v5684 = vunpack.c.l.bf16 %v329
        %v5685 = vunpack.c.l.bf16 %v330
        %v5686 = vunpack.c.l.bf16 %v331
        %v5687 = vunpack.c.l.bf16 %v332
        %v5688 = vunpack.c.l.bf16 %v333
        %v5689 = vunpack.c.l.bf16 %v334
        %v5690 = vunpack.c.l.bf16 %v335
        %v5691 = vunpack.c.l.bf16 %v336
        %v5692 = vunpack.c.l.bf16 %v337
        %v5693 = vunpack.c.l.bf16 %v338
        %v5694 = vunpack.c.l.bf16 %v339
        %v5695 = vunpack.c.l.bf16 %v340
        %v5696 = vunpack.c.l.bf16 %v341
        %v5697 = vunpack.c.l.bf16 %v342
        %v5698 = vunpack.c.l.bf16 %v343
        %v5699 = vunpack.c.l.bf16 %v344
        %v5700 = vunpack.c.l.bf16 %v345
        %v5701 = vunpack.c.l.bf16 %v346
        %v5702 = vunpack.c.l.bf16 %v347
        %v5703 = vadd.f32 %v5480, %v5639
        %v5704 = vadd.f32 %v5482, %v5640
        %v5705 = vadd.f32 %v5485, %v5641
        %v5706 = vadd.f32 %v5487, %v5642
        %v5707 = vadd.f32 %v5490, %v5643
        %v5708 = vadd.f32 %v5492, %v5644
        %v5709 = vadd.f32 %v5495, %v5645
        %v5710 = vadd.f32 %v5497, %v5646
        %v5711 = vadd.f32 %v5500, %v5647
        %v5712 = vadd.f32 %v5502, %v5648
        %v5713 = vadd.f32 %v5505, %v5649
        %v5714 = vadd.f32 %v5507, %v5650
        %v5715 = vadd.f32 %v5510, %v5651
        %v5716 = vadd.f32 %v5512, %v5652
        %v5717 = vadd.f32 %v5515, %v5653
        %v5718 = vadd.f32 %v5517, %v5654
        %v5719 = vadd.f32 %v5520, %v5655
        %v5720 = vadd.f32 %v5522, %v5656
        %v5721 = vadd.f32 %v5525, %v5657
        %v5722 = vadd.f32 %v5527, %v5658
        %v5723 = vadd.f32 %v5530, %v5659
        %v5724 = vadd.f32 %v5532, %v5660
        %v5725 = vadd.f32 %v5535, %v5661
        %v5726 = vadd.f32 %v5537, %v5662
        %v5727 = vadd.f32 %v5540, %v5663
        %v5728 = vadd.f32 %v5542, %v5664
        %v5729 = vadd.f32 %v5545, %v5665
        %v5730 = vadd.f32 %v5547, %v5666
        %v5731 = vadd.f32 %v5550, %v5667
        %v5732 = vadd.f32 %v5552, %v5668
        %v5733 = vadd.f32 %v5555, %v5669
        %v5734 = vadd.f32 %v5557, %v5670
        %v5735 = vadd.f32 %v5560, %v5671
        %v5736 = vadd.f32 %v5562, %v5672
        %v5737 = vadd.f32 %v5565, %v5673
        %v5738 = vadd.f32 %v5567, %v5674
        %v5739 = vadd.f32 %v5570, %v5675
        %v5740 = vadd.f32 %v5572, %v5676
        %v5741 = vadd.f32 %v5575, %v5677
        %v5742 = vadd.f32 %v5577, %v5678
        %v5743 = vadd.f32 %v5580, %v5679
        %v5744 = vadd.f32 %v5582, %v5680
        %v5745 = vadd.f32 %v5585, %v5681
        %v5746 = vadd.f32 %v5587, %v5682
        %v5747 = vadd.f32 %v5590, %v5683
        %v5748 = vadd.f32 %v5592, %v5684
        %v5749 = vadd.f32 %v5595, %v5685
        %v5750 = vadd.f32 %v5597, %v5686
        %v5751 = vadd.f32 %v5600, %v5687
        %v5752 = vadd.f32 %v5602, %v5688
        %v5753 = vadd.f32 %v5605, %v5689
        %v5754 = vadd.f32 %v5607, %v5690
        %v5755 = vadd.f32 %v5610, %v5691
        %v5756 = vadd.f32 %v5612, %v5692
        %v5757 = vadd.f32 %v5615, %v5693
        %v5758 = vadd.f32 %v5617, %v5694
        %v5759 = vadd.f32 %v5620, %v5695
        %v5760 = vadd.f32 %v5622, %v5696
        %v5761 = vadd.f32 %v5625, %v5697
        %v5762 = vadd.f32 %v5627, %v5698
        %v5763 = vadd.f32 %v5630, %v5699
        %v5764 = vadd.f32 %v5632, %v5700
        %v5765 = vadd.f32 %v5635, %v5701
        %v5766 = vadd.f32 %v5637, %v5702
        %v5767 = vmax.f32 %v5703, 0.0
        %v5768 = vmax.f32 %v5704, 0.0
        %v5769 = vmax.f32 %v5705, 0.0
        %v5770 = vmax.f32 %v5706, 0.0
        %v5771 = vmax.f32 %v5707, 0.0
        %v5772 = vmax.f32 %v5708, 0.0
        %v5773 = vmax.f32 %v5709, 0.0
        %v5774 = vmax.f32 %v5710, 0.0
        %v5775 = vmax.f32 %v5711, 0.0
        %v5776 = vmax.f32 %v5712, 0.0
        %v5777 = vmax.f32 %v5713, 0.0
        %v5778 = vmax.f32 %v5714, 0.0
        %v5779 = vmax.f32 %v5715, 0.0
        %v5780 = vmax.f32 %v5716, 0.0
        %v5781 = vmax.f32 %v5717, 0.0
        %v5782 = vmax.f32 %v5718, 0.0
        %v5783 = vmax.f32 %v5719, 0.0
        %v5784 = vmax.f32 %v5720, 0.0
        %v5785 = vmax.f32 %v5721, 0.0
        %v5786 = vmax.f32 %v5722, 0.0
        %v5787 = vmax.f32 %v5723, 0.0
        %v5788 = vmax.f32 %v5724, 0.0
        %v5789 = vmax.f32 %v5725, 0.0
        %v5790 = vmax.f32 %v5726, 0.0
        %v5791 = vmax.f32 %v5727, 0.0
        %v5792 = vmax.f32 %v5728, 0.0
        %v5793 = vmax.f32 %v5729, 0.0
        %v5794 = vmax.f32 %v5730, 0.0
        %v5795 = vmax.f32 %v5731, 0.0
        %v5796 = vmax.f32 %v5732, 0.0
        %v5797 = vmax.f32 %v5733, 0.0
        %v5798 = vmax.f32 %v5734, 0.0
        %v5799 = vmax.f32 %v5735, 0.0
        %v5800 = vmax.f32 %v5736, 0.0
        %v5801 = vmax.f32 %v5737, 0.0
        %v5802 = vmax.f32 %v5738, 0.0
        %v5803 = vmax.f32 %v5739, 0.0
        %v5804 = vmax.f32 %v5740, 0.0
        %v5805 = vmax.f32 %v5741, 0.0
        %v5806 = vmax.f32 %v5742, 0.0
        %v5807 = vmax.f32 %v5743, 0.0
        %v5808 = vmax.f32 %v5744, 0.0
        %v5809 = vmax.f32 %v5745, 0.0
        %v5810 = vmax.f32 %v5746, 0.0
        %v5811 = vmax.f32 %v5747, 0.0
        %v5812 = vmax.f32 %v5748, 0.0
        %v5813 = vmax.f32 %v5749, 0.0
        %v5814 = vmax.f32 %v5750, 0.0
        %v5815 = vmax.f32 %v5751, 0.0
        %v5816 = vmax.f32 %v5752, 0.0
        %v5817 = vmax.f32 %v5753, 0.0
        %v5818 = vmax.f32 %v5754, 0.0
        %v5819 = vmax.f32 %v5755, 0.0
        %v5820 = vmax.f32 %v5756, 0.0
        %v5821 = vmax.f32 %v5757, 0.0
        %v5822 = vmax.f32 %v5758, 0.0
        %v5823 = vmax.f32 %v5759, 0.0
        %v5824 = vmax.f32 %v5760, 0.0
        %v5825 = vmax.f32 %v5761, 0.0
        %v5826 = vmax.f32 %v5762, 0.0
        %v5827 = vmax.f32 %v5763, 0.0
        %v5828 = vmax.f32 %v5764, 0.0
        %v5829 = vmax.f32 %v5765, 0.0
        %v5830 = vmax.f32 %v5766, 0.0
        %v5831 = vpack.c.bf16 %v5767, %v5767
        %v5832 = vpack.c.bf16 %v5768, %v5768
        %v5833 = vpack.c.bf16 %v5769, %v5769
        %v5834 = vpack.c.bf16 %v5770, %v5770
        %v5835 = vpack.c.bf16 %v5771, %v5771
        %v5836 = vpack.c.bf16 %v5772, %v5772
        %v5837 = vpack.c.bf16 %v5773, %v5773
        %v5838 = vpack.c.bf16 %v5774, %v5774
        %v5839 = vpack.c.bf16 %v5775, %v5775
        %v5840 = vpack.c.bf16 %v5776, %v5776
        %v5841 = vpack.c.bf16 %v5777, %v5777
        %v5842 = vpack.c.bf16 %v5778, %v5778
        %v5843 = vpack.c.bf16 %v5779, %v5779
        %v5844 = vpack.c.bf16 %v5780, %v5780
        %v5845 = vpack.c.bf16 %v5781, %v5781
        %v5846 = vpack.c.bf16 %v5782, %v5782
        %v5847 = vpack.c.bf16 %v5783, %v5783
        %v5848 = vpack.c.bf16 %v5784, %v5784
        %v5849 = vpack.c.bf16 %v5785, %v5785
        %v5850 = vpack.c.bf16 %v5786, %v5786
        %v5851 = vpack.c.bf16 %v5787, %v5787
        %v5852 = vpack.c.bf16 %v5788, %v5788
        %v5853 = vpack.c.bf16 %v5789, %v5789
        %v5854 = vpack.c.bf16 %v5790, %v5790
        %v5855 = vpack.c.bf16 %v5791, %v5791
        %v5856 = vpack.c.bf16 %v5792, %v5792
        %v5857 = vpack.c.bf16 %v5793, %v5793
        %v5858 = vpack.c.bf16 %v5794, %v5794
        %v5859 = vpack.c.bf16 %v5795, %v5795
        %v5860 = vpack.c.bf16 %v5796, %v5796
        %v5861 = vpack.c.bf16 %v5797, %v5797
        %v5862 = vpack.c.bf16 %v5798, %v5798
        %v5863 = vpack.c.bf16 %v5799, %v5799
        %v5864 = vpack.c.bf16 %v5800, %v5800
        %v5865 = vpack.c.bf16 %v5801, %v5801
        %v5866 = vpack.c.bf16 %v5802, %v5802
        %v5867 = vpack.c.bf16 %v5803, %v5803
        %v5868 = vpack.c.bf16 %v5804, %v5804
        %v5869 = vpack.c.bf16 %v5805, %v5805
        %v5870 = vpack.c.bf16 %v5806, %v5806
        %v5871 = vpack.c.bf16 %v5807, %v5807
        %v5872 = vpack.c.bf16 %v5808, %v5808
        %v5873 = vpack.c.bf16 %v5809, %v5809
        %v5874 = vpack.c.bf16 %v5810, %v5810
        %v5875 = vpack.c.bf16 %v5811, %v5811
        %v5876 = vpack.c.bf16 %v5812, %v5812
        %v5877 = vpack.c.bf16 %v5813, %v5813
        %v5878 = vpack.c.bf16 %v5814, %v5814
        %v5879 = vpack.c.bf16 %v5815, %v5815
        %v5880 = vpack.c.bf16 %v5816, %v5816
        %v5881 = vpack.c.bf16 %v5817, %v5817
        %v5882 = vpack.c.bf16 %v5818, %v5818
        %v5883 = vpack.c.bf16 %v5819, %v5819
        %v5884 = vpack.c.bf16 %v5820, %v5820
        %v5885 = vpack.c.bf16 %v5821, %v5821
        %v5886 = vpack.c.bf16 %v5822, %v5822
        %v5887 = vpack.c.bf16 %v5823, %v5823
        %v5888 = vpack.c.bf16 %v5824, %v5824
        %v5889 = vpack.c.bf16 %v5825, %v5825
        %v5890 = vpack.c.bf16 %v5826, %v5826
        %v5891 = vpack.c.bf16 %v5827, %v5827
        %v5892 = vpack.c.bf16 %v5828, %v5828
        %v5893 = vpack.c.bf16 %v5829, %v5829
        %v5894 = vpack.c.bf16 %v5830, %v5830
        %5895 = vst [vmem:[%s274] sm:$0xf] %v5831
        %5896 = vst [vmem:[%s274 + $0x4] sm:$0xf] %v5832
        %5897 = vst [vmem:[%s274 + $0x8] sm:$0xf] %v5833
        %5898 = vst [vmem:[%s274 + $0xc] sm:$0xf] %v5834
        %5899 = vst [vmem:[%s274 + $0x10] sm:$0xf] %v5835
        %5900 = vst [vmem:[%s274 + $0x14] sm:$0xf] %v5836
        %5901 = vst [vmem:[%s274 + $0x18] sm:$0xf] %v5837
        %5902 = vst [vmem:[%s274 + $0x1c] sm:$0xf] %v5838
        %5903 = vst [vmem:[%s274 + $0x20] sm:$0xf] %v5839
        %5904 = vst [vmem:[%s274 + $0x24] sm:$0xf] %v5840
        %5905 = vst [vmem:[%s274 + $0x28] sm:$0xf] %v5841
        %5906 = vst [vmem:[%s274 + $0x2c] sm:$0xf] %v5842
        %5907 = vst [vmem:[%s274 + $0x30] sm:$0xf] %v5843
        %5908 = vst [vmem:[%s274 + $0x34] sm:$0xf] %v5844
        %5909 = vst [vmem:[%s274 + $0x38] sm:$0xf] %v5845
        %5910 = vst [vmem:[%s274 + $0x3c] sm:$0xf] %v5846
        %5911 = vst [vmem:[%s274 + $0x40] sm:$0xf] %v5847
        %5912 = vst [vmem:[%s274 + $0x44] sm:$0xf] %v5848
        %5913 = vst [vmem:[%s274 + $0x48] sm:$0xf] %v5849
        %5914 = vst [vmem:[%s274 + $0x4c] sm:$0xf] %v5850
        %5915 = vst [vmem:[%s274 + $0x50] sm:$0xf] %v5851
        %5916 = vst [vmem:[%s274 + $0x54] sm:$0xf] %v5852
        %5917 = vst [vmem:[%s274 + $0x58] sm:$0xf] %v5853
        %5918 = vst [vmem:[%s274 + $0x5c] sm:$0xf] %v5854
        %5919 = vst [vmem:[%s274 + $0x60] sm:$0xf] %v5855
        %5920 = vst [vmem:[%s274 + $0x64] sm:$0xf] %v5856
        %5921 = vst [vmem:[%s274 + $0x68] sm:$0xf] %v5857
        %5922 = vst [vmem:[%s274 + $0x6c] sm:$0xf] %v5858
        %5923 = vst [vmem:[%s274 + $0x70] sm:$0xf] %v5859
        %5924 = vst [vmem:[%s274 + $0x74] sm:$0xf] %v5860
        %5925 = vst [vmem:[%s274 + $0x78] sm:$0xf] %v5861
        %5926 = vst [vmem:[%s274 + $0x7c] sm:$0xf] %v5862
        %5927 = vst [vmem:[%s274 + $0x80] sm:$0xf] %v5863
        %5928 = vst [vmem:[%s274 + $0x84] sm:$0xf] %v5864
        %5929 = vst [vmem:[%s274 + $0x88] sm:$0xf] %v5865
        %5930 = vst [vmem:[%s274 + $0x8c] sm:$0xf] %v5866
        %5931 = vst [vmem:[%s274 + $0x90] sm:$0xf] %v5867
        %5932 = vst [vmem:[%s274 + $0x94] sm:$0xf] %v5868
        %5933 = vst [vmem:[%s274 + $0x98] sm:$0xf] %v5869
        %5934 = vst [vmem:[%s274 + $0x9c] sm:$0xf] %v5870
        %5935 = vst [vmem:[%s274 + $0xa0] sm:$0xf] %v5871
        %5936 = vst [vmem:[%s274 + $0xa4] sm:$0xf] %v5872
        %5937 = vst [vmem:[%s274 + $0xa8] sm:$0xf] %v5873
        %5938 = vst [vmem:[%s274 + $0xac] sm:$0xf] %v5874
        %5939 = vst [vmem:[%s274 + $0xb0] sm:$0xf] %v5875
        %5940 = vst [vmem:[%s274 + $0xb4] sm:$0xf] %v5876
        %5941 = vst [vmem:[%s274 + $0xb8] sm:$0xf] %v5877
        %5942 = vst [vmem:[%s274 + $0xbc] sm:$0xf] %v5878
        %5943 = vst [vmem:[%s274 + $0xc0] sm:$0xf] %v5879
        %5944 = vst [vmem:[%s274 + $0xc4] sm:$0xf] %v5880
        %5945 = vst [vmem:[%s274 + $0xc8] sm:$0xf] %v5881
        %5946 = vst [vmem:[%s274 + $0xcc] sm:$0xf] %v5882
        %5947 = vst [vmem:[%s274 + $0xd0] sm:$0xf] %v5883
        %5948 = vst [vmem:[%s274 + $0xd4] sm:$0xf] %v5884
        %5949 = vst [vmem:[%s274 + $0xd8] sm:$0xf] %v5885
        %5950 = vst [vmem:[%s274 + $0xdc] sm:$0xf] %v5886
        %5951 = vst [vmem:[%s274 + $0xe0] sm:$0xf] %v5887
        %5952 = vst [vmem:[%s274 + $0xe4] sm:$0xf] %v5888
        %5953 = vst [vmem:[%s274 + $0xe8] sm:$0xf] %v5889
        %5954 = vst [vmem:[%s274 + $0xec] sm:$0xf] %v5890
        %5955 = vst [vmem:[%s274 + $0xf0] sm:$0xf] %v5891
        %5956 = vst [vmem:[%s274 + $0xf4] sm:$0xf] %v5892
        %5957 = vst [vmem:[%s274 + $0xf8] sm:$0xf] %v5893
        %5958 = vst [vmem:[%s274 + $0xfc] sm:$0xf] %v5894
        %s5959 = sand.u32 %s181, 1
        %s5960 = scalar_lea.sflag [#allocation4], %s5959
        %s5961 = sand.u32 %s181, 1
        %s5962 = smul.addr %s5961, 256
        %s5963 = scalar_lea.vmem [#allocation3], %s5962
        // Predicated region
        $region49: #{bottleneck_forward_nhwc.1} parent=47 // pred_check
          %p5964 = pneg %p191
        $region50: #{bottleneck_forward_nhwc.1} parent=47 // pred_check_branch
          %5966 = sbr.rel (%p5964) target = $region52
        $region51: #{bottleneck_forward_nhwc.1} parent=47 // pred_region
          %s5967 = smul.u32 2, %s21
          %5969 = vsyncadd %s5960, 0
          %s5970 = smul.addr %s5967, 32
          %s5971 = smul.addr %s5970, 4
          %s5972 = scalar_lea.hbm %s7, %s5971
          %s5973 = sshll.u32 %s5963, 4
          %s5974 = int_to_ptr.vmem [resolvable:$true] %s5973
          %s5975 = sshll.u32 %s5972, 4
          %s5976 = int_to_ptr.hbm [resolvable:$true] %s5975
          %5981 = dma.vmem_to_hbm [thread:$0]  %s5974, 4096, %s5976, %s5960, 64, 64, 4
        $region52: #{bottleneck_forward_nhwc.1} parent=47 // pred_fallthru
          _
      $region48: #{bottleneck_forward_nhwc.1} parent=5 // pred_fallthru
        _
      %p5982 = scmp.le.s32.totalorder 2, %s16
      // Predicated region
      $region53: #{bottleneck_forward_nhwc.1} parent=5 // pred_check
        %p5983 = pneg %p5982
      $region54: #{bottleneck_forward_nhwc.1} parent=5 // pred_check_branch
        %5985 = sbr.rel (%p5983) target = $region56
      $region55: #{bottleneck_forward_nhwc.1} parent=5 // pred_region
        %s5986 = ssub.s32 %s16, 2
        // Predicated region
        $region57: #{bottleneck_forward_nhwc.1} parent=55 // pred_check
          %p5987 = pneg %p197
        $region58: #{bottleneck_forward_nhwc.1} parent=55 // pred_check_branch
          %5989 = sbr.rel (%p5987) target = $region60
        $region59: #{bottleneck_forward_nhwc.1} parent=55 // pred_region
          %s5990 = sand.u32 %s182, 1
          %s5991 = scalar_lea.sflag [#allocation4], %s5990
          %s5992 = sand.u32 %s182, 1
          %s5993 = smul.addr %s5992, 256
          %s5994 = scalar_lea.vmem [#allocation3], %s5993
          %5996 = dma.done %s5991, 4096
        $region60: #{bottleneck_forward_nhwc.1} parent=55 // pred_fallthru
          _
      $region56: #{bottleneck_forward_nhwc.1} parent=5 // pred_fallthru
        _
    $region6: #{bottleneck_forward_nhwc.1} parent=1 // loop_footer
      %s20 = sadd.s32 1, %s16
    $region7: #{bottleneck_forward_nhwc.1} parent=1 // loop_footer_branch
      %15 = sbr.rel target = $region3
    $region8: #{bottleneck_forward_nhwc.1} parent=1 // loop_exit
      _
    %5997 = vsyncpa [#allocation4], 1
    %s5998 = scalar_lea.sflag [#allocation4], 1
    %5999 = vsyncpa %s5998, 1

</llo_original>
